<compile_context>
chip_gen: v7x
topology: tpu7x:2x2x1
jax: 0.10.0
libtpu: 0.0.40
codegen_flags: <defaults>
</compile_context>

<pallas_src>
import functools

import jax
import jax.numpy as jnp
import numpy as np
from jax.experimental import pallas as pl
from jax.experimental.pallas import tpu as pltpu


# ----------------------------------------------------------------------------
# Host-side packing: banded weight matrices + lane-expanded biases
# ----------------------------------------------------------------------------
def _build_banded_gates(w_hwio, Cin, Hd, W, K, pad):
    """(K,K,Cin+Hd,4*Hd) HWIO conv weight -> (K*Wp*(Cin+Hd), 4*W*Hd) banded matrix."""
    Wp = W + 2 * pad
    w = np.asarray(w_hwio, np.float32).reshape(K, K, Cin + Hd, 4, Hd)
    XW = Wp * Cin
    BLK = Wp * (Cin + Hd)
    out = np.zeros((K * BLK, 4, W, Hd), np.float32)
    for kh in range(K):
        for kw in range(K):
            for ww in range(W):
                wp = ww + kw                       # position in the padded row
                rx = kh * BLK + wp * Cin           # x-channel rows
                out[rx:rx + Cin, :, ww, :] = w[kh, kw, :Cin]
                rh = kh * BLK + XW + wp * Hd       # prev_h-channel rows
                out[rh:rh + Hd, :, ww, :] = w[kh, kw, Cin:]
    return out.reshape(K * BLK, 4 * W * Hd)        # cols ordered (gate, w, hd)


def _build_banded_rp(w_hwio, Hd, nz, W, K, pad):
    """(K,K,Hd,2*nz) HWIO conv weight -> (K*Wp*Hd, 2*W*nz) banded matrix."""
    Wp = W + 2 * pad
    w = np.asarray(w_hwio, np.float32).reshape(K, K, Hd, 2, nz)
    BLK = Wp * Hd
    out = np.zeros((K * BLK, 2, W, nz), np.float32)
    for kh in range(K):
        for kw in range(K):
            for ww in range(W):
                r = kh * BLK + (ww + kw) * Hd
                out[r:r + Hd, :, ww, :] = w[kh, kw]
    return out.reshape(K * BLK, 2 * W * nz)        # cols ordered (mean|logvar, w, nz)


def pack_params(w_gates_hwio, b_gates, w_rp_hwio, b_rp, *, input_size, hidden_size, nz,
                kernel_size, padding, height, width, compute_dtype=jnp.float32,
                batch_block=1):
    """Pack HWIO conv weights into banded matmul form (done ONCE per model, host-side).

    NOTE: real PyTorch OIHW weights must be permuted (2, 3, 1, 0) to HWIO first.
    batch_block: batch elements per grid step.  Use B on single-TC v5e/v6e, 1 (or B//2)
    on dual-TC v7x so the batch grid axis keeps both TensorCores busy.
    """
    Cin, Hd, K, pad = input_size, hidden_size, kernel_size, padding
    H, W = height, width
    assert pad == (K - 1) // 2, "banded packing assumes 'same' padding with stride 1"
    w_g = np.asarray(w_gates_hwio, np.float32)
    w_r = np.asarray(w_rp_hwio, np.float32)
    assert w_g.shape == (K, K, Cin + Hd, 4 * Hd)
    assert w_r.shape == (K, K, Hd, 2 * nz)

    wgb = _build_banded_gates(w_g, Cin, Hd, W, K, pad)
    wrb = _build_banded_rp(w_r, Hd, nz, W, K, pad)

    bg = np.asarray(b_gates, np.float32).reshape(-1)
    br = np.asarray(b_rp, np.float32).reshape(-1)
    assert bg.size == 4 * Hd and br.size == 2 * nz
    bge = np.broadcast_to(bg.reshape(4, 1, Hd), (4, W, Hd)).reshape(1, 4 * W * Hd)
    bre = np.broadcast_to(br.reshape(2, 1, nz), (2, W, nz)).reshape(1, 2 * W * nz)

    return {
        "input_size": Cin, "hidden_size": Hd, "nz": nz,
        "kernel_size": K, "padding": pad, "height": H, "width": W,
        "compute_dtype": compute_dtype, "batch_block": batch_block,
        "w_gates_banded": jnp.asarray(wgb, compute_dtype),
        "b_gates_exp": jnp.asarray(bge, jnp.float32),
        "w_rp_banded": jnp.asarray(wrb, compute_dtype),
        "b_rp_exp": jnp.asarray(bre, jnp.float32),
    }


# ----------------------------------------------------------------------------
# Fused kernel: gates conv -> LSTM gate math -> cell/hidden -> reparam conv
# ----------------------------------------------------------------------------
def _fused_cell_kernel(x_ref, ph_ref, pc_ref, wg_ref, bg_ref, wr_ref, br_ref,
                       h_ref, c_ref, mv_ref,
                       xpad_ref, hpad_ref, lg_ref, lr_ref,
                       *, H, W, K, pad, Cin, Hd, BB, compute_dtype):
    # x_ref  : (BB, H, W*Cin)   ph_ref/pc_ref : (BB, H, W*Hd)
    # wg_ref : (K*Wp*(Cin+Hd), 4*W*Hd) banded   bg_ref : (1, 4*W*Hd)
    # wr_ref : (K*Wp*Hd, 2*W*nz)       banded   br_ref : (1, 2*W*nz)
    # h_ref/c_ref : (BB, H, W*Hd)      mv_ref : (BB, H, 2*W*nz)  [mean | logvar]
    # xpad_ref : (Hp, Wp*Cin) f32   hpad_ref : (Hp, Wp*Hd) f32   (lane-dense slabs)
    # lg_ref   : (H, K*Wp*(Cin+Hd)) compute_dtype   lr_ref : (H, K*Wp*Hd) compute_dtype
    GW = W * Hd                      # per-gate lane width (128 at test shapes)
    XW = (W + 2 * pad) * Cin         # x-part lane width of a padded row
    HWW = (W + 2 * pad) * Hd         # h-part lane width of a padded row
    BLK = XW + HWW                   # per-kh column block of the gates LHS

    # 2-D lane-dense slabs -> full zeroing is only a handful of vector stores.
    # Zero every grid step: with "parallel" megacore sharding a given core may never
    # run program_id == 0.  The interior is fully overwritten per batch element below.
    xpad_ref[...] = jnp.zeros_like(xpad_ref)
    hpad_ref[...] = jnp.zeros_like(hpad_ref)

    for b in range(BB):              # static unroll over the per-step batch block
        # ---- scatter x / prev_h rows into the padded (h', (w', c)) slabs ----------
        xpad_ref[pad:pad + H, pad * Cin:pad * Cin + W * Cin] = (
            x_ref[b].astype(jnp.float32))
        hpad_ref[pad:pad + H, pad * Hd:pad * Hd + W * Hd] = (
            ph_ref[b].astype(jnp.float32))

        # ---- row-im2col: K sublane-shifted, lane-dense copies; NO per-tap reshape --
        for kh in range(K):
            off = kh * BLK
            lg_ref[:, off:off + XW] = xpad_ref[kh:kh + H, :].astype(compute_dtype)
            lg_ref[:, off + XW:off + BLK] = hpad_ref[kh:kh + H, :].astype(compute_dtype)

        # ---- gates conv: ONE MXU matmul against the banded weight ------------------
        gates = jnp.dot(lg_ref[...], wg_ref[...],
                        preferred_element_type=jnp.float32) + bg_ref[...]
        # columns ordered (gate, w, hd): each gate is a dense, 128-aligned lane slice.

        # ---- LSTM gate math (PyTorch chunk(4,1) order), all (H, GW) lane-dense -----
        sig = jax.nn.sigmoid(gates[:, :3 * GW])          # fused in/remember/out sigmoid
        in_g, rem_g, out_g = sig[:, :GW], sig[:, GW:2 * GW], sig[:, 2 * GW:3 * GW]
        cell_g = jnp.tanh(gates[:, 3 * GW:])

        prev_c = pc_ref[b].astype(jnp.float32)
        cell = rem_g * prev_c + in_g * cell_g
        hidden = out_g * jnp.tanh(cell)

        c_ref[b] = cell.astype(c_ref.dtype)
        h_ref[b] = hidden.astype(h_ref.dtype)

        # ---- reparam conv on the new hidden (reuse the hpad slab) ------------------
        hpad_ref[pad:pad + H, pad * Hd:pad * Hd + W * Hd] = hidden
        for kh in range(K):
            lr_ref[:, kh * HWW:(kh + 1) * HWW] = (
                hpad_ref[kh:kh + H, :].astype(compute_dtype))
        mv = jnp.dot(lr_ref[...], wr_ref[...],
                     preferred_element_type=jnp.float32) + br_ref[...]
        mv_ref[b] = mv.astype(mv_ref.dtype)              # (H, 2*W*nz): [mean | logvar]


# ----------------------------------------------------------------------------
# pallas_call wrapper (kernel-native lane-dense layout)
# ----------------------------------------------------------------------------
def _fused_step(x_f, ph_f, pc_f, w_g, b_g, w_r, b_r, *, H, W, K, pad, Cin, Hd, nz,
                compute_dtype, batch_block):
    B = x_f.shape[0]
    BB = batch_block
    Hp, Wp = H + 2 * pad, W + 2 * pad
    BLK = Wp * (Cin + Hd)
    BLKr = Wp * Hd
    dtype = x_f.dtype

    kernel = functools.partial(
        _fused_cell_kernel, H=H, W=W, K=K, pad=pad, Cin=Cin, Hd=Hd, BB=BB,
        compute_dtype=compute_dtype)

    out_shape = (jax.ShapeDtypeStruct((B, H, W * Hd), dtype),
                 jax.ShapeDtypeStruct((B, H, W * Hd), dtype),
                 jax.ShapeDtypeStruct((B, H, 2 * W * nz), dtype))

    grid_spec = pltpu.PrefetchScalarGridSpec(
        num_scalar_prefetch=0,
        grid=(B // BB,),
        in_specs=[
            pl.BlockSpec((BB, H, W * Cin), lambda i: (i, 0, 0)),
            pl.BlockSpec((BB, H, W * Hd), lambda i: (i, 0, 0)),
            pl.BlockSpec((BB, H, W * Hd), lambda i: (i, 0, 0)),
            # Constant index maps -> weights/biases DMA'd once per pallas_call.
            pl.BlockSpec(w_g.shape, lambda i: (0, 0)),
            pl.BlockSpec(b_g.shape, lambda i: (0, 0)),
            pl.BlockSpec(w_r.shape, lambda i: (0, 0)),
            pl.BlockSpec(b_r.shape, lambda i: (0, 0)),
        ],
        out_specs=(
            pl.BlockSpec((BB, H, W * Hd), lambda i: (i, 0, 0)),
            pl.BlockSpec((BB, H, W * Hd), lambda i: (i, 0, 0)),
            pl.BlockSpec((BB, H, 2 * W * nz), lambda i: (i, 0, 0)),
        ),
        scratch_shapes=[
            pltpu.VMEM((Hp, Wp * Cin), jnp.float32),     # padded x slab (lane-dense)
            pltpu.VMEM((Hp, Wp * Hd), jnp.float32),      # padded h slab (lane-dense)
            pltpu.VMEM((H, K * BLK), compute_dtype),     # gates row-im2col LHS
            pltpu.VMEM((H, K * BLKr), compute_dtype),    # reparam row-im2col LHS
        ],
    )

    return pl.pallas_call(
        kernel,
        out_shape=out_shape,
        grid_spec=grid_spec,
        # v7x: with batch_block=1 the batch axis shards across both TensorCores.
        compiler_params=pltpu.CompilerParams(dimension_semantics=("parallel",)),
    )(x_f, ph_f, pc_f, w_g, b_g, w_r, b_r)


def conv_draw_encoder_cell_flat(params, x_flat, prev_state=None):
    """Forward pass in kernel-native lane-dense layout: (B, H, W*channels).

    Use this inside a DRAW recurrence so state never round-trips through NCHW.
    Returns (mean, logvar, hidden, (hidden, cell)) with mean/logvar of shape (B,H,W*nz).
    """
    Cin, Hd, nz = params["input_size"], params["hidden_size"], params["nz"]
    K, pad = params["kernel_size"], params["padding"]
    H, W = params["height"], params["width"]
    B = x_flat.shape[0]
    assert x_flat.shape == (B, H, W * Cin)

    if prev_state is None:
        prev_h = jnp.zeros((B, H, W * Hd), x_flat.dtype)
        prev_c = jnp.zeros((B, H, W * Hd), x_flat.dtype)
    else:
        prev_h, prev_c = prev_state

    bb = int(params.get("batch_block", 1))
    assert B % bb == 0, "batch_block must divide the batch size"

    h, c, mv = _fused_step(
        x_flat, prev_h, prev_c,
        params["w_gates_banded"], params["b_gates_exp"],
        params["w_rp_banded"], params["b_rp_exp"],
        H=H, W=W, K=K, pad=pad, Cin=Cin, Hd=Hd, nz=nz,
        compute_dtype=params["compute_dtype"], batch_block=bb)

    mean, logvar = mv[..., :W * nz], mv[..., W * nz:]
    return mean, logvar, h, (h, c)


def conv_draw_encoder_cell(params, x_nchw, prev_state=None):
    """PyTorch-compatible adapter: NCHW in / NCHW out (layout converted only here)."""
    B, _, H, W = x_nchw.shape
    assert (H, W) == (params["height"], params["width"])
    to_flat = lambda t: jnp.transpose(t, (0, 2, 3, 1)).reshape(B, H, -1)

    def to_nchw(t):
        C = t.shape[-1] // W
        return jnp.transpose(t.reshape(B, H, W, C), (0, 3, 1, 2))

    x_f = to_flat(x_nchw)
    state_f = None
    if prev_state is not None:
        state_f = (to_flat(prev_state[0]), to_flat(prev_state[1]))

    mean_f, logvar_f, h_f, (_, c_f) = conv_draw_encoder_cell_flat(params, x_f, state_f)
    hidden = to_nchw(h_f)
    cell = to_nchw(c_f)
    return to_nchw(mean_f), to_nchw(logvar_f), hidden, (hidden, cell)


# ----------------------------------------------------------------------------
# Pure-JAX reference (NHWC) for the correctness check
# ----------------------------------------------------------------------------
def _reference(x, ph, pc, w_gates_hwio, b_gates, w_rp_hwio, b_rp, Hd, nz, pad):
    hi = jax.lax.Precision.HIGHEST
    stacked = jnp.concatenate([x, ph], axis=-1)
    gates = jax.lax.conv_general_dilated(
        stacked, w_gates_hwio, (1, 1), ((pad, pad), (pad, pad)),
        dimension_numbers=("NHWC", "HWIO", "NHWC"), precision=hi)
    gates = gates + b_gates.reshape(1, 1, 1, -1)
    i = jax.nn.sigmoid(gates[..., 0 * Hd:1 * Hd])
    f = jax.nn.sigmoid(gates[..., 1 * Hd:2 * Hd])
    o = jax.nn.sigmoid(gates[..., 2 * Hd:3 * Hd])
    g = jnp.tanh(gates[..., 3 * Hd:4 * Hd])
    cell = f * pc + i * g
    hidden = o * jnp.tanh(cell)
    rp = jax.lax.conv_general_dilated(
        hidden, w_rp_hwio, (1, 1), ((pad, pad), (pad, pad)),
        dimension_numbers=("NHWC", "HWIO", "NHWC"), precision=hi)
    rp = rp + b_rp.reshape(1, 1, 1, -1)
    return rp[..., :nz], rp[..., nz:], hidden, cell


if __name__ == "__main__":
    B, Cin, H, W = 2, 4, 16, 16
    Hd, nz, K, pad = 8, 4, 5, 2

    key = jax.random.PRNGKey(0)
    k = jax.random.split(key, 8)

    # Deterministic synthetic parameters (PyTorch Conv2d-style uniform init), HWIO.
    bound_g = 1.0 / np.sqrt((Cin + Hd) * K * K)
    w_gates_hwio = jax.random.uniform(k[0], (K, K, Cin + Hd, 4 * Hd),
                                      jnp.float32, -bound_g, bound_g)
    b_gates = jax.random.uniform(k[1], (4 * Hd,), jnp.float32, -bound_g, bound_g)

    bound_r = 1.0 / np.sqrt(Hd * K * K)
    w_rp_hwio = jax.random.uniform(k[2], (K, K, Hd, 2 * nz),
                                   jnp.float32, -bound_r, bound_r)
    b_rp = jax.random.uniform(k[3], (2 * nz,), jnp.float32, -bound_r, bound_r)

    # Inputs (NCHW, like PyTorch)
    x_nchw = jax.random.normal(k[4], (B, Cin, H, W), jnp.float32)
    prev_h_nchw = jax.random.normal(k[5], (B, Hd, H, W), jnp.float32) * 0.5
    prev_c_nchw = jax.random.normal(k[6], (B, Hd, H, W), jnp.float32) * 0.5

    # Reference (computed in NHWC, compared in NCHW).
    to_nhwc = lambda t: jnp.transpose(t, (0, 2, 3, 1))
    to_nchw = lambda t: jnp.transpose(t, (0, 3, 1, 2))
    r_mean, r_logvar, r_hidden, r_cell = _reference(
        to_nhwc(x_nchw), to_nhwc(prev_h_nchw), to_nhwc(prev_c_nchw),
        w_gates_hwio, b_gates, w_rp_hwio, b_rp, Hd, nz, pad)

    # (batch_block, compute_dtype, tolerance): bb=1 -> v7x-style parallel batch grid;
    # bb=B -> v5e/v6e-style whole-batch fold; bf16 -> MXU bf16 with f32 accumulation.
    configs = [
        (1, jnp.float32, dict(rtol=1e-4, atol=1e-4)),
        (B, jnp.float32, dict(rtol=1e-4, atol=1e-4)),
        (B, jnp.bfloat16, dict(rtol=2e-2, atol=2e-2)),
    ]
    for bb, cdt, tol in configs:
        params = pack_params(
            w_gates_hwio, b_gates, w_rp_hwio, b_rp,
            input_size=Cin, hidden_size=Hd, nz=nz, kernel_size=K, padding=pad,
            height=H, width=W, compute_dtype=cdt, batch_block=bb)

        mean, logvar, hidden, (new_h, new_c) = conv_draw_encoder_cell(
            params, x_nchw, (prev_h_nchw, prev_c_nchw))
        jax.block_until_ready((mean, logvar, hidden, new_h, new_c))

        np.testing.assert_allclose(np.asarray(hidden), np.asarray(to_nchw(r_hidden)), **tol)
        np.testing.assert_allclose(np.asarray(new_c), np.asarray(to_nchw(r_cell)), **tol)
        np.testing.assert_allclose(np.asarray(mean), np.asarray(to_nchw(r_mean)), **tol)
        np.testing.assert_allclose(np.asarray(logvar), np.asarray(to_nchw(r_logvar)), **tol)

    print("KERNEL_OK")
</pallas_src>

<mosaic_0001>
module attributes {stable_mosaic.version = 11 : i64} {
  func.func @_fused_cell_kernel(%arg0: i32, %arg1: memref<1x16x64xf32, #tpu.memory_space<vmem>>, %arg2: memref<1x16x128xf32, #tpu.memory_space<vmem>>, %arg3: memref<1x16x128xf32, #tpu.memory_space<vmem>>, %arg4: memref<1200x512xf32, #tpu.memory_space<vmem>>, %arg5: memref<1x512xf32, #tpu.memory_space<vmem>>, %arg6: memref<800x128xf32, #tpu.memory_space<vmem>>, %arg7: memref<1x128xf32, #tpu.memory_space<vmem>>, %arg8: memref<1x16x128xf32, #tpu.memory_space<vmem>>, %arg9: memref<1x16x128xf32, #tpu.memory_space<vmem>>, %arg10: memref<1x16x128xf32, #tpu.memory_space<vmem>>, %arg11: memref<20x80xf32, #tpu.memory_space<vmem>>, %arg12: memref<20x160xf32, #tpu.memory_space<vmem>>, %arg13: memref<16x1200xf32, #tpu.memory_space<vmem>>, %arg14: memref<16x800xf32, #tpu.memory_space<vmem>>) attributes {dimension_semantics = [#tpu.dimension_semantics<parallel>], iteration_bounds = array<i64: 2>, scalar_prefetch = 0 : i64, scratch_operands = 4 : i64, tpu.core_type = #tpu.core_type<tc>, window_params = [{transform_indices = @transform_0, window_bounds = array<i64: 1, 16, 64>}, {transform_indices = @transform_1, window_bounds = array<i64: 1, 16, 128>}, {transform_indices = @transform_2, window_bounds = array<i64: 1, 16, 128>}, {pipeline_mode = #tpu.pipeline_mode<synchronous>, transform_indices = @transform_3, window_bounds = array<i64: 1200, 512>}, {pipeline_mode = #tpu.pipeline_mode<synchronous>, transform_indices = @transform_4, window_bounds = array<i64: 1, 512>}, {pipeline_mode = #tpu.pipeline_mode<synchronous>, transform_indices = @transform_5, window_bounds = array<i64: 800, 128>}, {pipeline_mode = #tpu.pipeline_mode<synchronous>, transform_indices = @transform_6, window_bounds = array<i64: 1, 128>}, {transform_indices = @transform_7, window_bounds = array<i64: 1, 16, 128>}, {transform_indices = @transform_8, window_bounds = array<i64: 1, 16, 128>}, {transform_indices = @transform_9, window_bounds = array<i64: 1, 16, 128>}]} {
    %cst = arith.constant 0.000000e+00 : f32
    %0 = vector.broadcast %cst : f32 to vector<20x80xf32>
    %c0 = arith.constant 0 : index
    %c0_0 = arith.constant 0 : index
    %1 = vector.load %arg11[%c0, %c0_0] : memref<20x80xf32, #tpu.memory_space<vmem>>, vector<20x80xf32>
    tpu.vector_store %arg11[%c0, %c0_0], %0 {strides = array<i32>} : memref<20x80xf32, #tpu.memory_space<vmem>>, vector<20x80xf32>,
    %cst_1 = arith.constant 0.000000e+00 : f32
    %2 = vector.broadcast %cst_1 : f32 to vector<20x160xf32>
    %c0_2 = arith.constant 0 : index
    %c0_3 = arith.constant 0 : index
    %3 = vector.load %arg12[%c0_2, %c0_3] : memref<20x160xf32, #tpu.memory_space<vmem>>, vector<20x160xf32>
    tpu.vector_store %arg12[%c0_2, %c0_3], %2 {strides = array<i32>} : memref<20x160xf32, #tpu.memory_space<vmem>>, vector<20x160xf32>,
    %c0_4 = arith.constant 0 : index
    %c0_5 = arith.constant 0 : index
    %c0_6 = arith.constant 0 : index
    %4 = vector.load %arg1[%c0_4, %c0_5, %c0_6] : memref<1x16x64xf32, #tpu.memory_space<vmem>>, vector<1x16x64xf32>
    %5 = vector.shape_cast %4 : vector<1x16x64xf32> to vector<16x64xf32>
    %c2 = arith.constant 2 : index
    %c8 = arith.constant 8 : index
    %6 = vector.load %arg11[%c2, %c8] : memref<20x80xf32, #tpu.memory_space<vmem>>, vector<16x64xf32>
    tpu.vector_store %arg11[%c2, %c8], %5 {strides = array<i32>} : memref<20x80xf32, #tpu.memory_space<vmem>>, vector<16x64xf32>,
    %c0_7 = arith.constant 0 : index
    %c0_8 = arith.constant 0 : index
    %c0_9 = arith.constant 0 : index
    %7 = vector.load %arg2[%c0_7, %c0_8, %c0_9] : memref<1x16x128xf32, #tpu.memory_space<vmem>>, vector<1x16x128xf32>
    %8 = vector.shape_cast %7 : vector<1x16x128xf32> to vector<16x128xf32>
    %c2_10 = arith.constant 2 : index
    %c16 = arith.constant 16 : index
    %9 = vector.load %arg12[%c2_10, %c16] : memref<20x160xf32, #tpu.memory_space<vmem>>, vector<16x128xf32>
    tpu.vector_store %arg12[%c2_10, %c16], %8 {strides = array<i32>} : memref<20x160xf32, #tpu.memory_space<vmem>>, vector<16x128xf32>,
    %c0_11 = arith.constant 0 : index
    %c0_12 = arith.constant 0 : index
    %10 = vector.load %arg11[%c0_11, %c0_12] : memref<20x80xf32, #tpu.memory_space<vmem>>, vector<16x80xf32>
    %c0_13 = arith.constant 0 : index
    %c0_14 = arith.constant 0 : index
    %11 = vector.load %arg13[%c0_13, %c0_14] : memref<16x1200xf32, #tpu.memory_space<vmem>>, vector<16x80xf32>
    tpu.vector_store %arg13[%c0_13, %c0_14], %10 {strides = array<i32>} : memref<16x1200xf32, #tpu.memory_space<vmem>>, vector<16x80xf32>,
    %c0_15 = arith.constant 0 : index
    %c0_16 = arith.constant 0 : index
    %12 = vector.load %arg12[%c0_15, %c0_16] : memref<20x160xf32, #tpu.memory_space<vmem>>, vector<16x160xf32>
    %c0_17 = arith.constant 0 : index
    %c80 = arith.constant 80 : index
    %13 = vector.load %arg13[%c0_17, %c80] : memref<16x1200xf32, #tpu.memory_space<vmem>>, vector<16x160xf32>
    tpu.vector_store %arg13[%c0_17, %c80], %12 {strides = array<i32>} : memref<16x1200xf32, #tpu.memory_space<vmem>>, vector<16x160xf32>,
    %c1 = arith.constant 1 : index
    %c0_18 = arith.constant 0 : index
    %14 = vector.load %arg11[%c1, %c0_18] : memref<20x80xf32, #tpu.memory_space<vmem>>, vector<16x80xf32>
    %c0_19 = arith.constant 0 : index
    %c240 = arith.constant 240 : index
    %15 = vector.load %arg13[%c0_19, %c240] : memref<16x1200xf32, #tpu.memory_space<vmem>>, vector<16x80xf32>
    tpu.vector_store %arg13[%c0_19, %c240], %14 {strides = array<i32>} : memref<16x1200xf32, #tpu.memory_space<vmem>>, vector<16x80xf32>,
    %c1_20 = arith.constant 1 : index
    %c0_21 = arith.constant 0 : index
    %16 = vector.load %arg12[%c1_20, %c0_21] : memref<20x160xf32, #tpu.memory_space<vmem>>, vector<16x160xf32>
    %c0_22 = arith.constant 0 : index
    %c320 = arith.constant 320 : index
    %17 = vector.load %arg13[%c0_22, %c320] : memref<16x1200xf32, #tpu.memory_space<vmem>>, vector<16x160xf32>
    tpu.vector_store %arg13[%c0_22, %c320], %16 {strides = array<i32>} : memref<16x1200xf32, #tpu.memory_space<vmem>>, vector<16x160xf32>,
    %c2_23 = arith.constant 2 : index
    %c0_24 = arith.constant 0 : index
    %18 = vector.load %arg11[%c2_23, %c0_24] : memref<20x80xf32, #tpu.memory_space<vmem>>, vector<16x80xf32>
    %c0_25 = arith.constant 0 : index
    %c480 = arith.constant 480 : index
    %19 = vector.load %arg13[%c0_25, %c480] : memref<16x1200xf32, #tpu.memory_space<vmem>>, vector<16x80xf32>
    tpu.vector_store %arg13[%c0_25, %c480], %18 {strides = array<i32>} : memref<16x1200xf32, #tpu.memory_space<vmem>>, vector<16x80xf32>,
    %c2_26 = arith.constant 2 : index
    %c0_27 = arith.constant 0 : index
    %20 = vector.load %arg12[%c2_26, %c0_27] : memref<20x160xf32, #tpu.memory_space<vmem>>, vector<16x160xf32>
    %c0_28 = arith.constant 0 : index
    %c560 = arith.constant 560 : index
    %21 = vector.load %arg13[%c0_28, %c560] : memref<16x1200xf32, #tpu.memory_space<vmem>>, vector<16x160xf32>
    tpu.vector_store %arg13[%c0_28, %c560], %20 {strides = array<i32>} : memref<16x1200xf32, #tpu.memory_space<vmem>>, vector<16x160xf32>,
    %c3 = arith.constant 3 : index
    %c0_29 = arith.constant 0 : index
    %22 = vector.load %arg11[%c3, %c0_29] : memref<20x80xf32, #tpu.memory_space<vmem>>, vector<16x80xf32>
    %c0_30 = arith.constant 0 : index
    %c720 = arith.constant 720 : index
    %23 = vector.load %arg13[%c0_30, %c720] : memref<16x1200xf32, #tpu.memory_space<vmem>>, vector<16x80xf32>
    tpu.vector_store %arg13[%c0_30, %c720], %22 {strides = array<i32>} : memref<16x1200xf32, #tpu.memory_space<vmem>>, vector<16x80xf32>,
    %c3_31 = arith.constant 3 : index
    %c0_32 = arith.constant 0 : index
    %24 = vector.load %arg12[%c3_31, %c0_32] : memref<20x160xf32, #tpu.memory_space<vmem>>, vector<16x160xf32>
    %c0_33 = arith.constant 0 : index
    %c800 = arith.constant 800 : index
    %25 = vector.load %arg13[%c0_33, %c800] : memref<16x1200xf32, #tpu.memory_space<vmem>>, vector<16x160xf32>
    tpu.vector_store %arg13[%c0_33, %c800], %24 {strides = array<i32>} : memref<16x1200xf32, #tpu.memory_space<vmem>>, vector<16x160xf32>,
    %c4 = arith.constant 4 : index
    %c0_34 = arith.constant 0 : index
    %26 = vector.load %arg11[%c4, %c0_34] : memref<20x80xf32, #tpu.memory_space<vmem>>, vector<16x80xf32>
    %c0_35 = arith.constant 0 : index
    %c960 = arith.constant 960 : index
    %27 = vector.load %arg13[%c0_35, %c960] : memref<16x1200xf32, #tpu.memory_space<vmem>>, vector<16x80xf32>
    tpu.vector_store %arg13[%c0_35, %c960], %26 {strides = array<i32>} : memref<16x1200xf32, #tpu.memory_space<vmem>>, vector<16x80xf32>,
    %c4_36 = arith.constant 4 : index
    %c0_37 = arith.constant 0 : index
    %28 = vector.load %arg12[%c4_36, %c0_37] : memref<20x160xf32, #tpu.memory_space<vmem>>, vector<16x160xf32>
    %c0_38 = arith.constant 0 : index
    %c1040 = arith.constant 1040 : index
    %29 = vector.load %arg13[%c0_38, %c1040] : memref<16x1200xf32, #tpu.memory_space<vmem>>, vector<16x160xf32>
    tpu.vector_store %arg13[%c0_38, %c1040], %28 {strides = array<i32>} : memref<16x1200xf32, #tpu.memory_space<vmem>>, vector<16x160xf32>,
    %c0_39 = arith.constant 0 : index
    %c0_40 = arith.constant 0 : index
    %30 = vector.load %arg13[%c0_39, %c0_40] : memref<16x1200xf32, #tpu.memory_space<vmem>>, vector<16x1200xf32>
    %c0_41 = arith.constant 0 : index
    %c0_42 = arith.constant 0 : index
    %31 = vector.load %arg4[%c0_41, %c0_42] : memref<1200x512xf32, #tpu.memory_space<vmem>>, vector<1200x512xf32>
    %cst_43 = arith.constant dense<0.000000e+00> : vector<16x512xf32>
    %32 = tpu.matmul %30, %31, %cst_43 {dimension_numbers = #tpu.dot_dimension_numbers<[1], [0], [0], [1], [0, 0, 1, 1], [], []>} : vector<16x1200xf32>, vector<1200x512xf32>, vector<16x512xf32> -> vector<16x512xf32>
    %c0_44 = arith.constant 0 : index
    %c0_45 = arith.constant 0 : index
    %33 = vector.load %arg5[%c0_44, %c0_45] : memref<1x512xf32, #tpu.memory_space<vmem>>, vector<1x512xf32>
    %34 = vector.broadcast %33 : vector<1x512xf32> to vector<16x512xf32>
    %35 = arith.addf %32, %34 : vector<16x512xf32>
    %36 = vector.extract_strided_slice %35 {offsets = [0, 0], sizes = [16, 384], strides = [1, 1]} : vector<16x512xf32> to vector<16x384xf32>
    %37 = arith.negf %36 : vector<16x384xf32>
    %38 = math.exp %37 : vector<16x384xf32>
    %cst_46 = arith.constant 1.000000e+00 : f32
    %39 = vector.broadcast %cst_46 : f32 to vector<16x384xf32>
    %40 = arith.addf %39, %38 : vector<16x384xf32>
    %41 = arith.divf %39, %40 : vector<16x384xf32>
    %42 = vector.extract_strided_slice %41 {offsets = [0, 0], sizes = [16, 128], strides = [1, 1]} : vector<16x384xf32> to vector<16x128xf32>
    %43 = vector.extract_strided_slice %41 {offsets = [0, 128], sizes = [16, 128], strides = [1, 1]} : vector<16x384xf32> to vector<16x128xf32>
    %44 = vector.extract_strided_slice %41 {offsets = [0, 256], sizes = [16, 128], strides = [1, 1]} : vector<16x384xf32> to vector<16x128xf32>
    %45 = vector.extract_strided_slice %35 {offsets = [0, 384], sizes = [16, 128], strides = [1, 1]} : vector<16x512xf32> to vector<16x128xf32>
    %46 = math.tanh %45 : vector<16x128xf32>
    %c0_47 = arith.constant 0 : index
    %c0_48 = arith.constant 0 : index
    %c0_49 = arith.constant 0 : index
    %47 = vector.load %arg3[%c0_47, %c0_48, %c0_49] : memref<1x16x128xf32, #tpu.memory_space<vmem>>, vector<1x16x128xf32>
    %48 = vector.shape_cast %47 : vector<1x16x128xf32> to vector<16x128xf32>
    %49 = arith.mulf %43, %48 : vector<16x128xf32>
    %50 = arith.mulf %42, %46 : vector<16x128xf32>
    %51 = arith.addf %49, %50 : vector<16x128xf32>
    %52 = math.tanh %51 : vector<16x128xf32>
    %53 = arith.mulf %44, %52 : vector<16x128xf32>
    %c0_50 = arith.constant 0 : index
    %c0_51 = arith.constant 0 : index
    %c0_52 = arith.constant 0 : index
    %54 = vector.load %arg9[%c0_50, %c0_51, %c0_52] : memref<1x16x128xf32, #tpu.memory_space<vmem>>, vector<1x16x128xf32>
    %55 = vector.shape_cast %54 : vector<1x16x128xf32> to vector<16x128xf32>
    %56 = vector.shape_cast %51 : vector<16x128xf32> to vector<1x16x128xf32>
    tpu.vector_store %arg9[%c0_50, %c0_51, %c0_52], %56 {strides = array<i32>} : memref<1x16x128xf32, #tpu.memory_space<vmem>>, vector<1x16x128xf32>,
    %c0_53 = arith.constant 0 : index
    %c0_54 = arith.constant 0 : index
    %c0_55 = arith.constant 0 : index
    %57 = vector.load %arg8[%c0_53, %c0_54, %c0_55] : memref<1x16x128xf32, #tpu.memory_space<vmem>>, vector<1x16x128xf32>
    %58 = vector.shape_cast %57 : vector<1x16x128xf32> to vector<16x128xf32>
    %59 = vector.shape_cast %53 : vector<16x128xf32> to vector<1x16x128xf32>
    tpu.vector_store %arg8[%c0_53, %c0_54, %c0_55], %59 {strides = array<i32>} : memref<1x16x128xf32, #tpu.memory_space<vmem>>, vector<1x16x128xf32>,
    %c2_56 = arith.constant 2 : index
    %c16_57 = arith.constant 16 : index
    %60 = vector.load %arg12[%c2_56, %c16_57] : memref<20x160xf32, #tpu.memory_space<vmem>>, vector<16x128xf32>
    tpu.vector_store %arg12[%c2_56, %c16_57], %53 {strides = array<i32>} : memref<20x160xf32, #tpu.memory_space<vmem>>, vector<16x128xf32>,
    %c0_58 = arith.constant 0 : index
    %c0_59 = arith.constant 0 : index
    %61 = vector.load %arg12[%c0_58, %c0_59] : memref<20x160xf32, #tpu.memory_space<vmem>>, vector<16x160xf32>
    %c0_60 = arith.constant 0 : index
    %c0_61 = arith.constant 0 : index
    %62 = vector.load %arg14[%c0_60, %c0_61] : memref<16x800xf32, #tpu.memory_space<vmem>>, vector<16x160xf32>
    tpu.vector_store %arg14[%c0_60, %c0_61], %61 {strides = array<i32>} : memref<16x800xf32, #tpu.memory_space<vmem>>, vector<16x160xf32>,
    %c1_62 = arith.constant 1 : index
    %c0_63 = arith.constant 0 : index
    %63 = vector.load %arg12[%c1_62, %c0_63] : memref<20x160xf32, #tpu.memory_space<vmem>>, vector<16x160xf32>
    %c0_64 = arith.constant 0 : index
    %c160 = arith.constant 160 : index
    %64 = vector.load %arg14[%c0_64, %c160] : memref<16x800xf32, #tpu.memory_space<vmem>>, vector<16x160xf32>
    tpu.vector_store %arg14[%c0_64, %c160], %63 {strides = array<i32>} : memref<16x800xf32, #tpu.memory_space<vmem>>, vector<16x160xf32>,
    %c2_65 = arith.constant 2 : index
    %c0_66 = arith.constant 0 : index
    %65 = vector.load %arg12[%c2_65, %c0_66] : memref<20x160xf32, #tpu.memory_space<vmem>>, vector<16x160xf32>
    %c0_67 = arith.constant 0 : index
    %c320_68 = arith.constant 320 : index
    %66 = vector.load %arg14[%c0_67, %c320_68] : memref<16x800xf32, #tpu.memory_space<vmem>>, vector<16x160xf32>
    tpu.vector_store %arg14[%c0_67, %c320_68], %65 {strides = array<i32>} : memref<16x800xf32, #tpu.memory_space<vmem>>, vector<16x160xf32>,
    %c3_69 = arith.constant 3 : index
    %c0_70 = arith.constant 0 : index
    %67 = vector.load %arg12[%c3_69, %c0_70] : memref<20x160xf32, #tpu.memory_space<vmem>>, vector<16x160xf32>
    %c0_71 = arith.constant 0 : index
    %c480_72 = arith.constant 480 : index
    %68 = vector.load %arg14[%c0_71, %c480_72] : memref<16x800xf32, #tpu.memory_space<vmem>>, vector<16x160xf32>
    tpu.vector_store %arg14[%c0_71, %c480_72], %67 {strides = array<i32>} : memref<16x800xf32, #tpu.memory_space<vmem>>, vector<16x160xf32>,
    %c4_73 = arith.constant 4 : index
    %c0_74 = arith.constant 0 : index
    %69 = vector.load %arg12[%c4_73, %c0_74] : memref<20x160xf32, #tpu.memory_space<vmem>>, vector<16x160xf32>
    %c0_75 = arith.constant 0 : index
    %c640 = arith.constant 640 : index
    %70 = vector.load %arg14[%c0_75, %c640] : memref<16x800xf32, #tpu.memory_space<vmem>>, vector<16x160xf32>
    tpu.vector_store %arg14[%c0_75, %c640], %69 {strides = array<i32>} : memref<16x800xf32, #tpu.memory_space<vmem>>, vector<16x160xf32>,
    %c0_76 = arith.constant 0 : index
    %c0_77 = arith.constant 0 : index
    %71 = vector.load %arg14[%c0_76, %c0_77] : memref<16x800xf32, #tpu.memory_space<vmem>>, vector<16x800xf32>
    %c0_78 = arith.constant 0 : index
    %c0_79 = arith.constant 0 : index
    %72 = vector.load %arg6[%c0_78, %c0_79] : memref<800x128xf32, #tpu.memory_space<vmem>>, vector<800x128xf32>
    %cst_80 = arith.constant dense<0.000000e+00> : vector<16x128xf32>
    %73 = tpu.matmul %71, %72, %cst_80 {dimension_numbers = #tpu.dot_dimension_numbers<[1], [0], [0], [1], [0, 0, 1, 1], [], []>} : vector<16x800xf32>, vector<800x128xf32>, vector<16x128xf32> -> vector<16x128xf32>
    %c0_81 = arith.constant 0 : index
    %c0_82 = arith.constant 0 : index
    %74 = vector.load %arg7[%c0_81, %c0_82] : memref<1x128xf32, #tpu.memory_space<vmem>>, vector<1x128xf32>
    %75 = vector.broadcast %74 : vector<1x128xf32> to vector<16x128xf32>
    %76 = arith.addf %73, %75 : vector<16x128xf32>
    %c0_83 = arith.constant 0 : index
    %c0_84 = arith.constant 0 : index
    %c0_85 = arith.constant 0 : index
    %77 = vector.load %arg10[%c0_83, %c0_84, %c0_85] : memref<1x16x128xf32, #tpu.memory_space<vmem>>, vector<1x16x128xf32>
    %78 = vector.shape_cast %77 : vector<1x16x128xf32> to vector<16x128xf32>
    %79 = vector.shape_cast %76 : vector<16x128xf32> to vector<1x16x128xf32>
    tpu.vector_store %arg10[%c0_83, %c0_84, %c0_85], %79 {strides = array<i32>} : memref<1x16x128xf32, #tpu.memory_space<vmem>>, vector<1x16x128xf32>,
    return
  }
  func.func @transform_0(%arg0: i32) -> (i32, i32, i32) {
    %c0_i32 = arith.constant 0 : i32
    %c0_i32_0 = arith.constant 0 : i32
    %c0_i32_1 = arith.constant 0 : i32
    return %arg0, %c0_i32, %c0_i32_0 : i32, i32, i32
  }
  func.func @transform_1(%arg0: i32) -> (i32, i32, i32) {
    %c0_i32 = arith.constant 0 : i32
    %c0_i32_0 = arith.constant 0 : i32
    %c0_i32_1 = arith.constant 0 : i32
    return %arg0, %c0_i32, %c0_i32_0 : i32, i32, i32
  }
  func.func @transform_2(%arg0: i32) -> (i32, i32, i32) {
    %c0_i32 = arith.constant 0 : i32
    %c0_i32_0 = arith.constant 0 : i32
    %c0_i32_1 = arith.constant 0 : i32
    return %arg0, %c0_i32, %c0_i32_0 : i32, i32, i32
  }
  func.func @transform_3(%arg0: i32) -> (i32, i32) {
    %c0_i32 = arith.constant 0 : i32
    %c0_i32_0 = arith.constant 0 : i32
    %c0_i32_1 = arith.constant 0 : i32
    return %c0_i32, %c0_i32_0 : i32, i32
  }
  func.func @transform_4(%arg0: i32) -> (i32, i32) {
    %c0_i32 = arith.constant 0 : i32
    %c0_i32_0 = arith.constant 0 : i32
    %c0_i32_1 = arith.constant 0 : i32
    return %c0_i32, %c0_i32_0 : i32, i32
  }
  func.func @transform_5(%arg0: i32) -> (i32, i32) {
    %c0_i32 = arith.constant 0 : i32
    %c0_i32_0 = arith.constant 0 : i32
    %c0_i32_1 = arith.constant 0 : i32
    return %c0_i32, %c0_i32_0 : i32, i32
  }
  func.func @transform_6(%arg0: i32) -> (i32, i32) {
    %c0_i32 = arith.constant 0 : i32
    %c0_i32_0 = arith.constant 0 : i32
    %c0_i32_1 = arith.constant 0 : i32
    return %c0_i32, %c0_i32_0 : i32, i32
  }
  func.func @transform_7(%arg0: i32) -> (i32, i32, i32) {
    %c0_i32 = arith.constant 0 : i32
    %c0_i32_0 = arith.constant 0 : i32
    %c0_i32_1 = arith.constant 0 : i32
    return %arg0, %c0_i32, %c0_i32_0 : i32, i32, i32
  }
  func.func @transform_8(%arg0: i32) -> (i32, i32, i32) {
    %c0_i32 = arith.constant 0 : i32
    %c0_i32_0 = arith.constant 0 : i32
    %c0_i32_1 = arith.constant 0 : i32
    return %arg0, %c0_i32, %c0_i32_0 : i32, i32, i32
  }
  func.func @transform_9(%arg0: i32) -> (i32, i32, i32) {
    %c0_i32 = arith.constant 0 : i32
    %c0_i32_0 = arith.constant 0 : i32
    %c0_i32_1 = arith.constant 0 : i32
    return %arg0, %c0_i32, %c0_i32_0 : i32, i32, i32
  }
}

</mosaic_0001>

<llo_original>
// kernel: tpu_custom_call.1
$region0: #{tpu_custom_call.1}
  #allocation0 [shape = 'u32[]', space=smem, size = 0x4, offset = 0x4, fixed_abs, tag = 'smem constant byte address 0x4 - core index']
  #allocation1 [shape = 'u32[144,128]{1,0:T(1,128)}', space=vmem, size = 0x12000, scoped, tag = 'internal scratch']
  #allocation2 [shape = 'f32[20,80]{1,0:T(8,128)}', space=vmem, size = 0x3000, scoped, tag = 'scratch operand']
  #allocation3 [shape = 'f32[20,160]{1,0:T(8,128)}', space=vmem, size = 0x6000, scoped, tag = 'scratch operand']
  #allocation4 [shape = 'f32[16,1200]{1,0:T(8,128)}', space=vmem, size = 0x14000, scoped, tag = 'scratch operand']
  #allocation5 [shape = 'f32[16,800]{1,0:T(8,128)}', space=vmem, size = 0xe000, scoped, tag = 'scratch operand']
  %s0 = inlined_call_operand.hbm [shape: f32[2,16,64], index: 0, kind: input, shape index: {}]
  %s1 = inlined_call_operand.hbm [shape: f32[2,16,128], index: 1, kind: input, shape index: {}]
  %s2 = inlined_call_operand.hbm [shape: f32[2,16,128], index: 2, kind: input, shape index: {}]
  %s3 = inlined_call_operand.hbm [shape: f32[1200,512], index: 3, kind: input, shape index: {}]
  %s4 = inlined_call_operand.hbm [shape: f32[1,512], index: 4, kind: input, shape index: {}]
  %s5 = inlined_call_operand.hbm [shape: f32[800,128], index: 5, kind: input, shape index: {}]
  %s6 = inlined_call_operand.hbm [shape: f32[1,128], index: 6, kind: input, shape index: {}]
  %s7 = inlined_call_operand.hbm [shape: f32[2,16,128], index: 7, kind: output, shape index: {0}]
  %s8 = inlined_call_operand.hbm [shape: f32[2,16,128], index: 8, kind: output, shape index: {1}]
  %s9 = inlined_call_operand.hbm [shape: f32[2,16,128], index: 9, kind: output, shape index: {2}]
  %10 = xla_tuple %s7, %s8, %s9
  %s11 = sld [smem:[#allocation0]]
  $region105: #{tpu_custom_call.1} parent=0
    _
  %s13 = ssub.s32 1, %s11
  %s14 = scalar_select 0, %s13, %s11
  $region1: #{tpu_custom_call.1} parent=0
    #allocation6 [shape = 'u8[16384]{0}', space=vmem, size = 0x4000, scoped, tag = 'input window, operand 0']
    #allocation7 [shape = 's32[2]{0}', space=sflag, size = 0x8, scoped, tag = 'scoped memory for tpu_custom_call.1']
    #allocation8 [shape = 's32[2]{0}', space=sflag, size = 0x8, scoped, tag = 'scoped memory for tpu_custom_call.1']
    #allocation9 [shape = 'u8[16384]{0}', space=vmem, size = 0x4000, scoped, tag = 'input window, operand 1']
    #allocation10 [shape = 's32[2]{0}', space=sflag, size = 0x8, scoped, tag = 'scoped memory for tpu_custom_call.1']
    #allocation11 [shape = 'u8[16384]{0}', space=vmem, size = 0x4000, scoped, tag = 'input window, operand 2']
    #allocation12 [shape = 'u8[2457600]{0}', space=vmem, size = 0x258000, scoped, tag = 'input window, operand 3, single buffered']
    #allocation13 [shape = 's32[1]{0}', space=sflag, size = 0x4, scoped, tag = 'scoped memory for tpu_custom_call.1']
    #allocation14 [shape = 'u8[2048]{0}', space=vmem, size = 0x800, scoped, tag = 'input window, operand 4, single buffered']
    #allocation15 [shape = 'u8[409600]{0}', space=vmem, size = 0x64000, scoped, tag = 'input window, operand 5, single buffered']
    #allocation16 [shape = 's32[1]{0}', space=sflag, size = 0x4, scoped, tag = 'scoped memory for tpu_custom_call.1']
    #allocation17 [shape = 'u8[512]{0}', space=vmem, size = 0x400, scoped, tag = 'input window, operand 6, single buffered']
    #allocation18 [shape = 'u8[16384]{0}', space=vmem, size = 0x4000, scoped, tag = 'output window, operand 0']
    #allocation19 [shape = 'u8[16384]{0}', space=vmem, size = 0x4000, scoped, tag = 'output window, operand 1']
    #allocation20 [shape = 's32[2]{0}', space=sflag, size = 0x8, scoped, tag = 'scoped memory for tpu_custom_call.1']
    #allocation21 [shape = 'u8[16384]{0}', space=vmem, size = 0x4000, scoped, tag = 'output window, operand 2']
    %15 = vsyncpa [#allocation7], 0
    %s16 = scalar_lea.sflag [#allocation7], 1
    %17 = vsyncpa %s16, 0
    %18 = vsyncpa [#allocation10], 0
    %s19 = scalar_lea.sflag [#allocation10], 1
    %20 = vsyncpa %s19, 0
    %21 = vsyncpa [#allocation13], 0
    %22 = vsyncpa [#allocation16], 0
    %23 = vsyncpa [#allocation8], 0
    %s24 = scalar_lea.sflag [#allocation8], 1
    %25 = vsyncpa %s24, 0
    %26 = vsyncpa [#allocation20], 0
    %s27 = scalar_lea.sflag [#allocation20], 1
    %28 = vsyncpa %s27, 0
    loop: start=0, step=1, limit=4
    $region2: #{tpu_custom_call.1} parent=1 // loop_pre_header
      _
    $region3: #{tpu_custom_call.1} parent=1 // loop_header
      %s30 = sphi 0, %s34
      %p31 = scmp.ge.s32.totalorder %s30, 4
      %s40 = sphi 0, %s42
      %s43 = sphi 0, %s40
      %s44 = sphi 0, %s43
      %s60 = sphi 0, %s44
      %s66 = sphi 0, %s68
      %s69 = sphi 0, %s66
      %s70 = sphi 0, %s69
      %s86 = sphi 0, %s70
      %s92 = sphi 0, %s94
      %s95 = sphi 0, %s92
      %s96 = sphi 0, %s95
      %s112 = sphi 0, %s96
      %s116 = sphi 0, %s116
      %s118 = sphi 0, %s116
      %s119 = sphi 0, %s118
      %s133 = sphi 0, %s119
      %s137 = sphi 0, %s137
      %s139 = sphi 0, %s137
      %s140 = sphi 0, %s139
      %s154 = sphi 0, %s140
      %s158 = sphi 0, %s158
      %s160 = sphi 0, %s158
      %s161 = sphi 0, %s160
      %s175 = sphi 0, %s161
      %s179 = sphi 0, %s179
      %s181 = sphi 0, %s179
      %s182 = sphi 0, %s181
      %s196 = sphi 0, %s182
      %s202 = sphi 0, %s204
      %s205 = sphi 0, %s202
      %s206 = sphi 0, %s205
      %s222 = sphi 0, %s206
      %s228 = sphi 0, %s230
      %s231 = sphi 0, %s228
      %s232 = sphi 0, %s231
      %s248 = sphi 0, %s232
      %s254 = sphi 0, %s256
      %s257 = sphi 0, %s254
      %s258 = sphi 0, %s257
      %s274 = sphi 0, %s258
    $region4: #{tpu_custom_call.1} parent=1 // loop_header_branch
      %33 = sbr.rel (%p31) target = $region8
    $region5: #{tpu_custom_call.1} parent=1 // loop_body
      %s35 = ssub.s32 %s30, 1
      %s36 = ssub.s32 %s30, 2
      %s37 = sadd.s32 %s30, 1
      %s38 = ssub.s32 %s30, %s37
      %p39 = scmp.eq.s32.totalorder %s38, 0
      %s41 = sadd.s32 %s40, 1
      %s42 = scalar_select %p39, %s40, %s41
      %p45 = pneg %p39
      %p46 = scmp.eq.s32.totalorder %s30, 1
      %p47 = por %p45, %p46
      %p48 = scmp.ne.s32.totalorder %s40, %s43
      %p49 = scmp.eq.s32.totalorder %s30, 0
      %p50 = por %p48, %p49
      %p51 = scmp.ne.s32.totalorder %s40, %s43
      %p52 = scmp.eq.s32.totalorder %s35, 1
      %p53 = por %p51, %p52
      %p54 = scmp.ne.s32.totalorder %s43, %s44
      %p55 = scmp.eq.s32.totalorder %s35, 0
      %p56 = por %p54, %p55
      %p57 = scmp.ne.s32.totalorder %s43, %s44
      %p58 = scmp.eq.s32.totalorder %s36, 1
      %p59 = por %p57, %p58
      %p61 = scmp.ne.s32.totalorder %s44, %s60
      %p62 = scmp.eq.s32.totalorder %s36, 0
      %p63 = por %p61, %p62
      %s64 = ssub.s32 %s30, %s37
      %p65 = scmp.eq.s32.totalorder %s64, 0
      %s67 = sadd.s32 %s66, 1
      %s68 = scalar_select %p65, %s66, %s67
      %p71 = pneg %p65
      %p72 = scmp.eq.s32.totalorder %s30, 1
      %p73 = por %p71, %p72
      %p74 = scmp.ne.s32.totalorder %s66, %s69
      %p75 = scmp.eq.s32.totalorder %s30, 0
      %p76 = por %p74, %p75
      %p77 = scmp.ne.s32.totalorder %s66, %s69
      %p78 = scmp.eq.s32.totalorder %s35, 1
      %p79 = por %p77, %p78
      %p80 = scmp.ne.s32.totalorder %s69, %s70
      %p81 = scmp.eq.s32.totalorder %s35, 0
      %p82 = por %p80, %p81
      %p83 = scmp.ne.s32.totalorder %s69, %s70
      %p84 = scmp.eq.s32.totalorder %s36, 1
      %p85 = por %p83, %p84
      %p87 = scmp.ne.s32.totalorder %s70, %s86
      %p88 = scmp.eq.s32.totalorder %s36, 0
      %p89 = por %p87, %p88
      %s90 = ssub.s32 %s30, %s37
      %p91 = scmp.eq.s32.totalorder %s90, 0
      %s93 = sadd.s32 %s92, 1
      %s94 = scalar_select %p91, %s92, %s93
      %p97 = pneg %p91
      %p98 = scmp.eq.s32.totalorder %s30, 1
      %p99 = por %p97, %p98
      %p100 = scmp.ne.s32.totalorder %s92, %s95
      %p101 = scmp.eq.s32.totalorder %s30, 0
      %p102 = por %p100, %p101
      %p103 = scmp.ne.s32.totalorder %s92, %s95
      %p104 = scmp.eq.s32.totalorder %s35, 1
      %p105 = por %p103, %p104
      %p106 = scmp.ne.s32.totalorder %s95, %s96
      %p107 = scmp.eq.s32.totalorder %s35, 0
      %p108 = por %p106, %p107
      %p109 = scmp.ne.s32.totalorder %s95, %s96
      %p110 = scmp.eq.s32.totalorder %s36, 1
      %p111 = por %p109, %p110
      %p113 = scmp.ne.s32.totalorder %s96, %s112
      %p114 = scmp.eq.s32.totalorder %s36, 0
      %p115 = por %p113, %p114
      %s117 = sadd.s32 %s116, 1
      %p120 = scmp.eq.s32.totalorder %s30, 1
      %p121 = scmp.ne.s32.totalorder %s116, %s118
      %p122 = scmp.eq.s32.totalorder %s30, 0
      %p123 = por %p121, %p122
      %p124 = scmp.ne.s32.totalorder %s116, %s118
      %p125 = scmp.eq.s32.totalorder %s35, 1
      %p126 = por %p124, %p125
      %p127 = scmp.ne.s32.totalorder %s118, %s119
      %p128 = scmp.eq.s32.totalorder %s35, 0
      %p129 = por %p127, %p128
      %p130 = scmp.ne.s32.totalorder %s118, %s119
      %p131 = scmp.eq.s32.totalorder %s36, 1
      %p132 = por %p130, %p131
      %p134 = scmp.ne.s32.totalorder %s119, %s133
      %p135 = scmp.eq.s32.totalorder %s36, 0
      %p136 = por %p134, %p135
      %s138 = sadd.s32 %s137, 1
      %p141 = scmp.eq.s32.totalorder %s30, 1
      %p142 = scmp.ne.s32.totalorder %s137, %s139
      %p143 = scmp.eq.s32.totalorder %s30, 0
      %p144 = por %p142, %p143
      %p145 = scmp.ne.s32.totalorder %s137, %s139
      %p146 = scmp.eq.s32.totalorder %s35, 1
      %p147 = por %p145, %p146
      %p148 = scmp.ne.s32.totalorder %s139, %s140
      %p149 = scmp.eq.s32.totalorder %s35, 0
      %p150 = por %p148, %p149
      %p151 = scmp.ne.s32.totalorder %s139, %s140
      %p152 = scmp.eq.s32.totalorder %s36, 1
      %p153 = por %p151, %p152
      %p155 = scmp.ne.s32.totalorder %s140, %s154
      %p156 = scmp.eq.s32.totalorder %s36, 0
      %p157 = por %p155, %p156
      %s159 = sadd.s32 %s158, 1
      %p162 = scmp.eq.s32.totalorder %s30, 1
      %p163 = scmp.ne.s32.totalorder %s158, %s160
      %p164 = scmp.eq.s32.totalorder %s30, 0
      %p165 = por %p163, %p164
      %p166 = scmp.ne.s32.totalorder %s158, %s160
      %p167 = scmp.eq.s32.totalorder %s35, 1
      %p168 = por %p166, %p167
      %p169 = scmp.ne.s32.totalorder %s160, %s161
      %p170 = scmp.eq.s32.totalorder %s35, 0
      %p171 = por %p169, %p170
      %p172 = scmp.ne.s32.totalorder %s160, %s161
      %p173 = scmp.eq.s32.totalorder %s36, 1
      %p174 = por %p172, %p173
      %p176 = scmp.ne.s32.totalorder %s161, %s175
      %p177 = scmp.eq.s32.totalorder %s36, 0
      %p178 = por %p176, %p177
      %s180 = sadd.s32 %s179, 1
      %p183 = scmp.eq.s32.totalorder %s30, 1
      %p184 = scmp.ne.s32.totalorder %s179, %s181
      %p185 = scmp.eq.s32.totalorder %s30, 0
      %p186 = por %p184, %p185
      %p187 = scmp.ne.s32.totalorder %s179, %s181
      %p188 = scmp.eq.s32.totalorder %s35, 1
      %p189 = por %p187, %p188
      %p190 = scmp.ne.s32.totalorder %s181, %s182
      %p191 = scmp.eq.s32.totalorder %s35, 0
      %p192 = por %p190, %p191
      %p193 = scmp.ne.s32.totalorder %s181, %s182
      %p194 = scmp.eq.s32.totalorder %s36, 1
      %p195 = por %p193, %p194
      %p197 = scmp.ne.s32.totalorder %s182, %s196
      %p198 = scmp.eq.s32.totalorder %s36, 0
      %p199 = por %p197, %p198
      %s200 = ssub.s32 %s30, %s37
      %p201 = scmp.eq.s32.totalorder %s200, 0
      %s203 = sadd.s32 %s202, 1
      %s204 = scalar_select %p201, %s202, %s203
      %p207 = pneg %p201
      %p208 = scmp.eq.s32.totalorder %s30, 1
      %p209 = por %p207, %p208
      %p210 = scmp.ne.s32.totalorder %s202, %s205
      %p211 = scmp.eq.s32.totalorder %s30, 0
      %p212 = por %p210, %p211
      %p213 = scmp.ne.s32.totalorder %s202, %s205
      %p214 = scmp.eq.s32.totalorder %s35, 1
      %p215 = por %p213, %p214
      %p216 = scmp.ne.s32.totalorder %s205, %s206
      %p217 = scmp.eq.s32.totalorder %s35, 0
      %p218 = por %p216, %p217
      %p219 = scmp.ne.s32.totalorder %s205, %s206
      %p220 = scmp.eq.s32.totalorder %s36, 1
      %p221 = por %p219, %p220
      %p223 = scmp.ne.s32.totalorder %s206, %s222
      %p224 = scmp.eq.s32.totalorder %s36, 0
      %p225 = por %p223, %p224
      %s226 = ssub.s32 %s30, %s37
      %p227 = scmp.eq.s32.totalorder %s226, 0
      %s229 = sadd.s32 %s228, 1
      %s230 = scalar_select %p227, %s228, %s229
      %p233 = pneg %p227
      %p234 = scmp.eq.s32.totalorder %s30, 1
      %p235 = por %p233, %p234
      %p236 = scmp.ne.s32.totalorder %s228, %s231
      %p237 = scmp.eq.s32.totalorder %s30, 0
      %p238 = por %p236, %p237
      %p239 = scmp.ne.s32.totalorder %s228, %s231
      %p240 = scmp.eq.s32.totalorder %s35, 1
      %p241 = por %p239, %p240
      %p242 = scmp.ne.s32.totalorder %s231, %s232
      %p243 = scmp.eq.s32.totalorder %s35, 0
      %p244 = por %p242, %p243
      %p245 = scmp.ne.s32.totalorder %s231, %s232
      %p246 = scmp.eq.s32.totalorder %s36, 1
      %p247 = por %p245, %p246
      %p249 = scmp.ne.s32.totalorder %s232, %s248
      %p250 = scmp.eq.s32.totalorder %s36, 0
      %p251 = por %p249, %p250
      %s252 = ssub.s32 %s30, %s37
      %p253 = scmp.eq.s32.totalorder %s252, 0
      %s255 = sadd.s32 %s254, 1
      %s256 = scalar_select %p253, %s254, %s255
      %p259 = pneg %p253
      %p260 = scmp.eq.s32.totalorder %s30, 1
      %p261 = por %p259, %p260
      %p262 = scmp.ne.s32.totalorder %s254, %s257
      %p263 = scmp.eq.s32.totalorder %s30, 0
      %p264 = por %p262, %p263
      %p265 = scmp.ne.s32.totalorder %s254, %s257
      %p266 = scmp.eq.s32.totalorder %s35, 1
      %p267 = por %p265, %p266
      %p268 = scmp.ne.s32.totalorder %s257, %s258
      %p269 = scmp.eq.s32.totalorder %s35, 0
      %p270 = por %p268, %p269
      %p271 = scmp.ne.s32.totalorder %s257, %s258
      %p272 = scmp.eq.s32.totalorder %s36, 1
      %p273 = por %p271, %p272
      %p275 = scmp.ne.s32.totalorder %s258, %s274
      %p276 = scmp.eq.s32.totalorder %s36, 0
      %p277 = por %p275, %p276
      %p278 = scmp.le.s32.totalorder 1, %s30
      %p279 = scmp.lt.s32.totalorder %s30, 3
      %p280 = pnand %p278, %p279
      %p281 = pneg %p280
      // Predicated region
      $region9: #{tpu_custom_call.1} parent=5 // pred_check
        _
      $region10: #{tpu_custom_call.1} parent=5 // pred_check_branch
        %283 = sbr.rel (%p280) target = $region12
      $region11: #{tpu_custom_call.1} parent=5 // pred_region
        %s284 = ssub.s32 %s30, 1
        // Predicated region
        $region13: #{tpu_custom_call.1} parent=11 // pred_check
          %p285 = pneg %p129
        $region14: #{tpu_custom_call.1} parent=11 // pred_check_branch
          %287 = sbr.rel (%p285) target = $region16
        $region15: #{tpu_custom_call.1} parent=11 // pred_region
          %s289 = ssub.s32 76800, 76800
          %290 = vsyncadd [#allocation13], %s289
          %s291 = sshll.u32 [#allocation12], 4
          %s292 = int_to_ptr.vmem [resolvable:$true] %s291
          %297 = dma.hbm_to_vmem [thread:$0]  %s3, 76800, %s292, [#allocation13], 512, 512, 32
        $region16: #{tpu_custom_call.1} parent=11 // pred_fallthru
          _
        // Predicated region
        $region17: #{tpu_custom_call.1} parent=11 // pred_check
          %p298 = pneg %p150
        $region18: #{tpu_custom_call.1} parent=11 // pred_check_branch
          %300 = sbr.rel (%p298) target = $region20
        $region19: #{tpu_custom_call.1} parent=11 // pred_region
          %s302 = ssub.s32 64, 64
          %303 = vsyncadd [#allocation13], %s302
          %s305 = sshll.u32 [#allocation14], 4
          %s306 = int_to_ptr.vmem [resolvable:$true] %s305
          %308 = dma.hbm_to_vmem [thread:$0]  %s4, 64, %s306, [#allocation13]
        $region20: #{tpu_custom_call.1} parent=11 // pred_fallthru
          _
        // Predicated region
        $region21: #{tpu_custom_call.1} parent=11 // pred_check
          %p309 = pneg %p171
        $region22: #{tpu_custom_call.1} parent=11 // pred_check_branch
          %311 = sbr.rel (%p309) target = $region24
        $region23: #{tpu_custom_call.1} parent=11 // pred_region
          %s313 = ssub.s32 12800, 12800
          %314 = vsyncadd [#allocation16], %s313
          %s315 = sshll.u32 [#allocation15], 4
          %s316 = int_to_ptr.vmem [resolvable:$true] %s315
          %321 = dma.hbm_to_vmem [thread:$0]  %s5, 12800, %s316, [#allocation16], 128, 128, 8
        $region24: #{tpu_custom_call.1} parent=11 // pred_fallthru
          _
        // Predicated region
        $region25: #{tpu_custom_call.1} parent=11 // pred_check
          %p322 = pneg %p192
        $region26: #{tpu_custom_call.1} parent=11 // pred_check_branch
          %324 = sbr.rel (%p322) target = $region28
        $region27: #{tpu_custom_call.1} parent=11 // pred_region
          %s326 = ssub.s32 16, 16
          %327 = vsyncadd [#allocation16], %s326
          %s329 = sshll.u32 [#allocation17], 4
          %s330 = int_to_ptr.vmem [resolvable:$true] %s329
          %332 = dma.hbm_to_vmem [thread:$0]  %s6, 16, %s330, [#allocation16]
        $region28: #{tpu_custom_call.1} parent=11 // pred_fallthru
          _
      $region12: #{tpu_custom_call.1} parent=5 // pred_fallthru
        _
      %p333 = scmp.lt.s32.totalorder %s30, 2
      // Predicated region
      $region29: #{tpu_custom_call.1} parent=5 // pred_check
        %p334 = pneg %p333
      $region30: #{tpu_custom_call.1} parent=5 // pred_check_branch
        %336 = sbr.rel (%p334) target = $region32
      $region31: #{tpu_custom_call.1} parent=5 // pred_region
        // Predicated region
        $region33: #{tpu_custom_call.1} parent=31 // pred_check
          %p337 = pneg %p50
        $region34: #{tpu_custom_call.1} parent=31 // pred_check_branch
          %339 = sbr.rel (%p337) target = $region36
        $region35: #{tpu_custom_call.1} parent=31 // pred_region
          %s340 = sand.u32 %s40, 1
          %s341 = scalar_lea.sflag [#allocation7], %s340
          %s342 = sand.u32 %s40, 1
          %s343 = smul.addr %s342, 16
          %s344 = scalar_lea.vmem [#allocation6], %s343
          %s346 = ssub.s32 256, 256
          %347 = vsyncadd %s341, %s346
          %s348 = smul.addr %s30, 2
          %s349 = smul.addr %s348, 128
          %s350 = scalar_lea.hbm %s0, %s349
          %s351 = sshll.u32 %s344, 4
          %s352 = int_to_ptr.vmem [resolvable:$true] %s351
          %357 = dma.hbm_to_vmem [thread:$0]  %s350, 256, %s352, %s341, 128, 128, 8
        $region36: #{tpu_custom_call.1} parent=31 // pred_fallthru
          _
        // Predicated region
        $region37: #{tpu_custom_call.1} parent=31 // pred_check
          %p358 = pneg %p76
        $region38: #{tpu_custom_call.1} parent=31 // pred_check_branch
          %360 = sbr.rel (%p358) target = $region40
        $region39: #{tpu_custom_call.1} parent=31 // pred_region
          %s361 = sand.u32 %s30, 1
          %s362 = scalar_lea.sflag [#allocation10], %s361
          %s363 = sand.u32 %s66, 1
          %s364 = smul.addr %s363, 16
          %s365 = scalar_lea.vmem [#allocation9], %s364
          %s367 = ssub.s32 256, 256
          %368 = vsyncadd %s362, %s367
          %s369 = smul.addr %s30, 2
          %s370 = smul.addr %s369, 128
          %s371 = scalar_lea.hbm %s1, %s370
          %s372 = sshll.u32 %s365, 4
          %s373 = int_to_ptr.vmem [resolvable:$true] %s372
          %378 = dma.hbm_to_vmem [thread:$0]  %s371, 256, %s373, %s362, 128, 128, 8
        $region40: #{tpu_custom_call.1} parent=31 // pred_fallthru
          _
        // Predicated region
        $region41: #{tpu_custom_call.1} parent=31 // pred_check
          %p379 = pneg %p102
        $region42: #{tpu_custom_call.1} parent=31 // pred_check_branch
          %381 = sbr.rel (%p379) target = $region44
        $region43: #{tpu_custom_call.1} parent=31 // pred_region
          %s382 = sand.u32 %s30, 1
          %s383 = scalar_lea.sflag [#allocation10], %s382
          %s384 = sand.u32 %s92, 1
          %s385 = smul.addr %s384, 16
          %s386 = scalar_lea.vmem [#allocation11], %s385
          %s388 = ssub.s32 256, 256
          %389 = vsyncadd %s383, %s388
          %s390 = smul.addr %s30, 2
          %s391 = smul.addr %s390, 128
          %s392 = scalar_lea.hbm %s2, %s391
          %s393 = sshll.u32 %s386, 4
          %s394 = int_to_ptr.vmem [resolvable:$true] %s393
          %399 = dma.hbm_to_vmem [thread:$0]  %s392, 256, %s394, %s383, 128, 128, 8
        $region44: #{tpu_custom_call.1} parent=31 // pred_fallthru
          _
      $region32: #{tpu_custom_call.1} parent=5 // pred_fallthru
        _
      %p400 = scmp.le.s32.totalorder 1, %s30
      %p401 = scmp.lt.s32.totalorder %s30, 3
      %p402 = pnand %p400, %p401
      %p403 = pneg %p402
      // Predicated region
      $region45: #{tpu_custom_call.1} parent=5 // pred_check
        _
      $region46: #{tpu_custom_call.1} parent=5 // pred_check_branch
        %405 = sbr.rel (%p402) target = $region48
      $region47: #{tpu_custom_call.1} parent=5 // pred_region
        %s406 = ssub.s32 %s30, 1
        %s407 = sand.u32 %s43, 1
        %s408 = scalar_lea.sflag [#allocation7], %s407
        %s409 = sand.u32 %s43, 1
        %s410 = smul.addr %s409, 16
        %s411 = scalar_lea.vmem [#allocation6], %s410
        // Predicated region
        $region49: #{tpu_custom_call.1} parent=47 // pred_check
          %p412 = pneg %p56
        $region50: #{tpu_custom_call.1} parent=47 // pred_check_branch
          %414 = sbr.rel (%p412) target = $region52
        $region51: #{tpu_custom_call.1} parent=47 // pred_region
          %415 = dma.done %s408, 256
        $region52: #{tpu_custom_call.1} parent=47 // pred_fallthru
          _
        %s416 = sand.u32 %s35, 1
        %s417 = scalar_lea.sflag [#allocation10], %s416
        %s418 = sand.u32 %s69, 1
        %s419 = smul.addr %s418, 16
        %s420 = scalar_lea.vmem [#allocation9], %s419
        // Predicated region
        $region53: #{tpu_custom_call.1} parent=47 // pred_check
          %p421 = pneg %p82
        $region54: #{tpu_custom_call.1} parent=47 // pred_check_branch
          %423 = sbr.rel (%p421) target = $region56
        $region55: #{tpu_custom_call.1} parent=47 // pred_region
          %424 = dma.done %s417, 256
        $region56: #{tpu_custom_call.1} parent=47 // pred_fallthru
          _
        %s425 = sand.u32 %s35, 1
        %s426 = scalar_lea.sflag [#allocation10], %s425
        %s427 = sand.u32 %s95, 1
        %s428 = smul.addr %s427, 16
        %s429 = scalar_lea.vmem [#allocation11], %s428
        // Predicated region
        $region57: #{tpu_custom_call.1} parent=47 // pred_check
          %p430 = pneg %p108
        $region58: #{tpu_custom_call.1} parent=47 // pred_check_branch
          %432 = sbr.rel (%p430) target = $region60
        $region59: #{tpu_custom_call.1} parent=47 // pred_region
          %433 = dma.done %s426, 256
        $region60: #{tpu_custom_call.1} parent=47 // pred_fallthru
          _
        // Predicated region
        $region61: #{tpu_custom_call.1} parent=47 // pred_check
          %p434 = pneg %p129
        $region62: #{tpu_custom_call.1} parent=47 // pred_check_branch
          %436 = sbr.rel (%p434) target = $region64
        $region63: #{tpu_custom_call.1} parent=47 // pred_region
          %437 = dma.done [#allocation13], 76800
        $region64: #{tpu_custom_call.1} parent=47 // pred_fallthru
          _
        // Predicated region
        $region65: #{tpu_custom_call.1} parent=47 // pred_check
          %p438 = pneg %p150
        $region66: #{tpu_custom_call.1} parent=47 // pred_check_branch
          %440 = sbr.rel (%p438) target = $region68
        $region67: #{tpu_custom_call.1} parent=47 // pred_region
          %441 = dma.done [#allocation13], 64
        $region68: #{tpu_custom_call.1} parent=47 // pred_fallthru
          _
        // Predicated region
        $region69: #{tpu_custom_call.1} parent=47 // pred_check
          %p442 = pneg %p171
        $region70: #{tpu_custom_call.1} parent=47 // pred_check_branch
          %444 = sbr.rel (%p442) target = $region72
        $region71: #{tpu_custom_call.1} parent=47 // pred_region
          %445 = dma.done [#allocation16], 12800
        $region72: #{tpu_custom_call.1} parent=47 // pred_fallthru
          _
        // Predicated region
        $region73: #{tpu_custom_call.1} parent=47 // pred_check
          %p446 = pneg %p192
        $region74: #{tpu_custom_call.1} parent=47 // pred_check_branch
          %448 = sbr.rel (%p446) target = $region76
        $region75: #{tpu_custom_call.1} parent=47 // pred_region
          %449 = dma.done [#allocation16], 16
        $region76: #{tpu_custom_call.1} parent=47 // pred_fallthru
          _
        %s450 = sand.u32 %s43, 1
        %s451 = scalar_lea.sflag [#allocation7], %s450
        %s452 = sand.u32 %s43, 1
        %s453 = smul.addr %s452, 16
        %s454 = scalar_lea.vmem [#allocation6], %s453
        %p455 = pneg %p56
        %p456 = pneg %p53
        %s457 = sand.u32 %s35, 1
        %s458 = scalar_lea.sflag [#allocation10], %s457
        %s459 = sand.u32 %s69, 1
        %s460 = smul.addr %s459, 16
        %s461 = scalar_lea.vmem [#allocation9], %s460
        %p462 = pneg %p82
        %p463 = pneg %p79
        %s464 = sand.u32 %s35, 1
        %s465 = scalar_lea.sflag [#allocation10], %s464
        %s466 = sand.u32 %s95, 1
        %s467 = smul.addr %s466, 16
        %s468 = scalar_lea.vmem [#allocation11], %s467
        %p469 = pneg %p108
        %p470 = pneg %p105
        %p471 = pneg %p129
        %p472 = pneg %p126
        %p473 = pneg %p150
        %p474 = pneg %p147
        %p475 = pneg %p171
        %p476 = pneg %p168
        %p477 = pneg %p192
        %p478 = pneg %p189
        %p479 = pneg %p218
        %p480 = pneg %p215
        %s481 = sand.u32 %s205, 1
        %s482 = scalar_lea.sflag [#allocation8], %s481
        %s483 = sand.u32 %s205, 1
        %s484 = smul.addr %s483, 16
        %s485 = scalar_lea.vmem [#allocation18], %s484
        %p486 = pneg %p244
        %p487 = pneg %p241
        %s488 = sand.u32 %s35, 1
        %s489 = scalar_lea.sflag [#allocation20], %s488
        %s490 = sand.u32 %s231, 1
        %s491 = smul.addr %s490, 16
        %s492 = scalar_lea.vmem [#allocation19], %s491
        %p493 = pneg %p270
        %p494 = pneg %p267
        %s495 = sand.u32 %s35, 1
        %s496 = scalar_lea.sflag [#allocation20], %s495
        %s497 = sand.u32 %s257, 1
        %s498 = smul.addr %s497, 16
        %s499 = scalar_lea.vmem [#allocation21], %s498
        %vm500 = vcmask 654336
        %501 = vst.msk [vmem:[#allocation2] sm:$0xff] %vm500, 0.0
        %502 = vst.msk [vmem:[#allocation2 + $0x8] sm:$0xff] %vm500, 0.0
        %vm503 = vcmask 650240
        %504 = vst.msk [vmem:[#allocation2 + $0x10] sm:$0xf] %vm503, 0.0
        %505 = vst [vmem:[#allocation3] sm:$0xff] 0.0
        %vm506 = vcmask 261120
        %507 = vst.msk [vmem:[#allocation3 + $0x8] sm:$0xff] %vm506, 0.0
        %508 = vst [vmem:[#allocation3 + $0x10] sm:$0xff] 0.0
        %509 = vst.msk [vmem:[#allocation3 + $0x18] sm:$0xff] %vm506, 0.0
        %510 = vst [vmem:[#allocation3 + $0x20] sm:$0xf] 0.0
        %vm511 = vcmask 257024
        %512 = vst.msk [vmem:[#allocation3 + $0x28] sm:$0xf] %vm511, 0.0
        %v513 = vld [vmem:[%s411] sm:$0xff]
        %v514 = vld [vmem:[%s411 + $0x8] sm:$0xff]
        %517 = vrot.lane.b32.xlu0 %v513, 8
        %v518 = vpop.permute.xlu0 %517
        %519 = vrot.lane.b32.xlu0 %v514, 8
        %v520 = vpop.permute.xlu0 %519
        %vm523 = vcmask 588864
        %524 = vst.msk [vmem:[#allocation2 + $0x2] sm:$0xff] %vm523, %v518
        %525 = vst.msk [vmem:[#allocation2 + $0xa] sm:$0xff] %vm523, %v520
        %v526 = vld [vmem:[%s420] sm:$0xff]
        %v527 = vld [vmem:[%s420 + $0x8] sm:$0xff]
        %vm530 = vcmask 1041408
        %v531 = vrot.slane %v526, 6
        %v532 = vrot.slane %v527, 6
        %v533 = vsel %vm530, %v531, %v532
        %534 = vrot.lane.b32.xlu0 %v531, 16
        %v535 = vpop.permute.xlu0 %534
        %536 = vrot.lane.b32.xlu0 %v533, 16
        %v537 = vpop.permute.xlu0 %536
        %538 = vrot.lane.b32.xlu0 %v532, 16
        %v539 = vpop.permute.xlu0 %538
        %vm543 = vcmask 1047682
        %544 = vst.msk [vmem:[#allocation3] sm:$0xfc] %vm543, %v535
        %vm545 = vcmask 130050
        %546 = vst.msk [vmem:[#allocation3 + $0x8] sm:$0xfc] %vm545, %v535
        %vm547 = vcmask 1047680
        %548 = vst.msk [vmem:[#allocation3 + $0x10] sm:$0xff] %vm547, %v537
        %vm549 = vcmask 130048
        %550 = vst.msk [vmem:[#allocation3 + $0x18] sm:$0xff] %vm549, %v537
        %vm551 = vcmask 1041536
        %552 = vst.msk [vmem:[#allocation3 + $0x20] sm:$0x3] %vm551, %v539
        %vm553 = vcmask 123904
        %554 = vst.msk [vmem:[#allocation3 + $0x28] sm:$0x3] %vm553, %v539
        %v555 = vld [vmem:[#allocation2] sm:$0xff]
        %v556 = vld [vmem:[#allocation2 + $0x8] sm:$0xff]
        %557 = vst.msk [vmem:[#allocation4] sm:$0xff] %vm500, %v555
        %558 = vst.msk [vmem:[#allocation4 + $0x50] sm:$0xff] %vm500, %v556
        %v559 = vld [vmem:[#allocation3] sm:$0xff]
        %v560 = vld [vmem:[#allocation3 + $0x8] sm:$0xff]
        %v561 = vld [vmem:[#allocation3 + $0x10] sm:$0xff]
        %v562 = vld [vmem:[#allocation3 + $0x18] sm:$0xff]
        %567 = vrot.lane.b32.xlu0 %v559, 80
        %v568 = vpop.permute.xlu0 %567
        %569 = vrot.lane.b32.xlu0 %v560, 80
        %v570 = vpop.permute.xlu0 %569
        %571 = vrot.lane.b32.xlu0 %v561, 80
        %v572 = vpop.permute.xlu0 %571
        %573 = vrot.lane.b32.xlu0 %v562, 80
        %v574 = vpop.permute.xlu0 %573
        %v575 = vsel %vm500, %v568, %v570
        %v576 = vsel %vm500, %v572, %v574
        %vm581 = vcmask 1048192
        %582 = vst.msk [vmem:[#allocation4] sm:$0xff] %vm581, %v568
        %vm583 = vcmask 916480
        %584 = vst.msk [vmem:[#allocation4 + $0x8] sm:$0xff] %vm583, %v575
        %585 = vst.msk [vmem:[#allocation4 + $0x50] sm:$0xff] %vm581, %v572
        %586 = vst.msk [vmem:[#allocation4 + $0x58] sm:$0xff] %vm583, %v576
        %v587 = vld [vmem:[#allocation2 + $0x1] sm:$0xff]
        %v588 = vld [vmem:[#allocation2 + $0x9] sm:$0xff]
        %591 = vrot.lane.b32.xlu0 %v587, 112
        %v592 = vpop.permute.xlu0 %591
        %593 = vrot.lane.b32.xlu0 %v588, 112
        %v594 = vpop.permute.xlu0 %593
        %vm597 = vcmask 1048448
        %598 = vst.msk [vmem:[#allocation4 + $0x8] sm:$0xff] %vm597, %v592
        %vm599 = vcmask 523264
        %600 = vst.msk [vmem:[#allocation4 + $0x10] sm:$0xff] %vm599, %v592
        %601 = vst.msk [vmem:[#allocation4 + $0x58] sm:$0xff] %vm597, %v594
        %602 = vst.msk [vmem:[#allocation4 + $0x60] sm:$0xff] %vm599, %v594
        %v603 = vld [vmem:[#allocation3] sm:$0xfe]
        %v604 = vld [vmem:[#allocation3 + $0x8] sm:$0xfe]
        %v605 = vld [vmem:[#allocation3 + $0x10] sm:$0xff]
        %v606 = vld [vmem:[#allocation3 + $0x18] sm:$0xff]
        %v607 = vld [vmem:[#allocation3 + $0x20] sm:$0x1]
        %v608 = vld [vmem:[#allocation3 + $0x28] sm:$0x1]
        %vm615 = vcmask 1046528
        %v616 = vrot.slane %v603, 1
        %v617 = vrot.slane %v605, 1
        %v618 = vsel %vm615, %v616, %v617
        %v619 = vrot.slane %v604, 1
        %v620 = vrot.slane %v606, 1
        %v621 = vsel %vm615, %v619, %v620
        %v622 = vrot.slane %v607, 1
        %v623 = vsel %vm615, %v617, %v622
        %v624 = vrot.slane %v608, 1
        %v625 = vsel %vm615, %v620, %v624
        %626 = vrot.lane.b32.xlu0 %v618, 64
        %v627 = vpop.permute.xlu0 %626
        %628 = vrot.lane.b32.xlu0 %v621, 64
        %v629 = vpop.permute.xlu0 %628
        %630 = vrot.lane.b32.xlu0 %v623, 64
        %v631 = vpop.permute.xlu0 %630
        %632 = vrot.lane.b32.xlu0 %v625, 64
        %v633 = vpop.permute.xlu0 %632
        %v634 = vsel %vm599, %v627, %v629
        %v635 = vsel %vm599, %v631, %v633
        %vm640 = vcmask 1048064
        %641 = vst.msk [vmem:[#allocation4 + $0x10] sm:$0xff] %vm640, %v627
        %vm642 = vcmask 785408
        %643 = vst.msk [vmem:[#allocation4 + $0x18] sm:$0xff] %vm642, %v634
        %644 = vst.msk [vmem:[#allocation4 + $0x60] sm:$0xff] %vm640, %v631
        %645 = vst.msk [vmem:[#allocation4 + $0x68] sm:$0xff] %vm642, %v635
        %v646 = vld [vmem:[#allocation2 + $0x2] sm:$0xff]
        %v647 = vld [vmem:[#allocation2 + $0xa] sm:$0xff]
        %650 = vrot.lane.b32.xlu0 %v646, 96
        %v651 = vpop.permute.xlu0 %650
        %652 = vrot.lane.b32.xlu0 %v647, 96
        %v653 = vpop.permute.xlu0 %652
        %vm656 = vcmask 1048320
        %657 = vst.msk [vmem:[#allocation4 + $0x18] sm:$0xff] %vm656, %v651
        %vm658 = vcmask 392192
        %659 = vst.msk [vmem:[#allocation4 + $0x20] sm:$0xff] %vm658, %v651
        %660 = vst.msk [vmem:[#allocation4 + $0x68] sm:$0xff] %vm656, %v653
        %661 = vst.msk [vmem:[#allocation4 + $0x70] sm:$0xff] %vm658, %v653
        %v662 = vld [vmem:[#allocation3] sm:$0xfc]
        %v663 = vld [vmem:[#allocation3 + $0x8] sm:$0xfc]
        %v664 = vld [vmem:[#allocation3 + $0x10] sm:$0xff]
        %v665 = vld [vmem:[#allocation3 + $0x18] sm:$0xff]
        %v666 = vld [vmem:[#allocation3 + $0x20] sm:$0x3]
        %v667 = vld [vmem:[#allocation3 + $0x28] sm:$0x3]
        %vm674 = vcmask 1045504
        %v675 = vrot.slane %v662, 2
        %v676 = vrot.slane %v664, 2
        %v677 = vsel %vm674, %v675, %v676
        %v678 = vrot.slane %v663, 2
        %v679 = vrot.slane %v665, 2
        %v680 = vsel %vm674, %v678, %v679
        %v681 = vrot.slane %v666, 2
        %v682 = vsel %vm674, %v676, %v681
        %v683 = vrot.slane %v667, 2
        %v684 = vsel %vm674, %v679, %v683
        %685 = vrot.lane.b32.xlu0 %v677, 48
        %v686 = vpop.permute.xlu0 %685
        %687 = vrot.lane.b32.xlu0 %v680, 48
        %v688 = vpop.permute.xlu0 %687
        %689 = vrot.lane.b32.xlu0 %v682, 48
        %v690 = vpop.permute.xlu0 %689
        %691 = vrot.lane.b32.xlu0 %v684, 48
        %v692 = vpop.permute.xlu0 %691
        %v693 = vsel %vm658, %v686, %v688
        %v694 = vsel %vm658, %v690, %v692
        %vm699 = vcmask 1047936
        %700 = vst.msk [vmem:[#allocation4 + $0x20] sm:$0xff] %vm699, %v686
        %701 = vst.msk [vmem:[#allocation4 + $0x28] sm:$0xff] %vm500, %v693
        %702 = vst.msk [vmem:[#allocation4 + $0x70] sm:$0xff] %vm699, %v690
        %703 = vst.msk [vmem:[#allocation4 + $0x78] sm:$0xff] %vm500, %v694
        %v704 = vld [vmem:[#allocation2 + $0x3] sm:$0xff]
        %v705 = vld [vmem:[#allocation2 + $0xb] sm:$0xff]
        %708 = vrot.lane.b32.xlu0 %v704, 80
        %v709 = vpop.permute.xlu0 %708
        %710 = vrot.lane.b32.xlu0 %v705, 80
        %v711 = vpop.permute.xlu0 %710
        %714 = vst.msk [vmem:[#allocation4 + $0x28] sm:$0xff] %vm581, %v709
        %715 = vst.msk [vmem:[#allocation4 + $0x30] sm:$0xff] %vm506, %v709
        %716 = vst.msk [vmem:[#allocation4 + $0x78] sm:$0xff] %vm581, %v711
        %717 = vst.msk [vmem:[#allocation4 + $0x80] sm:$0xff] %vm506, %v711
        %v718 = vld [vmem:[#allocation3] sm:$0xf8]
        %v719 = vld [vmem:[#allocation3 + $0x8] sm:$0xf8]
        %v720 = vld [vmem:[#allocation3 + $0x10] sm:$0xff]
        %v721 = vld [vmem:[#allocation3 + $0x18] sm:$0xff]
        %v722 = vld [vmem:[#allocation3 + $0x20] sm:$0x7]
        %v723 = vld [vmem:[#allocation3 + $0x28] sm:$0x7]
        %vm730 = vcmask 1044480
        %v731 = vrot.slane %v718, 3
        %v732 = vrot.slane %v720, 3
        %v733 = vsel %vm730, %v731, %v732
        %v734 = vrot.slane %v719, 3
        %v735 = vrot.slane %v721, 3
        %v736 = vsel %vm730, %v734, %v735
        %v737 = vrot.slane %v722, 3
        %v738 = vsel %vm730, %v732, %v737
        %v739 = vrot.slane %v723, 3
        %v740 = vsel %vm730, %v735, %v739
        %741 = vrot.lane.b32.xlu0 %v733, 32
        %v742 = vpop.permute.xlu0 %741
        %743 = vrot.lane.b32.xlu0 %v736, 32
        %v744 = vpop.permute.xlu0 %743
        %745 = vrot.lane.b32.xlu0 %v738, 32
        %v746 = vpop.permute.xlu0 %745
        %747 = vrot.lane.b32.xlu0 %v740, 32
        %v748 = vpop.permute.xlu0 %747
        %v749 = vsel %vm506, %v742, %v744
        %v750 = vsel %vm506, %v746, %v748
        %vm755 = vcmask 1047808
        %756 = vst.msk [vmem:[#allocation4 + $0x30] sm:$0xff] %vm755, %v742
        %757 = vst.msk [vmem:[#allocation4 + $0x38] sm:$0xff] %vm599, %v749
        %758 = vst.msk [vmem:[#allocation4 + $0x80] sm:$0xff] %vm755, %v746
        %759 = vst.msk [vmem:[#allocation4 + $0x88] sm:$0xff] %vm599, %v750
        %v760 = vld [vmem:[#allocation2 + $0x4] sm:$0xff]
        %v761 = vld [vmem:[#allocation2 + $0xc] sm:$0xff]
        %764 = vrot.lane.b32.xlu0 %v760, 64
        %v765 = vpop.permute.xlu0 %764
        %766 = vrot.lane.b32.xlu0 %v761, 64
        %v767 = vpop.permute.xlu0 %766
        %770 = vst.msk [vmem:[#allocation4 + $0x38] sm:$0xff] %vm640, %v765
        %771 = vst.msk [vmem:[#allocation4 + $0x40] sm:$0xff] %vm549, %v765
        %772 = vst.msk [vmem:[#allocation4 + $0x88] sm:$0xff] %vm640, %v767
        %773 = vst.msk [vmem:[#allocation4 + $0x90] sm:$0xff] %vm549, %v767
        %v774 = vld [vmem:[#allocation3] sm:$0xf0]
        %v775 = vld [vmem:[#allocation3 + $0x8] sm:$0xf0]
        %v776 = vld [vmem:[#allocation3 + $0x10] sm:$0xff]
        %v777 = vld [vmem:[#allocation3 + $0x18] sm:$0xff]
        %v778 = vld [vmem:[#allocation3 + $0x20] sm:$0xf]
        %v779 = vld [vmem:[#allocation3 + $0x28] sm:$0xf]
        %vm786 = vcmask 1043456
        %v787 = vrot.slane %v774, 4
        %v788 = vrot.slane %v776, 4
        %v789 = vsel %vm786, %v787, %v788
        %v790 = vrot.slane %v775, 4
        %v791 = vrot.slane %v777, 4
        %v792 = vsel %vm786, %v790, %v791
        %v793 = vrot.slane %v778, 4
        %v794 = vsel %vm786, %v788, %v793
        %v795 = vrot.slane %v779, 4
        %v796 = vsel %vm786, %v791, %v795
        %797 = vrot.lane.b32.xlu0 %v789, 16
        %v798 = vpop.permute.xlu0 %797
        %799 = vrot.lane.b32.xlu0 %v792, 16
        %v800 = vpop.permute.xlu0 %799
        %801 = vrot.lane.b32.xlu0 %v794, 16
        %v802 = vpop.permute.xlu0 %801
        %803 = vrot.lane.b32.xlu0 %v796, 16
        %v804 = vpop.permute.xlu0 %803
        %v805 = vsel %vm549, %v798, %v800
        %v806 = vsel %vm549, %v802, %v804
        %811 = vst.msk [vmem:[#allocation4 + $0x40] sm:$0xff] %vm547, %v798
        %812 = vst.msk [vmem:[#allocation4 + $0x48] sm:$0xff] %vm658, %v805
        %813 = vst.msk [vmem:[#allocation4 + $0x90] sm:$0xff] %vm547, %v802
        %814 = vst.msk [vmem:[#allocation4 + $0x98] sm:$0xff] %vm658, %v806
        %v815 = vld [vmem:[#allocation4] sm:$0xff]
        %v816 = vld [vmem:[#allocation4 + $0x8] sm:$0xff]
        %v817 = vld [vmem:[#allocation4 + $0x10] sm:$0xff]
        %v818 = vld [vmem:[#allocation4 + $0x18] sm:$0xff]
        %v819 = vld [vmem:[#allocation4 + $0x20] sm:$0xff]
        %v820 = vld [vmem:[#allocation4 + $0x28] sm:$0xff]
        %v821 = vld [vmem:[#allocation4 + $0x30] sm:$0xff]
        %v822 = vld [vmem:[#allocation4 + $0x38] sm:$0xff]
        %v823 = vld [vmem:[#allocation4 + $0x40] sm:$0xff]
        %v824 = vld [vmem:[#allocation4 + $0x48] sm:$0xff]
        %v825 = vld [vmem:[#allocation4 + $0x50] sm:$0xff]
        %v826 = vld [vmem:[#allocation4 + $0x58] sm:$0xff]
        %v827 = vld [vmem:[#allocation4 + $0x60] sm:$0xff]
        %v828 = vld [vmem:[#allocation4 + $0x68] sm:$0xff]
        %v829 = vld [vmem:[#allocation4 + $0x70] sm:$0xff]
        %v830 = vld [vmem:[#allocation4 + $0x78] sm:$0xff]
        %v831 = vld [vmem:[#allocation4 + $0x80] sm:$0xff]
        %v832 = vld [vmem:[#allocation4 + $0x88] sm:$0xff]
        %v833 = vld [vmem:[#allocation4 + $0x90] sm:$0xff]
        %v834 = vld [vmem:[#allocation4 + $0x98] sm:$0xff]
        %v835 = vld [vmem:[#allocation12] sm:$0xff]
        %v836 = vld [vmem:[#allocation12 + $0x8] sm:$0xff]
        %v837 = vld [vmem:[#allocation12 + $0x10] sm:$0xff]
        %v838 = vld [vmem:[#allocation12 + $0x18] sm:$0xff]
        %v839 = vld [vmem:[#allocation12 + $0x20] sm:$0xff]
        %v840 = vld [vmem:[#allocation12 + $0x28] sm:$0xff]
        %v841 = vld [vmem:[#allocation12 + $0x30] sm:$0xff]
        %v842 = vld [vmem:[#allocation12 + $0x38] sm:$0xff]
        %v843 = vld [vmem:[#allocation12 + $0x40] sm:$0xff]
        %v844 = vld [vmem:[#allocation12 + $0x48] sm:$0xff]
        %v845 = vld [vmem:[#allocation12 + $0x50] sm:$0xff]
        %v846 = vld [vmem:[#allocation12 + $0x58] sm:$0xff]
        %v847 = vld [vmem:[#allocation12 + $0x60] sm:$0xff]
        %v848 = vld [vmem:[#allocation12 + $0x68] sm:$0xff]
        %v849 = vld [vmem:[#allocation12 + $0x70] sm:$0xff]
        %v850 = vld [vmem:[#allocation12 + $0x78] sm:$0xff]
        %v851 = vld [vmem:[#allocation12 + $0x80] sm:$0xff]
        %v852 = vld [vmem:[#allocation12 + $0x88] sm:$0xff]
        %v853 = vld [vmem:[#allocation12 + $0x90] sm:$0xff]
        %v854 = vld [vmem:[#allocation12 + $0x98] sm:$0xff]
        %v855 = vld [vmem:[#allocation12 + $0xa0] sm:$0xff]
        %v856 = vld [vmem:[#allocation12 + $0xa8] sm:$0xff]
        %v857 = vld [vmem:[#allocation12 + $0xb0] sm:$0xff]
        %v858 = vld [vmem:[#allocation12 + $0xb8] sm:$0xff]
        %v859 = vld [vmem:[#allocation12 + $0xc0] sm:$0xff]
        %v860 = vld [vmem:[#allocation12 + $0xc8] sm:$0xff]
        %v861 = vld [vmem:[#allocation12 + $0xd0] sm:$0xff]
        %v862 = vld [vmem:[#allocation12 + $0xd8] sm:$0xff]
        %v863 = vld [vmem:[#allocation12 + $0xe0] sm:$0xff]
        %v864 = vld [vmem:[#allocation12 + $0xe8] sm:$0xff]
        %v865 = vld [vmem:[#allocation12 + $0xf0] sm:$0xff]
        %v866 = vld [vmem:[#allocation12 + $0xf8] sm:$0xff]
        %v867 = vld [vmem:[#allocation12 + $0x100] sm:$0xff]
        %v868 = vld [vmem:[#allocation12 + $0x108] sm:$0xff]
        %v869 = vld [vmem:[#allocation12 + $0x110] sm:$0xff]
        %v870 = vld [vmem:[#allocation12 + $0x118] sm:$0xff]
        %v871 = vld [vmem:[#allocation12 + $0x120] sm:$0xff]
        %v872 = vld [vmem:[#allocation12 + $0x128] sm:$0xff]
        %v873 = vld [vmem:[#allocation12 + $0x130] sm:$0xff]
        %v874 = vld [vmem:[#allocation12 + $0x138] sm:$0xff]
        %v875 = vld [vmem:[#allocation12 + $0x140] sm:$0xff]
        %v876 = vld [vmem:[#allocation12 + $0x148] sm:$0xff]
        %v877 = vld [vmem:[#allocation12 + $0x150] sm:$0xff]
        %v878 = vld [vmem:[#allocation12 + $0x158] sm:$0xff]
        %v879 = vld [vmem:[#allocation12 + $0x160] sm:$0xff]
        %v880 = vld [vmem:[#allocation12 + $0x168] sm:$0xff]
        %v881 = vld [vmem:[#allocation12 + $0x170] sm:$0xff]
        %v882 = vld [vmem:[#allocation12 + $0x178] sm:$0xff]
        %v883 = vld [vmem:[#allocation12 + $0x180] sm:$0xff]
        %v884 = vld [vmem:[#allocation12 + $0x188] sm:$0xff]
        %v885 = vld [vmem:[#allocation12 + $0x190] sm:$0xff]
        %v886 = vld [vmem:[#allocation12 + $0x198] sm:$0xff]
        %v887 = vld [vmem:[#allocation12 + $0x1a0] sm:$0xff]
        %v888 = vld [vmem:[#allocation12 + $0x1a8] sm:$0xff]
        %v889 = vld [vmem:[#allocation12 + $0x1b0] sm:$0xff]
        %v890 = vld [vmem:[#allocation12 + $0x1b8] sm:$0xff]
        %v891 = vld [vmem:[#allocation12 + $0x1c0] sm:$0xff]
        %v892 = vld [vmem:[#allocation12 + $0x1c8] sm:$0xff]
        %v893 = vld [vmem:[#allocation12 + $0x1d0] sm:$0xff]
        %v894 = vld [vmem:[#allocation12 + $0x1d8] sm:$0xff]
        %v895 = vld [vmem:[#allocation12 + $0x1e0] sm:$0xff]
        %v896 = vld [vmem:[#allocation12 + $0x1e8] sm:$0xff]
        %v897 = vld [vmem:[#allocation12 + $0x1f0] sm:$0xff]
        %v898 = vld [vmem:[#allocation12 + $0x1f8] sm:$0xff]
        %v899 = vld [vmem:[#allocation12 + $0x200] sm:$0xff]
        %v900 = vld [vmem:[#allocation12 + $0x208] sm:$0xff]
        %v901 = vld [vmem:[#allocation12 + $0x210] sm:$0xff]
        %v902 = vld [vmem:[#allocation12 + $0x218] sm:$0xff]
        %v903 = vld [vmem:[#allocation12 + $0x220] sm:$0xff]
        %v904 = vld [vmem:[#allocation12 + $0x228] sm:$0xff]
        %v905 = vld [vmem:[#allocation12 + $0x230] sm:$0xff]
        %v906 = vld [vmem:[#allocation12 + $0x238] sm:$0xff]
        %v907 = vld [vmem:[#allocation12 + $0x240] sm:$0xff]
        %v908 = vld [vmem:[#allocation12 + $0x248] sm:$0xff]
        %v909 = vld [vmem:[#allocation12 + $0x250] sm:$0xff]
        %v910 = vld [vmem:[#allocation12 + $0x258] sm:$0xff]
        %v911 = vld [vmem:[#allocation12 + $0x260] sm:$0xff]
        %v912 = vld [vmem:[#allocation12 + $0x268] sm:$0xff]
        %v913 = vld [vmem:[#allocation12 + $0x270] sm:$0xff]
        %v914 = vld [vmem:[#allocation12 + $0x278] sm:$0xff]
        %v915 = vld [vmem:[#allocation12 + $0x280] sm:$0xff]
        %v916 = vld [vmem:[#allocation12 + $0x288] sm:$0xff]
        %v917 = vld [vmem:[#allocation12 + $0x290] sm:$0xff]
        %v918 = vld [vmem:[#allocation12 + $0x298] sm:$0xff]
        %v919 = vld [vmem:[#allocation12 + $0x2a0] sm:$0xff]
        %v920 = vld [vmem:[#allocation12 + $0x2a8] sm:$0xff]
        %v921 = vld [vmem:[#allocation12 + $0x2b0] sm:$0xff]
        %v922 = vld [vmem:[#allocation12 + $0x2b8] sm:$0xff]
        %v923 = vld [vmem:[#allocation12 + $0x2c0] sm:$0xff]
        %v924 = vld [vmem:[#allocation12 + $0x2c8] sm:$0xff]
        %v925 = vld [vmem:[#allocation12 + $0x2d0] sm:$0xff]
        %v926 = vld [vmem:[#allocation12 + $0x2d8] sm:$0xff]
        %v927 = vld [vmem:[#allocation12 + $0x2e0] sm:$0xff]
        %v928 = vld [vmem:[#allocation12 + $0x2e8] sm:$0xff]
        %v929 = vld [vmem:[#allocation12 + $0x2f0] sm:$0xff]
        %v930 = vld [vmem:[#allocation12 + $0x2f8] sm:$0xff]
        %v931 = vld [vmem:[#allocation12 + $0x300] sm:$0xff]
        %v932 = vld [vmem:[#allocation12 + $0x308] sm:$0xff]
        %v933 = vld [vmem:[#allocation12 + $0x310] sm:$0xff]
        %v934 = vld [vmem:[#allocation12 + $0x318] sm:$0xff]
        %v935 = vld [vmem:[#allocation12 + $0x320] sm:$0xff]
        %v936 = vld [vmem:[#allocation12 + $0x328] sm:$0xff]
        %v937 = vld [vmem:[#allocation12 + $0x330] sm:$0xff]
        %v938 = vld [vmem:[#allocation12 + $0x338] sm:$0xff]
        %v939 = vld [vmem:[#allocation12 + $0x340] sm:$0xff]
        %v940 = vld [vmem:[#allocation12 + $0x348] sm:$0xff]
        %v941 = vld [vmem:[#allocation12 + $0x350] sm:$0xff]
        %v942 = vld [vmem:[#allocation12 + $0x358] sm:$0xff]
        %v943 = vld [vmem:[#allocation12 + $0x360] sm:$0xff]
        %v944 = vld [vmem:[#allocation12 + $0x368] sm:$0xff]
        %v945 = vld [vmem:[#allocation12 + $0x370] sm:$0xff]
        %v946 = vld [vmem:[#allocation12 + $0x378] sm:$0xff]
        %v947 = vld [vmem:[#allocation12 + $0x380] sm:$0xff]
        %v948 = vld [vmem:[#allocation12 + $0x388] sm:$0xff]
        %v949 = vld [vmem:[#allocation12 + $0x390] sm:$0xff]
        %v950 = vld [vmem:[#allocation12 + $0x398] sm:$0xff]
        %v951 = vld [vmem:[#allocation12 + $0x3a0] sm:$0xff]
        %v952 = vld [vmem:[#allocation12 + $0x3a8] sm:$0xff]
        %v953 = vld [vmem:[#allocation12 + $0x3b0] sm:$0xff]
        %v954 = vld [vmem:[#allocation12 + $0x3b8] sm:$0xff]
        %v955 = vld [vmem:[#allocation12 + $0x3c0] sm:$0xff]
        %v956 = vld [vmem:[#allocation12 + $0x3c8] sm:$0xff]
        %v957 = vld [vmem:[#allocation12 + $0x3d0] sm:$0xff]
        %v958 = vld [vmem:[#allocation12 + $0x3d8] sm:$0xff]
        %v959 = vld [vmem:[#allocation12 + $0x3e0] sm:$0xff]
        %v960 = vld [vmem:[#allocation12 + $0x3e8] sm:$0xff]
        %v961 = vld [vmem:[#allocation12 + $0x3f0] sm:$0xff]
        %v962 = vld [vmem:[#allocation12 + $0x3f8] sm:$0xff]
        %v963 = vld [vmem:[#allocation12 + $0x400] sm:$0xff]
        %v964 = vld [vmem:[#allocation12 + $0x408] sm:$0xff]
        %v965 = vld [vmem:[#allocation12 + $0x410] sm:$0xff]
        %v966 = vld [vmem:[#allocation12 + $0x418] sm:$0xff]
        %v967 = vld [vmem:[#allocation12 + $0x420] sm:$0xff]
        %v968 = vld [vmem:[#allocation12 + $0x428] sm:$0xff]
        %v969 = vld [vmem:[#allocation12 + $0x430] sm:$0xff]
        %v970 = vld [vmem:[#allocation12 + $0x438] sm:$0xff]
        %v971 = vld [vmem:[#allocation12 + $0x440] sm:$0xff]
        %v972 = vld [vmem:[#allocation12 + $0x448] sm:$0xff]
        %v973 = vld [vmem:[#allocation12 + $0x450] sm:$0xff]
        %v974 = vld [vmem:[#allocation12 + $0x458] sm:$0xff]
        %v975 = vld [vmem:[#allocation12 + $0x460] sm:$0xff]
        %v976 = vld [vmem:[#allocation12 + $0x468] sm:$0xff]
        %v977 = vld [vmem:[#allocation12 + $0x470] sm:$0xff]
        %v978 = vld [vmem:[#allocation12 + $0x478] sm:$0xff]
        %v979 = vld [vmem:[#allocation12 + $0x480] sm:$0xff]
        %v980 = vld [vmem:[#allocation12 + $0x488] sm:$0xff]
        %v981 = vld [vmem:[#allocation12 + $0x490] sm:$0xff]
        %v982 = vld [vmem:[#allocation12 + $0x498] sm:$0xff]
        %v983 = vld [vmem:[#allocation12 + $0x4a0] sm:$0xff]
        %v984 = vld [vmem:[#allocation12 + $0x4a8] sm:$0xff]
        %v985 = vld [vmem:[#allocation12 + $0x4b0] sm:$0xff]
        %v986 = vld [vmem:[#allocation12 + $0x4b8] sm:$0xff]
        %v987 = vld [vmem:[#allocation12 + $0x4c0] sm:$0xff]
        %v988 = vld [vmem:[#allocation12 + $0x4c8] sm:$0xff]
        %v989 = vld [vmem:[#allocation12 + $0x4d0] sm:$0xff]
        %v990 = vld [vmem:[#allocation12 + $0x4d8] sm:$0xff]
        %v991 = vld [vmem:[#allocation12 + $0x4e0] sm:$0xff]
        %v992 = vld [vmem:[#allocation12 + $0x4e8] sm:$0xff]
        %v993 = vld [vmem:[#allocation12 + $0x4f0] sm:$0xff]
        %v994 = vld [vmem:[#allocation12 + $0x4f8] sm:$0xff]
        %v995 = vld [vmem:[#allocation12 + $0x500] sm:$0xff]
        %v996 = vld [vmem:[#allocation12 + $0x508] sm:$0xff]
        %v997 = vld [vmem:[#allocation12 + $0x510] sm:$0xff]
        %v998 = vld [vmem:[#allocation12 + $0x518] sm:$0xff]
        %v999 = vld [vmem:[#allocation12 + $0x520] sm:$0xff]
        %v1000 = vld [vmem:[#allocation12 + $0x528] sm:$0xff]
        %v1001 = vld [vmem:[#allocation12 + $0x530] sm:$0xff]
        %v1002 = vld [vmem:[#allocation12 + $0x538] sm:$0xff]
        %v1003 = vld [vmem:[#allocation12 + $0x540] sm:$0xff]
        %v1004 = vld [vmem:[#allocation12 + $0x548] sm:$0xff]
        %v1005 = vld [vmem:[#allocation12 + $0x550] sm:$0xff]
        %v1006 = vld [vmem:[#allocation12 + $0x558] sm:$0xff]
        %v1007 = vld [vmem:[#allocation12 + $0x560] sm:$0xff]
        %v1008 = vld [vmem:[#allocation12 + $0x568] sm:$0xff]
        %v1009 = vld [vmem:[#allocation12 + $0x570] sm:$0xff]
        %v1010 = vld [vmem:[#allocation12 + $0x578] sm:$0xff]
        %v1011 = vld [vmem:[#allocation12 + $0x580] sm:$0xff]
        %v1012 = vld [vmem:[#allocation12 + $0x588] sm:$0xff]
        %v1013 = vld [vmem:[#allocation12 + $0x590] sm:$0xff]
        %v1014 = vld [vmem:[#allocation12 + $0x598] sm:$0xff]
        %v1015 = vld [vmem:[#allocation12 + $0x5a0] sm:$0xff]
        %v1016 = vld [vmem:[#allocation12 + $0x5a8] sm:$0xff]
        %v1017 = vld [vmem:[#allocation12 + $0x5b0] sm:$0xff]
        %v1018 = vld [vmem:[#allocation12 + $0x5b8] sm:$0xff]
        %v1019 = vld [vmem:[#allocation12 + $0x5c0] sm:$0xff]
        %v1020 = vld [vmem:[#allocation12 + $0x5c8] sm:$0xff]
        %v1021 = vld [vmem:[#allocation12 + $0x5d0] sm:$0xff]
        %v1022 = vld [vmem:[#allocation12 + $0x5d8] sm:$0xff]
        %v1023 = vld [vmem:[#allocation12 + $0x5e0] sm:$0xff]
        %v1024 = vld [vmem:[#allocation12 + $0x5e8] sm:$0xff]
        %v1025 = vld [vmem:[#allocation12 + $0x5f0] sm:$0xff]
        %v1026 = vld [vmem:[#allocation12 + $0x5f8] sm:$0xff]
        %v1027 = vld [vmem:[#allocation12 + $0x600] sm:$0xff]
        %v1028 = vld [vmem:[#allocation12 + $0x608] sm:$0xff]
        %v1029 = vld [vmem:[#allocation12 + $0x610] sm:$0xff]
        %v1030 = vld [vmem:[#allocation12 + $0x618] sm:$0xff]
        %v1031 = vld [vmem:[#allocation12 + $0x620] sm:$0xff]
        %v1032 = vld [vmem:[#allocation12 + $0x628] sm:$0xff]
        %v1033 = vld [vmem:[#allocation12 + $0x630] sm:$0xff]
        %v1034 = vld [vmem:[#allocation12 + $0x638] sm:$0xff]
        %v1035 = vld [vmem:[#allocation12 + $0x640] sm:$0xff]
        %v1036 = vld [vmem:[#allocation12 + $0x648] sm:$0xff]
        %v1037 = vld [vmem:[#allocation12 + $0x650] sm:$0xff]
        %v1038 = vld [vmem:[#allocation12 + $0x658] sm:$0xff]
        %v1039 = vld [vmem:[#allocation12 + $0x660] sm:$0xff]
        %v1040 = vld [vmem:[#allocation12 + $0x668] sm:$0xff]
        %v1041 = vld [vmem:[#allocation12 + $0x670] sm:$0xff]
        %v1042 = vld [vmem:[#allocation12 + $0x678] sm:$0xff]
        %v1043 = vld [vmem:[#allocation12 + $0x680] sm:$0xff]
        %v1044 = vld [vmem:[#allocation12 + $0x688] sm:$0xff]
        %v1045 = vld [vmem:[#allocation12 + $0x690] sm:$0xff]
        %v1046 = vld [vmem:[#allocation12 + $0x698] sm:$0xff]
        %v1047 = vld [vmem:[#allocation12 + $0x6a0] sm:$0xff]
        %v1048 = vld [vmem:[#allocation12 + $0x6a8] sm:$0xff]
        %v1049 = vld [vmem:[#allocation12 + $0x6b0] sm:$0xff]
        %v1050 = vld [vmem:[#allocation12 + $0x6b8] sm:$0xff]
        %v1051 = vld [vmem:[#allocation12 + $0x6c0] sm:$0xff]
        %v1052 = vld [vmem:[#allocation12 + $0x6c8] sm:$0xff]
        %v1053 = vld [vmem:[#allocation12 + $0x6d0] sm:$0xff]
        %v1054 = vld [vmem:[#allocation12 + $0x6d8] sm:$0xff]
        %v1055 = vld [vmem:[#allocation12 + $0x6e0] sm:$0xff]
        %v1056 = vld [vmem:[#allocation12 + $0x6e8] sm:$0xff]
        %v1057 = vld [vmem:[#allocation12 + $0x6f0] sm:$0xff]
        %v1058 = vld [vmem:[#allocation12 + $0x6f8] sm:$0xff]
        %v1059 = vld [vmem:[#allocation12 + $0x700] sm:$0xff]
        %v1060 = vld [vmem:[#allocation12 + $0x708] sm:$0xff]
        %v1061 = vld [vmem:[#allocation12 + $0x710] sm:$0xff]
        %v1062 = vld [vmem:[#allocation12 + $0x718] sm:$0xff]
        %v1063 = vld [vmem:[#allocation12 + $0x720] sm:$0xff]
        %v1064 = vld [vmem:[#allocation12 + $0x728] sm:$0xff]
        %v1065 = vld [vmem:[#allocation12 + $0x730] sm:$0xff]
        %v1066 = vld [vmem:[#allocation12 + $0x738] sm:$0xff]
        %v1067 = vld [vmem:[#allocation12 + $0x740] sm:$0xff]
        %v1068 = vld [vmem:[#allocation12 + $0x748] sm:$0xff]
        %v1069 = vld [vmem:[#allocation12 + $0x750] sm:$0xff]
        %v1070 = vld [vmem:[#allocation12 + $0x758] sm:$0xff]
        %v1071 = vld [vmem:[#allocation12 + $0x760] sm:$0xff]
        %v1072 = vld [vmem:[#allocation12 + $0x768] sm:$0xff]
        %v1073 = vld [vmem:[#allocation12 + $0x770] sm:$0xff]
        %v1074 = vld [vmem:[#allocation12 + $0x778] sm:$0xff]
        %v1075 = vld [vmem:[#allocation12 + $0x780] sm:$0xff]
        %v1076 = vld [vmem:[#allocation12 + $0x788] sm:$0xff]
        %v1077 = vld [vmem:[#allocation12 + $0x790] sm:$0xff]
        %v1078 = vld [vmem:[#allocation12 + $0x798] sm:$0xff]
        %v1079 = vld [vmem:[#allocation12 + $0x7a0] sm:$0xff]
        %v1080 = vld [vmem:[#allocation12 + $0x7a8] sm:$0xff]
        %v1081 = vld [vmem:[#allocation12 + $0x7b0] sm:$0xff]
        %v1082 = vld [vmem:[#allocation12 + $0x7b8] sm:$0xff]
        %v1083 = vld [vmem:[#allocation12 + $0x7c0] sm:$0xff]
        %v1084 = vld [vmem:[#allocation12 + $0x7c8] sm:$0xff]
        %v1085 = vld [vmem:[#allocation12 + $0x7d0] sm:$0xff]
        %v1086 = vld [vmem:[#allocation12 + $0x7d8] sm:$0xff]
        %v1087 = vld [vmem:[#allocation12 + $0x7e0] sm:$0xff]
        %v1088 = vld [vmem:[#allocation12 + $0x7e8] sm:$0xff]
        %v1089 = vld [vmem:[#allocation12 + $0x7f0] sm:$0xff]
        %v1090 = vld [vmem:[#allocation12 + $0x7f8] sm:$0xff]
        %v1091 = vld [vmem:[#allocation12 + $0x800] sm:$0xff]
        %v1092 = vld [vmem:[#allocation12 + $0x808] sm:$0xff]
        %v1093 = vld [vmem:[#allocation12 + $0x810] sm:$0xff]
        %v1094 = vld [vmem:[#allocation12 + $0x818] sm:$0xff]
        %v1095 = vld [vmem:[#allocation12 + $0x820] sm:$0xff]
        %v1096 = vld [vmem:[#allocation12 + $0x828] sm:$0xff]
        %v1097 = vld [vmem:[#allocation12 + $0x830] sm:$0xff]
        %v1098 = vld [vmem:[#allocation12 + $0x838] sm:$0xff]
        %v1099 = vld [vmem:[#allocation12 + $0x840] sm:$0xff]
        %v1100 = vld [vmem:[#allocation12 + $0x848] sm:$0xff]
        %v1101 = vld [vmem:[#allocation12 + $0x850] sm:$0xff]
        %v1102 = vld [vmem:[#allocation12 + $0x858] sm:$0xff]
        %v1103 = vld [vmem:[#allocation12 + $0x860] sm:$0xff]
        %v1104 = vld [vmem:[#allocation12 + $0x868] sm:$0xff]
        %v1105 = vld [vmem:[#allocation12 + $0x870] sm:$0xff]
        %v1106 = vld [vmem:[#allocation12 + $0x878] sm:$0xff]
        %v1107 = vld [vmem:[#allocation12 + $0x880] sm:$0xff]
        %v1108 = vld [vmem:[#allocation12 + $0x888] sm:$0xff]
        %v1109 = vld [vmem:[#allocation12 + $0x890] sm:$0xff]
        %v1110 = vld [vmem:[#allocation12 + $0x898] sm:$0xff]
        %v1111 = vld [vmem:[#allocation12 + $0x8a0] sm:$0xff]
        %v1112 = vld [vmem:[#allocation12 + $0x8a8] sm:$0xff]
        %v1113 = vld [vmem:[#allocation12 + $0x8b0] sm:$0xff]
        %v1114 = vld [vmem:[#allocation12 + $0x8b8] sm:$0xff]
        %v1115 = vld [vmem:[#allocation12 + $0x8c0] sm:$0xff]
        %v1116 = vld [vmem:[#allocation12 + $0x8c8] sm:$0xff]
        %v1117 = vld [vmem:[#allocation12 + $0x8d0] sm:$0xff]
        %v1118 = vld [vmem:[#allocation12 + $0x8d8] sm:$0xff]
        %v1119 = vld [vmem:[#allocation12 + $0x8e0] sm:$0xff]
        %v1120 = vld [vmem:[#allocation12 + $0x8e8] sm:$0xff]
        %v1121 = vld [vmem:[#allocation12 + $0x8f0] sm:$0xff]
        %v1122 = vld [vmem:[#allocation12 + $0x8f8] sm:$0xff]
        %v1123 = vld [vmem:[#allocation12 + $0x900] sm:$0xff]
        %v1124 = vld [vmem:[#allocation12 + $0x908] sm:$0xff]
        %v1125 = vld [vmem:[#allocation12 + $0x910] sm:$0xff]
        %v1126 = vld [vmem:[#allocation12 + $0x918] sm:$0xff]
        %v1127 = vld [vmem:[#allocation12 + $0x920] sm:$0xff]
        %v1128 = vld [vmem:[#allocation12 + $0x928] sm:$0xff]
        %v1129 = vld [vmem:[#allocation12 + $0x930] sm:$0xff]
        %v1130 = vld [vmem:[#allocation12 + $0x938] sm:$0xff]
        %v1131 = vld [vmem:[#allocation12 + $0x940] sm:$0xff]
        %v1132 = vld [vmem:[#allocation12 + $0x948] sm:$0xff]
        %v1133 = vld [vmem:[#allocation12 + $0x950] sm:$0xff]
        %v1134 = vld [vmem:[#allocation12 + $0x958] sm:$0xff]
        %v1135 = vld [vmem:[#allocation12 + $0x960] sm:$0xff]
        %v1136 = vld [vmem:[#allocation12 + $0x968] sm:$0xff]
        %v1137 = vld [vmem:[#allocation12 + $0x970] sm:$0xff]
        %v1138 = vld [vmem:[#allocation12 + $0x978] sm:$0xff]
        %v1139 = vld [vmem:[#allocation12 + $0x980] sm:$0xff]
        %v1140 = vld [vmem:[#allocation12 + $0x988] sm:$0xff]
        %v1141 = vld [vmem:[#allocation12 + $0x990] sm:$0xff]
        %v1142 = vld [vmem:[#allocation12 + $0x998] sm:$0xff]
        %v1143 = vld [vmem:[#allocation12 + $0x9a0] sm:$0xff]
        %v1144 = vld [vmem:[#allocation12 + $0x9a8] sm:$0xff]
        %v1145 = vld [vmem:[#allocation12 + $0x9b0] sm:$0xff]
        %v1146 = vld [vmem:[#allocation12 + $0x9b8] sm:$0xff]
        %v1147 = vld [vmem:[#allocation12 + $0x9c0] sm:$0xff]
        %v1148 = vld [vmem:[#allocation12 + $0x9c8] sm:$0xff]
        %v1149 = vld [vmem:[#allocation12 + $0x9d0] sm:$0xff]
        %v1150 = vld [vmem:[#allocation12 + $0x9d8] sm:$0xff]
        %v1151 = vld [vmem:[#allocation12 + $0x9e0] sm:$0xff]
        %v1152 = vld [vmem:[#allocation12 + $0x9e8] sm:$0xff]
        %v1153 = vld [vmem:[#allocation12 + $0x9f0] sm:$0xff]
        %v1154 = vld [vmem:[#allocation12 + $0x9f8] sm:$0xff]
        %v1155 = vld [vmem:[#allocation12 + $0xa00] sm:$0xff]
        %v1156 = vld [vmem:[#allocation12 + $0xa08] sm:$0xff]
        %v1157 = vld [vmem:[#allocation12 + $0xa10] sm:$0xff]
        %v1158 = vld [vmem:[#allocation12 + $0xa18] sm:$0xff]
        %v1159 = vld [vmem:[#allocation12 + $0xa20] sm:$0xff]
        %v1160 = vld [vmem:[#allocation12 + $0xa28] sm:$0xff]
        %v1161 = vld [vmem:[#allocation12 + $0xa30] sm:$0xff]
        %v1162 = vld [vmem:[#allocation12 + $0xa38] sm:$0xff]
        %v1163 = vld [vmem:[#allocation12 + $0xa40] sm:$0xff]
        %v1164 = vld [vmem:[#allocation12 + $0xa48] sm:$0xff]
        %v1165 = vld [vmem:[#allocation12 + $0xa50] sm:$0xff]
        %v1166 = vld [vmem:[#allocation12 + $0xa58] sm:$0xff]
        %v1167 = vld [vmem:[#allocation12 + $0xa60] sm:$0xff]
        %v1168 = vld [vmem:[#allocation12 + $0xa68] sm:$0xff]
        %v1169 = vld [vmem:[#allocation12 + $0xa70] sm:$0xff]
        %v1170 = vld [vmem:[#allocation12 + $0xa78] sm:$0xff]
        %v1171 = vld [vmem:[#allocation12 + $0xa80] sm:$0xff]
        %v1172 = vld [vmem:[#allocation12 + $0xa88] sm:$0xff]
        %v1173 = vld [vmem:[#allocation12 + $0xa90] sm:$0xff]
        %v1174 = vld [vmem:[#allocation12 + $0xa98] sm:$0xff]
        %v1175 = vld [vmem:[#allocation12 + $0xaa0] sm:$0xff]
        %v1176 = vld [vmem:[#allocation12 + $0xaa8] sm:$0xff]
        %v1177 = vld [vmem:[#allocation12 + $0xab0] sm:$0xff]
        %v1178 = vld [vmem:[#allocation12 + $0xab8] sm:$0xff]
        %v1179 = vld [vmem:[#allocation12 + $0xac0] sm:$0xff]
        %v1180 = vld [vmem:[#allocation12 + $0xac8] sm:$0xff]
        %v1181 = vld [vmem:[#allocation12 + $0xad0] sm:$0xff]
        %v1182 = vld [vmem:[#allocation12 + $0xad8] sm:$0xff]
        %v1183 = vld [vmem:[#allocation12 + $0xae0] sm:$0xff]
        %v1184 = vld [vmem:[#allocation12 + $0xae8] sm:$0xff]
        %v1185 = vld [vmem:[#allocation12 + $0xaf0] sm:$0xff]
        %v1186 = vld [vmem:[#allocation12 + $0xaf8] sm:$0xff]
        %v1187 = vld [vmem:[#allocation12 + $0xb00] sm:$0xff]
        %v1188 = vld [vmem:[#allocation12 + $0xb08] sm:$0xff]
        %v1189 = vld [vmem:[#allocation12 + $0xb10] sm:$0xff]
        %v1190 = vld [vmem:[#allocation12 + $0xb18] sm:$0xff]
        %v1191 = vld [vmem:[#allocation12 + $0xb20] sm:$0xff]
        %v1192 = vld [vmem:[#allocation12 + $0xb28] sm:$0xff]
        %v1193 = vld [vmem:[#allocation12 + $0xb30] sm:$0xff]
        %v1194 = vld [vmem:[#allocation12 + $0xb38] sm:$0xff]
        %v1195 = vld [vmem:[#allocation12 + $0xb40] sm:$0xff]
        %v1196 = vld [vmem:[#allocation12 + $0xb48] sm:$0xff]
        %v1197 = vld [vmem:[#allocation12 + $0xb50] sm:$0xff]
        %v1198 = vld [vmem:[#allocation12 + $0xb58] sm:$0xff]
        %v1199 = vld [vmem:[#allocation12 + $0xb60] sm:$0xff]
        %v1200 = vld [vmem:[#allocation12 + $0xb68] sm:$0xff]
        %v1201 = vld [vmem:[#allocation12 + $0xb70] sm:$0xff]
        %v1202 = vld [vmem:[#allocation12 + $0xb78] sm:$0xff]
        %v1203 = vld [vmem:[#allocation12 + $0xb80] sm:$0xff]
        %v1204 = vld [vmem:[#allocation12 + $0xb88] sm:$0xff]
        %v1205 = vld [vmem:[#allocation12 + $0xb90] sm:$0xff]
        %v1206 = vld [vmem:[#allocation12 + $0xb98] sm:$0xff]
        %v1207 = vld [vmem:[#allocation12 + $0xba0] sm:$0xff]
        %v1208 = vld [vmem:[#allocation12 + $0xba8] sm:$0xff]
        %v1209 = vld [vmem:[#allocation12 + $0xbb0] sm:$0xff]
        %v1210 = vld [vmem:[#allocation12 + $0xbb8] sm:$0xff]
        %v1211 = vld [vmem:[#allocation12 + $0xbc0] sm:$0xff]
        %v1212 = vld [vmem:[#allocation12 + $0xbc8] sm:$0xff]
        %v1213 = vld [vmem:[#allocation12 + $0xbd0] sm:$0xff]
        %v1214 = vld [vmem:[#allocation12 + $0xbd8] sm:$0xff]
        %v1215 = vld [vmem:[#allocation12 + $0xbe0] sm:$0xff]
        %v1216 = vld [vmem:[#allocation12 + $0xbe8] sm:$0xff]
        %v1217 = vld [vmem:[#allocation12 + $0xbf0] sm:$0xff]
        %v1218 = vld [vmem:[#allocation12 + $0xbf8] sm:$0xff]
        %v1219 = vld [vmem:[#allocation12 + $0xc00] sm:$0xff]
        %v1220 = vld [vmem:[#allocation12 + $0xc08] sm:$0xff]
        %v1221 = vld [vmem:[#allocation12 + $0xc10] sm:$0xff]
        %v1222 = vld [vmem:[#allocation12 + $0xc18] sm:$0xff]
        %v1223 = vld [vmem:[#allocation12 + $0xc20] sm:$0xff]
        %v1224 = vld [vmem:[#allocation12 + $0xc28] sm:$0xff]
        %v1225 = vld [vmem:[#allocation12 + $0xc30] sm:$0xff]
        %v1226 = vld [vmem:[#allocation12 + $0xc38] sm:$0xff]
        %v1227 = vld [vmem:[#allocation12 + $0xc40] sm:$0xff]
        %v1228 = vld [vmem:[#allocation12 + $0xc48] sm:$0xff]
        %v1229 = vld [vmem:[#allocation12 + $0xc50] sm:$0xff]
        %v1230 = vld [vmem:[#allocation12 + $0xc58] sm:$0xff]
        %v1231 = vld [vmem:[#allocation12 + $0xc60] sm:$0xff]
        %v1232 = vld [vmem:[#allocation12 + $0xc68] sm:$0xff]
        %v1233 = vld [vmem:[#allocation12 + $0xc70] sm:$0xff]
        %v1234 = vld [vmem:[#allocation12 + $0xc78] sm:$0xff]
        %v1235 = vld [vmem:[#allocation12 + $0xc80] sm:$0xff]
        %v1236 = vld [vmem:[#allocation12 + $0xc88] sm:$0xff]
        %v1237 = vld [vmem:[#allocation12 + $0xc90] sm:$0xff]
        %v1238 = vld [vmem:[#allocation12 + $0xc98] sm:$0xff]
        %v1239 = vld [vmem:[#allocation12 + $0xca0] sm:$0xff]
        %v1240 = vld [vmem:[#allocation12 + $0xca8] sm:$0xff]
        %v1241 = vld [vmem:[#allocation12 + $0xcb0] sm:$0xff]
        %v1242 = vld [vmem:[#allocation12 + $0xcb8] sm:$0xff]
        %v1243 = vld [vmem:[#allocation12 + $0xcc0] sm:$0xff]
        %v1244 = vld [vmem:[#allocation12 + $0xcc8] sm:$0xff]
        %v1245 = vld [vmem:[#allocation12 + $0xcd0] sm:$0xff]
        %v1246 = vld [vmem:[#allocation12 + $0xcd8] sm:$0xff]
        %v1247 = vld [vmem:[#allocation12 + $0xce0] sm:$0xff]
        %v1248 = vld [vmem:[#allocation12 + $0xce8] sm:$0xff]
        %v1249 = vld [vmem:[#allocation12 + $0xcf0] sm:$0xff]
        %v1250 = vld [vmem:[#allocation12 + $0xcf8] sm:$0xff]
        %v1251 = vld [vmem:[#allocation12 + $0xd00] sm:$0xff]
        %v1252 = vld [vmem:[#allocation12 + $0xd08] sm:$0xff]
        %v1253 = vld [vmem:[#allocation12 + $0xd10] sm:$0xff]
        %v1254 = vld [vmem:[#allocation12 + $0xd18] sm:$0xff]
        %v1255 = vld [vmem:[#allocation12 + $0xd20] sm:$0xff]
        %v1256 = vld [vmem:[#allocation12 + $0xd28] sm:$0xff]
        %v1257 = vld [vmem:[#allocation12 + $0xd30] sm:$0xff]
        %v1258 = vld [vmem:[#allocation12 + $0xd38] sm:$0xff]
        %v1259 = vld [vmem:[#allocation12 + $0xd40] sm:$0xff]
        %v1260 = vld [vmem:[#allocation12 + $0xd48] sm:$0xff]
        %v1261 = vld [vmem:[#allocation12 + $0xd50] sm:$0xff]
        %v1262 = vld [vmem:[#allocation12 + $0xd58] sm:$0xff]
        %v1263 = vld [vmem:[#allocation12 + $0xd60] sm:$0xff]
        %v1264 = vld [vmem:[#allocation12 + $0xd68] sm:$0xff]
        %v1265 = vld [vmem:[#allocation12 + $0xd70] sm:$0xff]
        %v1266 = vld [vmem:[#allocation12 + $0xd78] sm:$0xff]
        %v1267 = vld [vmem:[#allocation12 + $0xd80] sm:$0xff]
        %v1268 = vld [vmem:[#allocation12 + $0xd88] sm:$0xff]
        %v1269 = vld [vmem:[#allocation12 + $0xd90] sm:$0xff]
        %v1270 = vld [vmem:[#allocation12 + $0xd98] sm:$0xff]
        %v1271 = vld [vmem:[#allocation12 + $0xda0] sm:$0xff]
        %v1272 = vld [vmem:[#allocation12 + $0xda8] sm:$0xff]
        %v1273 = vld [vmem:[#allocation12 + $0xdb0] sm:$0xff]
        %v1274 = vld [vmem:[#allocation12 + $0xdb8] sm:$0xff]
        %v1275 = vld [vmem:[#allocation12 + $0xdc0] sm:$0xff]
        %v1276 = vld [vmem:[#allocation12 + $0xdc8] sm:$0xff]
        %v1277 = vld [vmem:[#allocation12 + $0xdd0] sm:$0xff]
        %v1278 = vld [vmem:[#allocation12 + $0xdd8] sm:$0xff]
        %v1279 = vld [vmem:[#allocation12 + $0xde0] sm:$0xff]
        %v1280 = vld [vmem:[#allocation12 + $0xde8] sm:$0xff]
        %v1281 = vld [vmem:[#allocation12 + $0xdf0] sm:$0xff]
        %v1282 = vld [vmem:[#allocation12 + $0xdf8] sm:$0xff]
        %v1283 = vld [vmem:[#allocation12 + $0xe00] sm:$0xff]
        %v1284 = vld [vmem:[#allocation12 + $0xe08] sm:$0xff]
        %v1285 = vld [vmem:[#allocation12 + $0xe10] sm:$0xff]
        %v1286 = vld [vmem:[#allocation12 + $0xe18] sm:$0xff]
        %v1287 = vld [vmem:[#allocation12 + $0xe20] sm:$0xff]
        %v1288 = vld [vmem:[#allocation12 + $0xe28] sm:$0xff]
        %v1289 = vld [vmem:[#allocation12 + $0xe30] sm:$0xff]
        %v1290 = vld [vmem:[#allocation12 + $0xe38] sm:$0xff]
        %v1291 = vld [vmem:[#allocation12 + $0xe40] sm:$0xff]
        %v1292 = vld [vmem:[#allocation12 + $0xe48] sm:$0xff]
        %v1293 = vld [vmem:[#allocation12 + $0xe50] sm:$0xff]
        %v1294 = vld [vmem:[#allocation12 + $0xe58] sm:$0xff]
        %v1295 = vld [vmem:[#allocation12 + $0xe60] sm:$0xff]
        %v1296 = vld [vmem:[#allocation12 + $0xe68] sm:$0xff]
        %v1297 = vld [vmem:[#allocation12 + $0xe70] sm:$0xff]
        %v1298 = vld [vmem:[#allocation12 + $0xe78] sm:$0xff]
        %v1299 = vld [vmem:[#allocation12 + $0xe80] sm:$0xff]
        %v1300 = vld [vmem:[#allocation12 + $0xe88] sm:$0xff]
        %v1301 = vld [vmem:[#allocation12 + $0xe90] sm:$0xff]
        %v1302 = vld [vmem:[#allocation12 + $0xe98] sm:$0xff]
        %v1303 = vld [vmem:[#allocation12 + $0xea0] sm:$0xff]
        %v1304 = vld [vmem:[#allocation12 + $0xea8] sm:$0xff]
        %v1305 = vld [vmem:[#allocation12 + $0xeb0] sm:$0xff]
        %v1306 = vld [vmem:[#allocation12 + $0xeb8] sm:$0xff]
        %v1307 = vld [vmem:[#allocation12 + $0xec0] sm:$0xff]
        %v1308 = vld [vmem:[#allocation12 + $0xec8] sm:$0xff]
        %v1309 = vld [vmem:[#allocation12 + $0xed0] sm:$0xff]
        %v1310 = vld [vmem:[#allocation12 + $0xed8] sm:$0xff]
        %v1311 = vld [vmem:[#allocation12 + $0xee0] sm:$0xff]
        %v1312 = vld [vmem:[#allocation12 + $0xee8] sm:$0xff]
        %v1313 = vld [vmem:[#allocation12 + $0xef0] sm:$0xff]
        %v1314 = vld [vmem:[#allocation12 + $0xef8] sm:$0xff]
        %v1315 = vld [vmem:[#allocation12 + $0xf00] sm:$0xff]
        %v1316 = vld [vmem:[#allocation12 + $0xf08] sm:$0xff]
        %v1317 = vld [vmem:[#allocation12 + $0xf10] sm:$0xff]
        %v1318 = vld [vmem:[#allocation12 + $0xf18] sm:$0xff]
        %v1319 = vld [vmem:[#allocation12 + $0xf20] sm:$0xff]
        %v1320 = vld [vmem:[#allocation12 + $0xf28] sm:$0xff]
        %v1321 = vld [vmem:[#allocation12 + $0xf30] sm:$0xff]
        %v1322 = vld [vmem:[#allocation12 + $0xf38] sm:$0xff]
        %v1323 = vld [vmem:[#allocation12 + $0xf40] sm:$0xff]
        %v1324 = vld [vmem:[#allocation12 + $0xf48] sm:$0xff]
        %v1325 = vld [vmem:[#allocation12 + $0xf50] sm:$0xff]
        %v1326 = vld [vmem:[#allocation12 + $0xf58] sm:$0xff]
        %v1327 = vld [vmem:[#allocation12 + $0xf60] sm:$0xff]
        %v1328 = vld [vmem:[#allocation12 + $0xf68] sm:$0xff]
        %v1329 = vld [vmem:[#allocation12 + $0xf70] sm:$0xff]
        %v1330 = vld [vmem:[#allocation12 + $0xf78] sm:$0xff]
        %v1331 = vld [vmem:[#allocation12 + $0xf80] sm:$0xff]
        %v1332 = vld [vmem:[#allocation12 + $0xf88] sm:$0xff]
        %v1333 = vld [vmem:[#allocation12 + $0xf90] sm:$0xff]
        %v1334 = vld [vmem:[#allocation12 + $0xf98] sm:$0xff]
        %v1335 = vld [vmem:[#allocation12 + $0xfa0] sm:$0xff]
        %v1336 = vld [vmem:[#allocation12 + $0xfa8] sm:$0xff]
        %v1337 = vld [vmem:[#allocation12 + $0xfb0] sm:$0xff]
        %v1338 = vld [vmem:[#allocation12 + $0xfb8] sm:$0xff]
        %v1339 = vld [vmem:[#allocation12 + $0xfc0] sm:$0xff]
        %v1340 = vld [vmem:[#allocation12 + $0xfc8] sm:$0xff]
        %v1341 = vld [vmem:[#allocation12 + $0xfd0] sm:$0xff]
        %v1342 = vld [vmem:[#allocation12 + $0xfd8] sm:$0xff]
        %v1343 = vld [vmem:[#allocation12 + $0xfe0] sm:$0xff]
        %v1344 = vld [vmem:[#allocation12 + $0xfe8] sm:$0xff]
        %v1345 = vld [vmem:[#allocation12 + $0xff0] sm:$0xff]
        %v1346 = vld [vmem:[#allocation12 + $0xff8] sm:$0xff]
        %v1347 = vld [vmem:[#allocation12 + $0x1000] sm:$0xff]
        %v1348 = vld [vmem:[#allocation12 + $0x1008] sm:$0xff]
        %v1349 = vld [vmem:[#allocation12 + $0x1010] sm:$0xff]
        %v1350 = vld [vmem:[#allocation12 + $0x1018] sm:$0xff]
        %v1351 = vld [vmem:[#allocation12 + $0x1020] sm:$0xff]
        %v1352 = vld [vmem:[#allocation12 + $0x1028] sm:$0xff]
        %v1353 = vld [vmem:[#allocation12 + $0x1030] sm:$0xff]
        %v1354 = vld [vmem:[#allocation12 + $0x1038] sm:$0xff]
        %v1355 = vld [vmem:[#allocation12 + $0x1040] sm:$0xff]
        %v1356 = vld [vmem:[#allocation12 + $0x1048] sm:$0xff]
        %v1357 = vld [vmem:[#allocation12 + $0x1050] sm:$0xff]
        %v1358 = vld [vmem:[#allocation12 + $0x1058] sm:$0xff]
        %v1359 = vld [vmem:[#allocation12 + $0x1060] sm:$0xff]
        %v1360 = vld [vmem:[#allocation12 + $0x1068] sm:$0xff]
        %v1361 = vld [vmem:[#allocation12 + $0x1070] sm:$0xff]
        %v1362 = vld [vmem:[#allocation12 + $0x1078] sm:$0xff]
        %v1363 = vld [vmem:[#allocation12 + $0x1080] sm:$0xff]
        %v1364 = vld [vmem:[#allocation12 + $0x1088] sm:$0xff]
        %v1365 = vld [vmem:[#allocation12 + $0x1090] sm:$0xff]
        %v1366 = vld [vmem:[#allocation12 + $0x1098] sm:$0xff]
        %v1367 = vld [vmem:[#allocation12 + $0x10a0] sm:$0xff]
        %v1368 = vld [vmem:[#allocation12 + $0x10a8] sm:$0xff]
        %v1369 = vld [vmem:[#allocation12 + $0x10b0] sm:$0xff]
        %v1370 = vld [vmem:[#allocation12 + $0x10b8] sm:$0xff]
        %v1371 = vld [vmem:[#allocation12 + $0x10c0] sm:$0xff]
        %v1372 = vld [vmem:[#allocation12 + $0x10c8] sm:$0xff]
        %v1373 = vld [vmem:[#allocation12 + $0x10d0] sm:$0xff]
        %v1374 = vld [vmem:[#allocation12 + $0x10d8] sm:$0xff]
        %v1375 = vld [vmem:[#allocation12 + $0x10e0] sm:$0xff]
        %v1376 = vld [vmem:[#allocation12 + $0x10e8] sm:$0xff]
        %v1377 = vld [vmem:[#allocation12 + $0x10f0] sm:$0xff]
        %v1378 = vld [vmem:[#allocation12 + $0x10f8] sm:$0xff]
        %v1379 = vld [vmem:[#allocation12 + $0x1100] sm:$0xff]
        %v1380 = vld [vmem:[#allocation12 + $0x1108] sm:$0xff]
        %v1381 = vld [vmem:[#allocation12 + $0x1110] sm:$0xff]
        %v1382 = vld [vmem:[#allocation12 + $0x1118] sm:$0xff]
        %v1383 = vld [vmem:[#allocation12 + $0x1120] sm:$0xff]
        %v1384 = vld [vmem:[#allocation12 + $0x1128] sm:$0xff]
        %v1385 = vld [vmem:[#allocation12 + $0x1130] sm:$0xff]
        %v1386 = vld [vmem:[#allocation12 + $0x1138] sm:$0xff]
        %v1387 = vld [vmem:[#allocation12 + $0x1140] sm:$0xff]
        %v1388 = vld [vmem:[#allocation12 + $0x1148] sm:$0xff]
        %v1389 = vld [vmem:[#allocation12 + $0x1150] sm:$0xff]
        %v1390 = vld [vmem:[#allocation12 + $0x1158] sm:$0xff]
        %v1391 = vld [vmem:[#allocation12 + $0x1160] sm:$0xff]
        %v1392 = vld [vmem:[#allocation12 + $0x1168] sm:$0xff]
        %v1393 = vld [vmem:[#allocation12 + $0x1170] sm:$0xff]
        %v1394 = vld [vmem:[#allocation12 + $0x1178] sm:$0xff]
        %v1395 = vld [vmem:[#allocation12 + $0x1180] sm:$0xff]
        %v1396 = vld [vmem:[#allocation12 + $0x1188] sm:$0xff]
        %v1397 = vld [vmem:[#allocation12 + $0x1190] sm:$0xff]
        %v1398 = vld [vmem:[#allocation12 + $0x1198] sm:$0xff]
        %v1399 = vld [vmem:[#allocation12 + $0x11a0] sm:$0xff]
        %v1400 = vld [vmem:[#allocation12 + $0x11a8] sm:$0xff]
        %v1401 = vld [vmem:[#allocation12 + $0x11b0] sm:$0xff]
        %v1402 = vld [vmem:[#allocation12 + $0x11b8] sm:$0xff]
        %v1403 = vld [vmem:[#allocation12 + $0x11c0] sm:$0xff]
        %v1404 = vld [vmem:[#allocation12 + $0x11c8] sm:$0xff]
        %v1405 = vld [vmem:[#allocation12 + $0x11d0] sm:$0xff]
        %v1406 = vld [vmem:[#allocation12 + $0x11d8] sm:$0xff]
        %v1407 = vld [vmem:[#allocation12 + $0x11e0] sm:$0xff]
        %v1408 = vld [vmem:[#allocation12 + $0x11e8] sm:$0xff]
        %v1409 = vld [vmem:[#allocation12 + $0x11f0] sm:$0xff]
        %v1410 = vld [vmem:[#allocation12 + $0x11f8] sm:$0xff]
        %v1411 = vld [vmem:[#allocation12 + $0x1200] sm:$0xff]
        %v1412 = vld [vmem:[#allocation12 + $0x1208] sm:$0xff]
        %v1413 = vld [vmem:[#allocation12 + $0x1210] sm:$0xff]
        %v1414 = vld [vmem:[#allocation12 + $0x1218] sm:$0xff]
        %v1415 = vld [vmem:[#allocation12 + $0x1220] sm:$0xff]
        %v1416 = vld [vmem:[#allocation12 + $0x1228] sm:$0xff]
        %v1417 = vld [vmem:[#allocation12 + $0x1230] sm:$0xff]
        %v1418 = vld [vmem:[#allocation12 + $0x1238] sm:$0xff]
        %v1419 = vld [vmem:[#allocation12 + $0x1240] sm:$0xff]
        %v1420 = vld [vmem:[#allocation12 + $0x1248] sm:$0xff]
        %v1421 = vld [vmem:[#allocation12 + $0x1250] sm:$0xff]
        %v1422 = vld [vmem:[#allocation12 + $0x1258] sm:$0xff]
        %v1423 = vld [vmem:[#allocation12 + $0x1260] sm:$0xff]
        %v1424 = vld [vmem:[#allocation12 + $0x1268] sm:$0xff]
        %v1425 = vld [vmem:[#allocation12 + $0x1270] sm:$0xff]
        %v1426 = vld [vmem:[#allocation12 + $0x1278] sm:$0xff]
        %v1427 = vld [vmem:[#allocation12 + $0x1280] sm:$0xff]
        %v1428 = vld [vmem:[#allocation12 + $0x1288] sm:$0xff]
        %v1429 = vld [vmem:[#allocation12 + $0x1290] sm:$0xff]
        %v1430 = vld [vmem:[#allocation12 + $0x1298] sm:$0xff]
        %v1431 = vld [vmem:[#allocation12 + $0x12a0] sm:$0xff]
        %v1432 = vld [vmem:[#allocation12 + $0x12a8] sm:$0xff]
        %v1433 = vld [vmem:[#allocation12 + $0x12b0] sm:$0xff]
        %v1434 = vld [vmem:[#allocation12 + $0x12b8] sm:$0xff]
        %v1435 = vld [vmem:[#allocation14] sm:$0xf]
        %v1437 = vlaneseq
        %v1438 = vshrl.u32 %v1437, 7
        %v1439 = vsub.s32 0, %v1438
        %v1440 = vrot.slane %v1435, %v1439
        %v1441 = vlaneseq
        %v1442 = vshrl.u32 %v1441, 7
        %v1443 = vsub.s32 1, %v1442
        %v1444 = vrot.slane %v1435, %v1443
        %v1445 = vlaneseq
        %v1446 = vshrl.u32 %v1445, 7
        %v1447 = vsub.s32 2, %v1446
        %v1448 = vrot.slane %v1435, %v1447
        %v1449 = vlaneseq
        %v1450 = vshrl.u32 %v1449, 7
        %v1451 = vsub.s32 3, %v1450
        %v1452 = vrot.slane %v1435, %v1451
        %v1458 = vsel %vm658, %v824, 0
        %v1461 = vsel %vm658, %v834, 0
        %1463 = vmatprep.subr.mxu0 %v836
        %1464 = vmatpush1.msra.mxu0 %v835
        %1465 = vmatprep.subr.mxu0 %v840
        %1466 = vmatpush1.msra.mxu0 %v839
        %1467 = vmatprep.subr.mxu0 %v844
        %1468 = vmatpush1.msra.mxu0 %v843
        %1469 = vmatprep.subr.mxu0 %v848
        %1470 = vmatpush1.msra.mxu0 %v847
        %1471 = vmatprep.subr.mxu0 %v852
        %1472 = vmatpush1.msra.mxu0 %v851
        %1473 = vmatprep.subr.mxu0 %v856
        %1474 = vmatpush1.msra.mxu0 %v855
        %1475 = vmatprep.subr.mxu0 %v860
        %1476 = vmatpush1.msra.mxu0 %v859
        %1477 = vmatprep.subr.mxu0 %v864
        %1478 = vmatpush1.msra.mxu0 %v863
        %1479 = vmatprep.subr.mxu0 %v868
        %1480 = vmatpush1.msra.mxu0 %v867
        %1481 = vmatprep.subr.mxu0 %v872
        %1482 = vmatpush1.msra.mxu0 %v871
        %1483 = vmatprep.subr.mxu0 %v876
        %1484 = vmatpush1.msra.mxu0 %v875
        %1485 = vmatprep.subr.mxu0 %v880
        %1486 = vmatpush1.msra.mxu0 %v879
        %1487 = vmatprep.subr.mxu0 %v884
        %1488 = vmatpush1.msra.mxu0 %v883
        %1489 = vmatprep.subr.mxu0 %v888
        %1490 = vmatpush1.msra.mxu0 %v887
        %1491 = vmatprep.subr.mxu0 %v892
        %1492 = vmatpush1.msra.mxu0 %v891
        %1493 = vmatprep.subr.mxu0 %v896
        %1494 = vmatpush1.msra.mxu0 %v895
        %1495 = vmatprep.subr.mxu0 %v900
        %1496 = vmatpush1.msra.mxu0 %v899
        %1497 = vmatprep.subr.mxu0 %v904
        %1498 = vmatpush1.msra.mxu0 %v903
        %1499 = vmatprep.subr.mxu0 %v908
        %1500 = vmatpush1.msra.mxu0 %v907
        %1501 = vmatprep.subr.mxu0 %v912
        %1502 = vmatpush1.msra.mxu0 %v911
        %1503 = vmatprep.subr.mxu0 %v916
        %1504 = vmatpush1.msra.mxu0 %v915
        %1505 = vmatprep.subr.mxu0 %v920
        %1506 = vmatpush1.msra.mxu0 %v919
        %1507 = vmatprep.subr.mxu0 %v924
        %1508 = vmatpush1.msra.mxu0 %v923
        %1509 = vmatprep.subr.mxu0 %v928
        %1510 = vmatpush1.msra.mxu0 %v927
        %1511 = vmatprep.subr.mxu0 %v932
        %1512 = vmatpush1.msra.mxu0 %v931
        %1513 = vmatprep.subr.mxu0 %v936
        %1514 = vmatpush1.msra.mxu0 %v935
        %1515 = vmatprep.subr.mxu0 %v940
        %1516 = vmatpush1.msra.mxu0 %v939
        %1517 = vmatprep.subr.mxu0 %v944
        %1518 = vmatpush1.msra.mxu0 %v943
        %1519 = vmatprep.subr.mxu0 %v948
        %1520 = vmatpush1.msra.mxu0 %v947
        %1521 = vmatprep.subr.mxu0 %v952
        %1522 = vmatpush1.msra.mxu0 %v951
        %1523 = vmatprep.subr.mxu0 %v956
        %1524 = vmatpush1.msra.mxu0 %v955
        %1525 = vmatprep.subr.mxu0 %v960
        %1526 = vmatpush1.msra.mxu0 %v959
        %1527 = vmatprep.mubr.f32.mxu0 %v816
        %1528 = vmatmul.mubr.f32.gmra.mrb[0].mxu0 %v815
        %v1529 = vpop.f32.mrb[0].mxu0
        %v1530 = vadd.f32 %v1440, %v1529
        %v1531 = vpop.f32.mrb[0].mxu0
        %v1532 = vadd.f32 %v1444, %v1531
        %1533 = vmatprep.mubr.f32.mxu0 %v826
        %1534 = vmatmul.mubr.f32.gmra.mrb[0].mxu0 %v825
        %v1535 = vpop.f32.mrb[0].mxu0
        %v1536 = vadd.f32 %v1440, %v1535
        %v1537 = vpop.f32.mrb[0].mxu0
        %v1538 = vadd.f32 %v1444, %v1537
        %1539 = vdwg.mxu0
        %1540 = vmatprep.subr.mxu0 %v964
        %1541 = vmatpush1.msra.mxu0 %v963
        %1542 = vmatprep.subr.mxu0 %v968
        %1543 = vmatpush1.msra.mxu0 %v967
        %1544 = vmatprep.subr.mxu0 %v972
        %1545 = vmatpush1.msra.mxu0 %v971
        %1546 = vmatprep.subr.mxu0 %v976
        %1547 = vmatpush1.msra.mxu0 %v975
        %1548 = vmatprep.subr.mxu0 %v980
        %1549 = vmatpush1.msra.mxu0 %v979
        %1550 = vmatprep.subr.mxu0 %v984
        %1551 = vmatpush1.msra.mxu0 %v983
        %1552 = vmatprep.subr.mxu0 %v988
        %1553 = vmatpush1.msra.mxu0 %v987
        %1554 = vmatprep.subr.mxu0 %v992
        %1555 = vmatpush1.msra.mxu0 %v991
        %1556 = vmatprep.subr.mxu0 %v996
        %1557 = vmatpush1.msra.mxu0 %v995
        %1558 = vmatprep.subr.mxu0 %v1000
        %1559 = vmatpush1.msra.mxu0 %v999
        %1560 = vmatprep.subr.mxu0 %v1004
        %1561 = vmatpush1.msra.mxu0 %v1003
        %1562 = vmatprep.subr.mxu0 %v1008
        %1563 = vmatpush1.msra.mxu0 %v1007
        %1564 = vmatprep.subr.mxu0 %v1012
        %1565 = vmatpush1.msra.mxu0 %v1011
        %1566 = vmatprep.subr.mxu0 %v1016
        %1567 = vmatpush1.msra.mxu0 %v1015
        %1568 = vmatprep.subr.mxu0 %v1020
        %1569 = vmatpush1.msra.mxu0 %v1019
        %1570 = vmatprep.subr.mxu0 %v1024
        %1571 = vmatpush1.msra.mxu0 %v1023
        %1572 = vmatprep.subr.mxu0 %v1028
        %1573 = vmatpush1.msra.mxu0 %v1027
        %1574 = vmatprep.subr.mxu0 %v1032
        %1575 = vmatpush1.msra.mxu0 %v1031
        %1576 = vmatprep.subr.mxu0 %v1036
        %1577 = vmatpush1.msra.mxu0 %v1035
        %1578 = vmatprep.subr.mxu0 %v1040
        %1579 = vmatpush1.msra.mxu0 %v1039
        %1580 = vmatprep.subr.mxu0 %v1044
        %1581 = vmatpush1.msra.mxu0 %v1043
        %1582 = vmatprep.subr.mxu0 %v1048
        %1583 = vmatpush1.msra.mxu0 %v1047
        %1584 = vmatprep.subr.mxu0 %v1052
        %1585 = vmatpush1.msra.mxu0 %v1051
        %1586 = vmatprep.subr.mxu0 %v1056
        %1587 = vmatpush1.msra.mxu0 %v1055
        %1588 = vmatprep.subr.mxu0 %v1060
        %1589 = vmatpush1.msra.mxu0 %v1059
        %1590 = vmatprep.subr.mxu0 %v1064
        %1591 = vmatpush1.msra.mxu0 %v1063
        %1592 = vmatprep.subr.mxu0 %v1068
        %1593 = vmatpush1.msra.mxu0 %v1067
        %1594 = vmatprep.subr.mxu0 %v1072
        %1595 = vmatpush1.msra.mxu0 %v1071
        %1596 = vmatprep.subr.mxu0 %v1076
        %1597 = vmatpush1.msra.mxu0 %v1075
        %1598 = vmatprep.subr.mxu0 %v1080
        %1599 = vmatpush1.msra.mxu0 %v1079
        %1600 = vmatprep.subr.mxu0 %v1084
        %1601 = vmatpush1.msra.mxu0 %v1083
        %1602 = vmatprep.subr.mxu0 %v1088
        %1603 = vmatpush1.msra.mxu0 %v1087
        %1604 = vmatprep.mubr.f32.mxu0 %v818
        %1605 = vmatmul.mubr.f32.gmra.mrb[0].mxu0 %v817
        %v1606 = vpop.f32.mrb[0].mxu0
        %v1607 = vadd.f32 %v1530, %v1606
        %v1608 = vpop.f32.mrb[0].mxu0
        %v1609 = vadd.f32 %v1532, %v1608
        %1610 = vmatprep.mubr.f32.mxu0 %v828
        %1611 = vmatmul.mubr.f32.gmra.mrb[0].mxu0 %v827
        %v1612 = vpop.f32.mrb[0].mxu0
        %v1613 = vadd.f32 %v1536, %v1612
        %v1614 = vpop.f32.mrb[0].mxu0
        %v1615 = vadd.f32 %v1538, %v1614
        %1616 = vdwg.mxu0
        %1617 = vmatprep.subr.mxu0 %v1092
        %1618 = vmatpush1.msra.mxu0 %v1091
        %1619 = vmatprep.subr.mxu0 %v1096
        %1620 = vmatpush1.msra.mxu0 %v1095
        %1621 = vmatprep.subr.mxu0 %v1100
        %1622 = vmatpush1.msra.mxu0 %v1099
        %1623 = vmatprep.subr.mxu0 %v1104
        %1624 = vmatpush1.msra.mxu0 %v1103
        %1625 = vmatprep.subr.mxu0 %v1108
        %1626 = vmatpush1.msra.mxu0 %v1107
        %1627 = vmatprep.subr.mxu0 %v1112
        %1628 = vmatpush1.msra.mxu0 %v1111
        %1629 = vmatprep.subr.mxu0 %v1116
        %1630 = vmatpush1.msra.mxu0 %v1115
        %1631 = vmatprep.subr.mxu0 %v1120
        %1632 = vmatpush1.msra.mxu0 %v1119
        %1633 = vmatprep.subr.mxu0 %v1124
        %1634 = vmatpush1.msra.mxu0 %v1123
        %1635 = vmatprep.subr.mxu0 %v1128
        %1636 = vmatpush1.msra.mxu0 %v1127
        %1637 = vmatprep.subr.mxu0 %v1132
        %1638 = vmatpush1.msra.mxu0 %v1131
        %1639 = vmatprep.subr.mxu0 %v1136
        %1640 = vmatpush1.msra.mxu0 %v1135
        %1641 = vmatprep.subr.mxu0 %v1140
        %1642 = vmatpush1.msra.mxu0 %v1139
        %1643 = vmatprep.subr.mxu0 %v1144
        %1644 = vmatpush1.msra.mxu0 %v1143
        %1645 = vmatprep.subr.mxu0 %v1148
        %1646 = vmatpush1.msra.mxu0 %v1147
        %1647 = vmatprep.subr.mxu0 %v1152
        %1648 = vmatpush1.msra.mxu0 %v1151
        %1649 = vmatprep.subr.mxu0 %v1156
        %1650 = vmatpush1.msra.mxu0 %v1155
        %1651 = vmatprep.subr.mxu0 %v1160
        %1652 = vmatpush1.msra.mxu0 %v1159
        %1653 = vmatprep.subr.mxu0 %v1164
        %1654 = vmatpush1.msra.mxu0 %v1163
        %1655 = vmatprep.subr.mxu0 %v1168
        %1656 = vmatpush1.msra.mxu0 %v1167
        %1657 = vmatprep.subr.mxu0 %v1172
        %1658 = vmatpush1.msra.mxu0 %v1171
        %1659 = vmatprep.subr.mxu0 %v1176
        %1660 = vmatpush1.msra.mxu0 %v1175
        %1661 = vmatprep.subr.mxu0 %v1180
        %1662 = vmatpush1.msra.mxu0 %v1179
        %1663 = vmatprep.subr.mxu0 %v1184
        %1664 = vmatpush1.msra.mxu0 %v1183
        %1665 = vmatprep.subr.mxu0 %v1188
        %1666 = vmatpush1.msra.mxu0 %v1187
        %1667 = vmatprep.subr.mxu0 %v1192
        %1668 = vmatpush1.msra.mxu0 %v1191
        %1669 = vmatprep.subr.mxu0 %v1196
        %1670 = vmatpush1.msra.mxu0 %v1195
        %1671 = vmatprep.subr.mxu0 %v1200
        %1672 = vmatpush1.msra.mxu0 %v1199
        %1673 = vmatprep.subr.mxu0 %v1204
        %1674 = vmatpush1.msra.mxu0 %v1203
        %1675 = vmatprep.subr.mxu0 %v1208
        %1676 = vmatpush1.msra.mxu0 %v1207
        %1677 = vmatprep.subr.mxu0 %v1212
        %1678 = vmatpush1.msra.mxu0 %v1211
        %1679 = vmatprep.subr.mxu0 %v1216
        %1680 = vmatpush1.msra.mxu0 %v1215
        %1681 = vmatprep.mubr.f32.mxu0 %v820
        %1682 = vmatmul.mubr.f32.gmra.mrb[0].mxu0 %v819
        %v1683 = vpop.f32.mrb[0].mxu0
        %v1684 = vadd.f32 %v1607, %v1683
        %v1685 = vpop.f32.mrb[0].mxu0
        %v1686 = vadd.f32 %v1609, %v1685
        %1687 = vmatprep.mubr.f32.mxu0 %v830
        %1688 = vmatmul.mubr.f32.gmra.mrb[0].mxu0 %v829
        %v1689 = vpop.f32.mrb[0].mxu0
        %v1690 = vadd.f32 %v1613, %v1689
        %v1691 = vpop.f32.mrb[0].mxu0
        %v1692 = vadd.f32 %v1615, %v1691
        %1693 = vdwg.mxu0
        %1694 = vmatprep.subr.mxu0 %v1220
        %1695 = vmatpush1.msra.mxu0 %v1219
        %1696 = vmatprep.subr.mxu0 %v1224
        %1697 = vmatpush1.msra.mxu0 %v1223
        %1698 = vmatprep.subr.mxu0 %v1228
        %1699 = vmatpush1.msra.mxu0 %v1227
        %1700 = vmatprep.subr.mxu0 %v1232
        %1701 = vmatpush1.msra.mxu0 %v1231
        %1702 = vmatprep.subr.mxu0 %v1236
        %1703 = vmatpush1.msra.mxu0 %v1235
        %1704 = vmatprep.subr.mxu0 %v1240
        %1705 = vmatpush1.msra.mxu0 %v1239
        %1706 = vmatprep.subr.mxu0 %v1244
        %1707 = vmatpush1.msra.mxu0 %v1243
        %1708 = vmatprep.subr.mxu0 %v1248
        %1709 = vmatpush1.msra.mxu0 %v1247
        %1710 = vmatprep.subr.mxu0 %v1252
        %1711 = vmatpush1.msra.mxu0 %v1251
        %1712 = vmatprep.subr.mxu0 %v1256
        %1713 = vmatpush1.msra.mxu0 %v1255
        %1714 = vmatprep.subr.mxu0 %v1260
        %1715 = vmatpush1.msra.mxu0 %v1259
        %1716 = vmatprep.subr.mxu0 %v1264
        %1717 = vmatpush1.msra.mxu0 %v1263
        %1718 = vmatprep.subr.mxu0 %v1268
        %1719 = vmatpush1.msra.mxu0 %v1267
        %1720 = vmatprep.subr.mxu0 %v1272
        %1721 = vmatpush1.msra.mxu0 %v1271
        %1722 = vmatprep.subr.mxu0 %v1276
        %1723 = vmatpush1.msra.mxu0 %v1275
        %1724 = vmatprep.subr.mxu0 %v1280
        %1725 = vmatpush1.msra.mxu0 %v1279
        %1726 = vmatprep.subr.mxu0 %v1284
        %1727 = vmatpush1.msra.mxu0 %v1283
        %1728 = vmatprep.subr.mxu0 %v1288
        %1729 = vmatpush1.msra.mxu0 %v1287
        %1730 = vmatprep.subr.mxu0 %v1292
        %1731 = vmatpush1.msra.mxu0 %v1291
        %1732 = vmatprep.subr.mxu0 %v1296
        %1733 = vmatpush1.msra.mxu0 %v1295
        %1734 = vmatprep.subr.mxu0 %v1300
        %1735 = vmatpush1.msra.mxu0 %v1299
        %1736 = vmatprep.subr.mxu0 %v1304
        %1737 = vmatpush1.msra.mxu0 %v1303
        %1738 = vmatprep.subr.mxu0 %v1308
        %1739 = vmatpush1.msra.mxu0 %v1307
        %1740 = vmatprep.subr.mxu0 %v1312
        %1741 = vmatpush1.msra.mxu0 %v1311
        %1742 = vmatprep.subr.mxu0 %v1316
        %1743 = vmatpush1.msra.mxu0 %v1315
        %1744 = vmatprep.subr.mxu0 %v1320
        %1745 = vmatpush1.msra.mxu0 %v1319
        %1746 = vmatprep.subr.mxu0 %v1324
        %1747 = vmatpush1.msra.mxu0 %v1323
        %1748 = vmatprep.subr.mxu0 %v1328
        %1749 = vmatpush1.msra.mxu0 %v1327
        %1750 = vmatprep.subr.mxu0 %v1332
        %1751 = vmatpush1.msra.mxu0 %v1331
        %1752 = vmatprep.subr.mxu0 %v1336
        %1753 = vmatpush1.msra.mxu0 %v1335
        %1754 = vmatprep.subr.mxu0 %v1340
        %1755 = vmatpush1.msra.mxu0 %v1339
        %1756 = vmatprep.subr.mxu0 %v1344
        %1757 = vmatpush1.msra.mxu0 %v1343
        %1758 = vmatprep.mubr.f32.mxu0 %v822
        %1759 = vmatmul.mubr.f32.gmra.mrb[0].mxu0 %v821
        %v1760 = vpop.f32.mrb[0].mxu0
        %v1761 = vadd.f32 %v1684, %v1760
        %v1762 = vpop.f32.mrb[0].mxu0
        %v1763 = vadd.f32 %v1686, %v1762
        %1764 = vmatprep.mubr.f32.mxu0 %v832
        %1765 = vmatmul.mubr.f32.gmra.mrb[0].mxu0 %v831
        %v1766 = vpop.f32.mrb[0].mxu0
        %v1767 = vadd.f32 %v1690, %v1766
        %v1768 = vpop.f32.mrb[0].mxu0
        %v1769 = vadd.f32 %v1692, %v1768
        %1770 = vdwg.mxu0
        %1771 = vmatprep.subr.mxu0 %v1348
        %1772 = vmatpush1.msra.mxu0 %v1347
        %1773 = vmatprep.subr.mxu0 %v1352
        %1774 = vmatpush1.msra.mxu0 %v1351
        %1775 = vmatprep.subr.mxu0 %v1356
        %1776 = vmatpush1.msra.mxu0 %v1355
        %1777 = vmatprep.subr.mxu0 %v1360
        %1778 = vmatpush1.msra.mxu0 %v1359
        %1779 = vmatprep.subr.mxu0 %v1364
        %1780 = vmatpush1.msra.mxu0 %v1363
        %1781 = vmatprep.subr.mxu0 %v1368
        %1782 = vmatpush1.msra.mxu0 %v1367
        %1783 = vmatprep.subr.mxu0 %v1372
        %1784 = vmatpush1.msra.mxu0 %v1371
        %1785 = vmatprep.subr.mxu0 %v1376
        %1786 = vmatpush1.msra.mxu0 %v1375
        %1787 = vmatprep.subr.mxu0 %v1380
        %1788 = vmatpush1.msra.mxu0 %v1379
        %1789 = vmatprep.subr.mxu0 %v1384
        %1790 = vmatpush1.msra.mxu0 %v1383
        %1791 = vmatprep.subr.mxu0 %v1388
        %1792 = vmatpush1.msra.mxu0 %v1387
        %1793 = vmatprep.subr.mxu0 %v1392
        %1794 = vmatpush1.msra.mxu0 %v1391
        %1795 = vmatprep.subr.mxu0 %v1396
        %1796 = vmatpush1.msra.mxu0 %v1395
        %1797 = vmatprep.subr.mxu0 %v1400
        %1798 = vmatpush1.msra.mxu0 %v1399
        %1799 = vmatprep.subr.mxu0 %v1404
        %1800 = vmatpush1.msra.mxu0 %v1403
        %1801 = vmatprep.subr.mxu0 %v1408
        %1802 = vmatpush1.msra.mxu0 %v1407
        %1803 = vmatprep.subr.mxu0 %v1412
        %1804 = vmatpush1.msra.mxu0 %v1411
        %1805 = vmatprep.subr.mxu0 %v1416
        %1806 = vmatpush1.msra.mxu0 %v1415
        %1807 = vmatprep.subr.mxu0 %v1420
        %1808 = vmatpush1.msra.mxu0 %v1419
        %1809 = vmatprep.subr.mxu0 %v1424
        %1810 = vmatpush1.msra.mxu0 %v1423
        %1811 = vmatprep.subr.mxu0 %v1428
        %1812 = vmatpush1.msra.mxu0 %v1427
        %1813 = vmatprep.subr.mxu0 %v1432
        %1814 = vmatpush1.msra.mxu0 %v1431
        %1815 = vmatprep.subr.mxu0 0.0
        %1816 = vmatpush1.msra.mxu0 0.0
        %1817 = vmatprep.subr.mxu0 0.0
        %1818 = vmatpush1.msra.mxu0 0.0
        %1819 = vmatprep.subr.mxu0 0.0
        %1820 = vmatpush1.msra.mxu0 0.0
        %1821 = vmatprep.subr.mxu0 0.0
        %1822 = vmatpush1.msra.mxu0 0.0
        %1823 = vmatprep.subr.mxu0 0.0
        %1824 = vmatpush1.msra.mxu0 0.0
        %1825 = vmatprep.subr.mxu0 0.0
        %1826 = vmatpush1.msra.mxu0 0.0
        %1827 = vmatprep.subr.mxu0 0.0
        %1828 = vmatpush1.msra.mxu0 0.0
        %1829 = vmatprep.subr.mxu0 0.0
        %1830 = vmatpush1.msra.mxu0 0.0
        %1831 = vmatprep.subr.mxu0 0.0
        %1832 = vmatpush1.msra.mxu0 0.0
        %1833 = vmatprep.subr.mxu0 0.0
        %1834 = vmatpush1.msra.mxu0 0.0
        %1835 = vmatprep.mubr.f32.mxu0 %v1458
        %1836 = vmatmul.mubr.f32.gmra.mrb[0].mxu0 %v823
        %v1837 = vpop.f32.mrb[0].mxu0
        %v1838 = vadd.f32 %v1761, %v1837
        %v1839 = vpop.f32.mrb[0].mxu0
        %v1840 = vadd.f32 %v1763, %v1839
        %1841 = vmatprep.mubr.f32.mxu0 %v1461
        %1842 = vmatmul.mubr.f32.gmra.mrb[0].mxu0 %v833
        %v1843 = vpop.f32.mrb[0].mxu0
        %v1844 = vadd.f32 %v1767, %v1843
        %v1845 = vpop.f32.mrb[0].mxu0
        %v1846 = vadd.f32 %v1769, %v1845
        %1847 = vdwg.mxu0
        %1848 = vmatprep.subr.mxu0 %v838
        %1849 = vmatpush1.msra.mxu0 %v837
        %1850 = vmatprep.subr.mxu0 %v842
        %1851 = vmatpush1.msra.mxu0 %v841
        %1852 = vmatprep.subr.mxu0 %v846
        %1853 = vmatpush1.msra.mxu0 %v845
        %1854 = vmatprep.subr.mxu0 %v850
        %1855 = vmatpush1.msra.mxu0 %v849
        %1856 = vmatprep.subr.mxu0 %v854
        %1857 = vmatpush1.msra.mxu0 %v853
        %1858 = vmatprep.subr.mxu0 %v858
        %1859 = vmatpush1.msra.mxu0 %v857
        %1860 = vmatprep.subr.mxu0 %v862
        %1861 = vmatpush1.msra.mxu0 %v861
        %1862 = vmatprep.subr.mxu0 %v866
        %1863 = vmatpush1.msra.mxu0 %v865
        %1864 = vmatprep.subr.mxu0 %v870
        %1865 = vmatpush1.msra.mxu0 %v869
        %1866 = vmatprep.subr.mxu0 %v874
        %1867 = vmatpush1.msra.mxu0 %v873
        %1868 = vmatprep.subr.mxu0 %v878
        %1869 = vmatpush1.msra.mxu0 %v877
        %1870 = vmatprep.subr.mxu0 %v882
        %1871 = vmatpush1.msra.mxu0 %v881
        %1872 = vmatprep.subr.mxu0 %v886
        %1873 = vmatpush1.msra.mxu0 %v885
        %1874 = vmatprep.subr.mxu0 %v890
        %1875 = vmatpush1.msra.mxu0 %v889
        %1876 = vmatprep.subr.mxu0 %v894
        %1877 = vmatpush1.msra.mxu0 %v893
        %1878 = vmatprep.subr.mxu0 %v898
        %1879 = vmatpush1.msra.mxu0 %v897
        %1880 = vmatprep.subr.mxu0 %v902
        %1881 = vmatpush1.msra.mxu0 %v901
        %1882 = vmatprep.subr.mxu0 %v906
        %1883 = vmatpush1.msra.mxu0 %v905
        %1884 = vmatprep.subr.mxu0 %v910
        %1885 = vmatpush1.msra.mxu0 %v909
        %1886 = vmatprep.subr.mxu0 %v914
        %1887 = vmatpush1.msra.mxu0 %v913
        %1888 = vmatprep.subr.mxu0 %v918
        %1889 = vmatpush1.msra.mxu0 %v917
        %1890 = vmatprep.subr.mxu0 %v922
        %1891 = vmatpush1.msra.mxu0 %v921
        %1892 = vmatprep.subr.mxu0 %v926
        %1893 = vmatpush1.msra.mxu0 %v925
        %1894 = vmatprep.subr.mxu0 %v930
        %1895 = vmatpush1.msra.mxu0 %v929
        %1896 = vmatprep.subr.mxu0 %v934
        %1897 = vmatpush1.msra.mxu0 %v933
        %1898 = vmatprep.subr.mxu0 %v938
        %1899 = vmatpush1.msra.mxu0 %v937
        %1900 = vmatprep.subr.mxu0 %v942
        %1901 = vmatpush1.msra.mxu0 %v941
        %1902 = vmatprep.subr.mxu0 %v946
        %1903 = vmatpush1.msra.mxu0 %v945
        %1904 = vmatprep.subr.mxu0 %v950
        %1905 = vmatpush1.msra.mxu0 %v949
        %1906 = vmatprep.subr.mxu0 %v954
        %1907 = vmatpush1.msra.mxu0 %v953
        %1908 = vmatprep.subr.mxu0 %v958
        %1909 = vmatpush1.msra.mxu0 %v957
        %1910 = vmatprep.subr.mxu0 %v962
        %1911 = vmatpush1.msra.mxu0 %v961
        %1912 = vmatprep.mubr.f32.mxu0 %v816
        %1913 = vmatmul.mubr.f32.gmra.mrb[0].mxu0 %v815
        %v1914 = vpop.f32.mrb[0].mxu0
        %v1915 = vadd.f32 %v1448, %v1914
        %v1916 = vpop.f32.mrb[0].mxu0
        %v1917 = vadd.f32 %v1452, %v1916
        %1918 = vmatprep.mubr.f32.mxu0 %v826
        %1919 = vmatmul.mubr.f32.gmra.mrb[0].mxu0 %v825
        %v1920 = vpop.f32.mrb[0].mxu0
        %v1921 = vadd.f32 %v1448, %v1920
        %v1922 = vpop.f32.mrb[0].mxu0
        %v1923 = vadd.f32 %v1452, %v1922
        %1924 = vdwg.mxu0
        %1925 = vmatprep.subr.mxu0 %v966
        %1926 = vmatpush1.msra.mxu0 %v965
        %1927 = vmatprep.subr.mxu0 %v970
        %1928 = vmatpush1.msra.mxu0 %v969
        %1929 = vmatprep.subr.mxu0 %v974
        %1930 = vmatpush1.msra.mxu0 %v973
        %1931 = vmatprep.subr.mxu0 %v978
        %1932 = vmatpush1.msra.mxu0 %v977
        %1933 = vmatprep.subr.mxu0 %v982
        %1934 = vmatpush1.msra.mxu0 %v981
        %1935 = vmatprep.subr.mxu0 %v986
        %1936 = vmatpush1.msra.mxu0 %v985
        %1937 = vmatprep.subr.mxu0 %v990
        %1938 = vmatpush1.msra.mxu0 %v989
        %1939 = vmatprep.subr.mxu0 %v994
        %1940 = vmatpush1.msra.mxu0 %v993
        %1941 = vmatprep.subr.mxu0 %v998
        %1942 = vmatpush1.msra.mxu0 %v997
        %1943 = vmatprep.subr.mxu0 %v1002
        %1944 = vmatpush1.msra.mxu0 %v1001
        %1945 = vmatprep.subr.mxu0 %v1006
        %1946 = vmatpush1.msra.mxu0 %v1005
        %1947 = vmatprep.subr.mxu0 %v1010
        %1948 = vmatpush1.msra.mxu0 %v1009
        %1949 = vmatprep.subr.mxu0 %v1014
        %1950 = vmatpush1.msra.mxu0 %v1013
        %1951 = vmatprep.subr.mxu0 %v1018
        %1952 = vmatpush1.msra.mxu0 %v1017
        %1953 = vmatprep.subr.mxu0 %v1022
        %1954 = vmatpush1.msra.mxu0 %v1021
        %1955 = vmatprep.subr.mxu0 %v1026
        %1956 = vmatpush1.msra.mxu0 %v1025
        %1957 = vmatprep.subr.mxu0 %v1030
        %1958 = vmatpush1.msra.mxu0 %v1029
        %1959 = vmatprep.subr.mxu0 %v1034
        %1960 = vmatpush1.msra.mxu0 %v1033
        %1961 = vmatprep.subr.mxu0 %v1038
        %1962 = vmatpush1.msra.mxu0 %v1037
        %1963 = vmatprep.subr.mxu0 %v1042
        %1964 = vmatpush1.msra.mxu0 %v1041
        %1965 = vmatprep.subr.mxu0 %v1046
        %1966 = vmatpush1.msra.mxu0 %v1045
        %1967 = vmatprep.subr.mxu0 %v1050
        %1968 = vmatpush1.msra.mxu0 %v1049
        %1969 = vmatprep.subr.mxu0 %v1054
        %1970 = vmatpush1.msra.mxu0 %v1053
        %1971 = vmatprep.subr.mxu0 %v1058
        %1972 = vmatpush1.msra.mxu0 %v1057
        %1973 = vmatprep.subr.mxu0 %v1062
        %1974 = vmatpush1.msra.mxu0 %v1061
        %1975 = vmatprep.subr.mxu0 %v1066
        %1976 = vmatpush1.msra.mxu0 %v1065
        %1977 = vmatprep.subr.mxu0 %v1070
        %1978 = vmatpush1.msra.mxu0 %v1069
        %1979 = vmatprep.subr.mxu0 %v1074
        %1980 = vmatpush1.msra.mxu0 %v1073
        %1981 = vmatprep.subr.mxu0 %v1078
        %1982 = vmatpush1.msra.mxu0 %v1077
        %1983 = vmatprep.subr.mxu0 %v1082
        %1984 = vmatpush1.msra.mxu0 %v1081
        %1985 = vmatprep.subr.mxu0 %v1086
        %1986 = vmatpush1.msra.mxu0 %v1085
        %1987 = vmatprep.subr.mxu0 %v1090
        %1988 = vmatpush1.msra.mxu0 %v1089
        %1989 = vmatprep.mubr.f32.mxu0 %v818
        %1990 = vmatmul.mubr.f32.gmra.mrb[0].mxu0 %v817
        %v1991 = vpop.f32.mrb[0].mxu0
        %v1992 = vadd.f32 %v1915, %v1991
        %v1993 = vpop.f32.mrb[0].mxu0
        %v1994 = vadd.f32 %v1917, %v1993
        %1995 = vmatprep.mubr.f32.mxu0 %v828
        %1996 = vmatmul.mubr.f32.gmra.mrb[0].mxu0 %v827
        %v1997 = vpop.f32.mrb[0].mxu0
        %v1998 = vadd.f32 %v1921, %v1997
        %v1999 = vpop.f32.mrb[0].mxu0
        %v2000 = vadd.f32 %v1923, %v1999
        %2001 = vdwg.mxu0
        %2002 = vmatprep.subr.mxu0 %v1094
        %2003 = vmatpush1.msra.mxu0 %v1093
        %2004 = vmatprep.subr.mxu0 %v1098
        %2005 = vmatpush1.msra.mxu0 %v1097
        %2006 = vmatprep.subr.mxu0 %v1102
        %2007 = vmatpush1.msra.mxu0 %v1101
        %2008 = vmatprep.subr.mxu0 %v1106
        %2009 = vmatpush1.msra.mxu0 %v1105
        %2010 = vmatprep.subr.mxu0 %v1110
        %2011 = vmatpush1.msra.mxu0 %v1109
        %2012 = vmatprep.subr.mxu0 %v1114
        %2013 = vmatpush1.msra.mxu0 %v1113
        %2014 = vmatprep.subr.mxu0 %v1118
        %2015 = vmatpush1.msra.mxu0 %v1117
        %2016 = vmatprep.subr.mxu0 %v1122
        %2017 = vmatpush1.msra.mxu0 %v1121
        %2018 = vmatprep.subr.mxu0 %v1126
        %2019 = vmatpush1.msra.mxu0 %v1125
        %2020 = vmatprep.subr.mxu0 %v1130
        %2021 = vmatpush1.msra.mxu0 %v1129
        %2022 = vmatprep.subr.mxu0 %v1134
        %2023 = vmatpush1.msra.mxu0 %v1133
        %2024 = vmatprep.subr.mxu0 %v1138
        %2025 = vmatpush1.msra.mxu0 %v1137
        %2026 = vmatprep.subr.mxu0 %v1142
        %2027 = vmatpush1.msra.mxu0 %v1141
        %2028 = vmatprep.subr.mxu0 %v1146
        %2029 = vmatpush1.msra.mxu0 %v1145
        %2030 = vmatprep.subr.mxu0 %v1150
        %2031 = vmatpush1.msra.mxu0 %v1149
        %2032 = vmatprep.subr.mxu0 %v1154
        %2033 = vmatpush1.msra.mxu0 %v1153
        %2034 = vmatprep.subr.mxu0 %v1158
        %2035 = vmatpush1.msra.mxu0 %v1157
        %2036 = vmatprep.subr.mxu0 %v1162
        %2037 = vmatpush1.msra.mxu0 %v1161
        %2038 = vmatprep.subr.mxu0 %v1166
        %2039 = vmatpush1.msra.mxu0 %v1165
        %2040 = vmatprep.subr.mxu0 %v1170
        %2041 = vmatpush1.msra.mxu0 %v1169
        %2042 = vmatprep.subr.mxu0 %v1174
        %2043 = vmatpush1.msra.mxu0 %v1173
        %2044 = vmatprep.subr.mxu0 %v1178
        %2045 = vmatpush1.msra.mxu0 %v1177
        %2046 = vmatprep.subr.mxu0 %v1182
        %2047 = vmatpush1.msra.mxu0 %v1181
        %2048 = vmatprep.subr.mxu0 %v1186
        %2049 = vmatpush1.msra.mxu0 %v1185
        %2050 = vmatprep.subr.mxu0 %v1190
        %2051 = vmatpush1.msra.mxu0 %v1189
        %2052 = vmatprep.subr.mxu0 %v1194
        %2053 = vmatpush1.msra.mxu0 %v1193
        %2054 = vmatprep.subr.mxu0 %v1198
        %2055 = vmatpush1.msra.mxu0 %v1197
        %2056 = vmatprep.subr.mxu0 %v1202
        %2057 = vmatpush1.msra.mxu0 %v1201
        %2058 = vmatprep.subr.mxu0 %v1206
        %2059 = vmatpush1.msra.mxu0 %v1205
        %2060 = vmatprep.subr.mxu0 %v1210
        %2061 = vmatpush1.msra.mxu0 %v1209
        %2062 = vmatprep.subr.mxu0 %v1214
        %2063 = vmatpush1.msra.mxu0 %v1213
        %2064 = vmatprep.subr.mxu0 %v1218
        %2065 = vmatpush1.msra.mxu0 %v1217
        %2066 = vmatprep.mubr.f32.mxu0 %v820
        %2067 = vmatmul.mubr.f32.gmra.mrb[0].mxu0 %v819
        %v2068 = vpop.f32.mrb[0].mxu0
        %v2069 = vadd.f32 %v1992, %v2068
        %v2070 = vpop.f32.mrb[0].mxu0
        %v2071 = vadd.f32 %v1994, %v2070
        %2072 = vmatprep.mubr.f32.mxu0 %v830
        %2073 = vmatmul.mubr.f32.gmra.mrb[0].mxu0 %v829
        %v2074 = vpop.f32.mrb[0].mxu0
        %v2075 = vadd.f32 %v1998, %v2074
        %v2076 = vpop.f32.mrb[0].mxu0
        %v2077 = vadd.f32 %v2000, %v2076
        %2078 = vdwg.mxu0
        %2079 = vmatprep.subr.mxu0 %v1222
        %2080 = vmatpush1.msra.mxu0 %v1221
        %2081 = vmatprep.subr.mxu0 %v1226
        %2082 = vmatpush1.msra.mxu0 %v1225
        %2083 = vmatprep.subr.mxu0 %v1230
        %2084 = vmatpush1.msra.mxu0 %v1229
        %2085 = vmatprep.subr.mxu0 %v1234
        %2086 = vmatpush1.msra.mxu0 %v1233
        %2087 = vmatprep.subr.mxu0 %v1238
        %2088 = vmatpush1.msra.mxu0 %v1237
        %2089 = vmatprep.subr.mxu0 %v1242
        %2090 = vmatpush1.msra.mxu0 %v1241
        %2091 = vmatprep.subr.mxu0 %v1246
        %2092 = vmatpush1.msra.mxu0 %v1245
        %2093 = vmatprep.subr.mxu0 %v1250
        %2094 = vmatpush1.msra.mxu0 %v1249
        %2095 = vmatprep.subr.mxu0 %v1254
        %2096 = vmatpush1.msra.mxu0 %v1253
        %2097 = vmatprep.subr.mxu0 %v1258
        %2098 = vmatpush1.msra.mxu0 %v1257
        %2099 = vmatprep.subr.mxu0 %v1262
        %2100 = vmatpush1.msra.mxu0 %v1261
        %2101 = vmatprep.subr.mxu0 %v1266
        %2102 = vmatpush1.msra.mxu0 %v1265
        %2103 = vmatprep.subr.mxu0 %v1270
        %2104 = vmatpush1.msra.mxu0 %v1269
        %2105 = vmatprep.subr.mxu0 %v1274
        %2106 = vmatpush1.msra.mxu0 %v1273
        %2107 = vmatprep.subr.mxu0 %v1278
        %2108 = vmatpush1.msra.mxu0 %v1277
        %2109 = vmatprep.subr.mxu0 %v1282
        %2110 = vmatpush1.msra.mxu0 %v1281
        %2111 = vmatprep.subr.mxu0 %v1286
        %2112 = vmatpush1.msra.mxu0 %v1285
        %2113 = vmatprep.subr.mxu0 %v1290
        %2114 = vmatpush1.msra.mxu0 %v1289
        %2115 = vmatprep.subr.mxu0 %v1294
        %2116 = vmatpush1.msra.mxu0 %v1293
        %2117 = vmatprep.subr.mxu0 %v1298
        %2118 = vmatpush1.msra.mxu0 %v1297
        %2119 = vmatprep.subr.mxu0 %v1302
        %2120 = vmatpush1.msra.mxu0 %v1301
        %2121 = vmatprep.subr.mxu0 %v1306
        %2122 = vmatpush1.msra.mxu0 %v1305
        %2123 = vmatprep.subr.mxu0 %v1310
        %2124 = vmatpush1.msra.mxu0 %v1309
        %2125 = vmatprep.subr.mxu0 %v1314
        %2126 = vmatpush1.msra.mxu0 %v1313
        %2127 = vmatprep.subr.mxu0 %v1318
        %2128 = vmatpush1.msra.mxu0 %v1317
        %2129 = vmatprep.subr.mxu0 %v1322
        %2130 = vmatpush1.msra.mxu0 %v1321
        %2131 = vmatprep.subr.mxu0 %v1326
        %2132 = vmatpush1.msra.mxu0 %v1325
        %2133 = vmatprep.subr.mxu0 %v1330
        %2134 = vmatpush1.msra.mxu0 %v1329
        %2135 = vmatprep.subr.mxu0 %v1334
        %2136 = vmatpush1.msra.mxu0 %v1333
        %2137 = vmatprep.subr.mxu0 %v1338
        %2138 = vmatpush1.msra.mxu0 %v1337
        %2139 = vmatprep.subr.mxu0 %v1342
        %2140 = vmatpush1.msra.mxu0 %v1341
        %2141 = vmatprep.subr.mxu0 %v1346
        %2142 = vmatpush1.msra.mxu0 %v1345
        %2143 = vmatprep.mubr.f32.mxu0 %v822
        %2144 = vmatmul.mubr.f32.gmra.mrb[0].mxu0 %v821
        %v2145 = vpop.f32.mrb[0].mxu0
        %v2146 = vadd.f32 %v2069, %v2145
        %v2147 = vpop.f32.mrb[0].mxu0
        %v2148 = vadd.f32 %v2071, %v2147
        %2149 = vmatprep.mubr.f32.mxu0 %v832
        %2150 = vmatmul.mubr.f32.gmra.mrb[0].mxu0 %v831
        %v2151 = vpop.f32.mrb[0].mxu0
        %v2152 = vadd.f32 %v2075, %v2151
        %v2153 = vpop.f32.mrb[0].mxu0
        %v2154 = vadd.f32 %v2077, %v2153
        %2155 = vdwg.mxu0
        %2156 = vmatprep.subr.mxu0 %v1350
        %2157 = vmatpush1.msra.mxu0 %v1349
        %2158 = vmatprep.subr.mxu0 %v1354
        %2159 = vmatpush1.msra.mxu0 %v1353
        %2160 = vmatprep.subr.mxu0 %v1358
        %2161 = vmatpush1.msra.mxu0 %v1357
        %2162 = vmatprep.subr.mxu0 %v1362
        %2163 = vmatpush1.msra.mxu0 %v1361
        %2164 = vmatprep.subr.mxu0 %v1366
        %2165 = vmatpush1.msra.mxu0 %v1365
        %2166 = vmatprep.subr.mxu0 %v1370
        %2167 = vmatpush1.msra.mxu0 %v1369
        %2168 = vmatprep.subr.mxu0 %v1374
        %2169 = vmatpush1.msra.mxu0 %v1373
        %2170 = vmatprep.subr.mxu0 %v1378
        %2171 = vmatpush1.msra.mxu0 %v1377
        %2172 = vmatprep.subr.mxu0 %v1382
        %2173 = vmatpush1.msra.mxu0 %v1381
        %2174 = vmatprep.subr.mxu0 %v1386
        %2175 = vmatpush1.msra.mxu0 %v1385
        %2176 = vmatprep.subr.mxu0 %v1390
        %2177 = vmatpush1.msra.mxu0 %v1389
        %2178 = vmatprep.subr.mxu0 %v1394
        %2179 = vmatpush1.msra.mxu0 %v1393
        %2180 = vmatprep.subr.mxu0 %v1398
        %2181 = vmatpush1.msra.mxu0 %v1397
        %2182 = vmatprep.subr.mxu0 %v1402
        %2183 = vmatpush1.msra.mxu0 %v1401
        %2184 = vmatprep.subr.mxu0 %v1406
        %2185 = vmatpush1.msra.mxu0 %v1405
        %2186 = vmatprep.subr.mxu0 %v1410
        %2187 = vmatpush1.msra.mxu0 %v1409
        %2188 = vmatprep.subr.mxu0 %v1414
        %2189 = vmatpush1.msra.mxu0 %v1413
        %2190 = vmatprep.subr.mxu0 %v1418
        %2191 = vmatpush1.msra.mxu0 %v1417
        %2192 = vmatprep.subr.mxu0 %v1422
        %2193 = vmatpush1.msra.mxu0 %v1421
        %2194 = vmatprep.subr.mxu0 %v1426
        %2195 = vmatpush1.msra.mxu0 %v1425
        %2196 = vmatprep.subr.mxu0 %v1430
        %2197 = vmatpush1.msra.mxu0 %v1429
        %2198 = vmatprep.subr.mxu0 %v1434
        %2199 = vmatpush1.msra.mxu0 %v1433
        %2200 = vmatprep.subr.mxu0 0.0
        %2201 = vmatpush1.msra.mxu0 0.0
        %2202 = vmatprep.subr.mxu0 0.0
        %2203 = vmatpush1.msra.mxu0 0.0
        %2204 = vmatprep.subr.mxu0 0.0
        %2205 = vmatpush1.msra.mxu0 0.0
        %2206 = vmatprep.subr.mxu0 0.0
        %2207 = vmatpush1.msra.mxu0 0.0
        %2208 = vmatprep.subr.mxu0 0.0
        %2209 = vmatpush1.msra.mxu0 0.0
        %2210 = vmatprep.subr.mxu0 0.0
        %2211 = vmatpush1.msra.mxu0 0.0
        %2212 = vmatprep.subr.mxu0 0.0
        %2213 = vmatpush1.msra.mxu0 0.0
        %2214 = vmatprep.subr.mxu0 0.0
        %2215 = vmatpush1.msra.mxu0 0.0
        %2216 = vmatprep.subr.mxu0 0.0
        %2217 = vmatpush1.msra.mxu0 0.0
        %2218 = vmatprep.subr.mxu0 0.0
        %2219 = vmatpush1.msra.mxu0 0.0
        %2220 = vmatprep.mubr.f32.mxu0 %v1458
        %2221 = vmatmul.mubr.f32.gmra.mrb[0].mxu0 %v823
        %v2222 = vpop.f32.mrb[0].mxu0
        %v2223 = vadd.f32 %v2146, %v2222
        %v2224 = vpop.f32.mrb[0].mxu0
        %v2225 = vadd.f32 %v2148, %v2224
        %2226 = vmatprep.mubr.f32.mxu0 %v1461
        %2227 = vmatmul.mubr.f32.gmra.mrb[0].mxu0 %v833
        %v2228 = vpop.f32.mrb[0].mxu0
        %v2229 = vadd.f32 %v2152, %v2228
        %v2230 = vpop.f32.mrb[0].mxu0
        %v2231 = vadd.f32 %v2154, %v2230
        %2232 = vdwg.mxu0
        %v2233 = vxor.u32 %v1838, 2147483648
        %v2234 = vxor.u32 %v1840, 2147483648
        %v2235 = vxor.u32 %v2223, 2147483648
        %v2236 = vxor.u32 %v1844, 2147483648
        %v2237 = vxor.u32 %v1846, 2147483648
        %v2238 = vxor.u32 %v2229, 2147483648
        %v2239 = vmul.f32 %v2233, 1.442695
        %v2240 = vpow.pop %v2239
        %v2241 = vmul.f32 %v2234, 1.442695
        %v2242 = vpow.pop %v2241
        %v2243 = vmul.f32 %v2235, 1.442695
        %v2244 = vpow.pop %v2243
        %v2245 = vmul.f32 %v2236, 1.442695
        %v2246 = vpow.pop %v2245
        %v2247 = vmul.f32 %v2237, 1.442695
        %v2248 = vpow.pop %v2247
        %v2249 = vmul.f32 %v2238, 1.442695
        %v2250 = vpow.pop %v2249
        %v2251 = vadd.f32 %v2240, 1.0
        %v2252 = vadd.f32 %v2242, 1.0
        %v2253 = vadd.f32 %v2244, 1.0
        %v2254 = vadd.f32 %v2246, 1.0
        %v2255 = vadd.f32 %v2248, 1.0
        %v2256 = vadd.f32 %v2250, 1.0
        %v2257 = vrcp.pop %v2251
        %v2258 = vmul.f32 1.0, %v2257
        %v2259 = vrcp.pop %v2252
        %v2260 = vmul.f32 1.0, %v2259
        %v2261 = vrcp.pop %v2253
        %v2262 = vmul.f32 1.0, %v2261
        %v2263 = vrcp.pop %v2254
        %v2264 = vmul.f32 1.0, %v2263
        %v2265 = vrcp.pop %v2255
        %v2266 = vmul.f32 1.0, %v2265
        %v2267 = vrcp.pop %v2256
        %v2268 = vmul.f32 1.0, %v2267
        %v2269 = vtanh.pop %v2225
        %v2270 = vtanh.pop %v2231
        %v2271 = vld [vmem:[%s429] sm:$0xff]
        %v2272 = vld [vmem:[%s429 + $0x8] sm:$0xff]
        %v2273 = vmul.f32 %v2260, %v2271
        %v2274 = vmul.f32 %v2266, %v2272
        %v2275 = vmul.f32 %v2258, %v2269
        %v2276 = vmul.f32 %v2264, %v2270
        %v2277 = vadd.f32 %v2273, %v2275
        %v2278 = vadd.f32 %v2274, %v2276
        %v2279 = vtanh.pop %v2277
        %v2280 = vtanh.pop %v2278
        %v2281 = vmul.f32 %v2262, %v2279
        %v2282 = vmul.f32 %v2268, %v2280
        %2283 = vst [vmem:[%s492] sm:$0xff] %v2277
        %2284 = vst [vmem:[%s492 + $0x8] sm:$0xff] %v2278
        %2285 = vst [vmem:[%s485] sm:$0xff] %v2281
        %2286 = vst [vmem:[%s485 + $0x8] sm:$0xff] %v2282
        %v2289 = vrot.slane %v2281, 6
        %v2290 = vrot.slane %v2282, 6
        %v2291 = vsel %vm530, %v2289, %v2290
        %2292 = vrot.lane.b32.xlu0 %v2289, 16
        %v2293 = vpop.permute.xlu0 %2292
        %2294 = vrot.lane.b32.xlu0 %v2291, 16
        %v2295 = vpop.permute.xlu0 %2294
        %2296 = vrot.lane.b32.xlu0 %v2290, 16
        %v2297 = vpop.permute.xlu0 %2296
        %2301 = vst.msk [vmem:[#allocation3] sm:$0xfc] %vm543, %v2293
        %2302 = vst.msk [vmem:[#allocation3 + $0x8] sm:$0xfc] %vm545, %v2293
        %2303 = vst.msk [vmem:[#allocation3 + $0x10] sm:$0xff] %vm547, %v2295
        %2304 = vst.msk [vmem:[#allocation3 + $0x18] sm:$0xff] %vm549, %v2295
        %2305 = vst.msk [vmem:[#allocation3 + $0x20] sm:$0x3] %vm551, %v2297
        %2306 = vst.msk [vmem:[#allocation3 + $0x28] sm:$0x3] %vm553, %v2297
        %v2307 = vld [vmem:[#allocation3] sm:$0xff]
        %v2308 = vld [vmem:[#allocation3 + $0x8] sm:$0xff]
        %v2309 = vld [vmem:[#allocation3 + $0x10] sm:$0xff]
        %v2310 = vld [vmem:[#allocation3 + $0x18] sm:$0xff]
        %2311 = vst [vmem:[#allocation5] sm:$0xff] %v2307
        %2312 = vst.msk [vmem:[#allocation5 + $0x8] sm:$0xff] %vm506, %v2308
        %2313 = vst [vmem:[#allocation5 + $0x38] sm:$0xff] %v2309
        %2314 = vst.msk [vmem:[#allocation5 + $0x40] sm:$0xff] %vm506, %v2310
        %v2315 = vld [vmem:[#allocation3] sm:$0xfe]
        %v2316 = vld [vmem:[#allocation3 + $0x8] sm:$0xfe]
        %v2317 = vld [vmem:[#allocation3 + $0x10] sm:$0xff]
        %v2318 = vld [vmem:[#allocation3 + $0x18] sm:$0xff]
        %v2319 = vld [vmem:[#allocation3 + $0x20] sm:$0x1]
        %v2320 = vld [vmem:[#allocation3 + $0x28] sm:$0x1]
        %v2327 = vrot.slane %v2315, 1
        %v2328 = vrot.slane %v2317, 1
        %v2329 = vsel %vm615, %v2327, %v2328
        %v2330 = vrot.slane %v2316, 1
        %v2331 = vrot.slane %v2318, 1
        %v2332 = vsel %vm615, %v2330, %v2331
        %v2333 = vrot.slane %v2319, 1
        %v2334 = vsel %vm615, %v2328, %v2333
        %v2335 = vrot.slane %v2320, 1
        %v2336 = vsel %vm615, %v2331, %v2335
        %2337 = vrot.lane.b32.xlu0 %v2329, 32
        %v2338 = vpop.permute.xlu0 %2337
        %2339 = vrot.lane.b32.xlu0 %v2332, 32
        %v2340 = vpop.permute.xlu0 %2339
        %2341 = vrot.lane.b32.xlu0 %v2334, 32
        %v2342 = vpop.permute.xlu0 %2341
        %2343 = vrot.lane.b32.xlu0 %v2336, 32
        %v2344 = vpop.permute.xlu0 %2343
        %v2345 = vsel %vm506, %v2338, %v2340
        %v2346 = vsel %vm506, %v2342, %v2344
        %2351 = vst.msk [vmem:[#allocation5 + $0x8] sm:$0xff] %vm755, %v2338
        %2352 = vst.msk [vmem:[#allocation5 + $0x10] sm:$0xff] %vm599, %v2345
        %2353 = vst.msk [vmem:[#allocation5 + $0x40] sm:$0xff] %vm755, %v2342
        %2354 = vst.msk [vmem:[#allocation5 + $0x48] sm:$0xff] %vm599, %v2346
        %v2355 = vld [vmem:[#allocation3] sm:$0xfc]
        %v2356 = vld [vmem:[#allocation3 + $0x8] sm:$0xfc]
        %v2357 = vld [vmem:[#allocation3 + $0x10] sm:$0xff]
        %v2358 = vld [vmem:[#allocation3 + $0x18] sm:$0xff]
        %v2359 = vld [vmem:[#allocation3 + $0x20] sm:$0x3]
        %v2360 = vld [vmem:[#allocation3 + $0x28] sm:$0x3]
        %v2367 = vrot.slane %v2355, 2
        %v2368 = vrot.slane %v2357, 2
        %v2369 = vsel %vm674, %v2367, %v2368
        %v2370 = vrot.slane %v2356, 2
        %v2371 = vrot.slane %v2358, 2
        %v2372 = vsel %vm674, %v2370, %v2371
        %v2373 = vrot.slane %v2359, 2
        %v2374 = vsel %vm674, %v2368, %v2373
        %v2375 = vrot.slane %v2360, 2
        %v2376 = vsel %vm674, %v2371, %v2375
        %2377 = vrot.lane.b32.xlu0 %v2369, 64
        %v2378 = vpop.permute.xlu0 %2377
        %2379 = vrot.lane.b32.xlu0 %v2372, 64
        %v2380 = vpop.permute.xlu0 %2379
        %2381 = vrot.lane.b32.xlu0 %v2374, 64
        %v2382 = vpop.permute.xlu0 %2381
        %2383 = vrot.lane.b32.xlu0 %v2376, 64
        %v2384 = vpop.permute.xlu0 %2383
        %v2385 = vsel %vm599, %v2378, %v2380
        %v2386 = vsel %vm599, %v2382, %v2384
        %2391 = vst.msk [vmem:[#allocation5 + $0x10] sm:$0xff] %vm640, %v2378
        %2392 = vst.msk [vmem:[#allocation5 + $0x18] sm:$0xff] %vm642, %v2385
        %2393 = vst.msk [vmem:[#allocation5 + $0x48] sm:$0xff] %vm640, %v2382
        %2394 = vst.msk [vmem:[#allocation5 + $0x50] sm:$0xff] %vm642, %v2386
        %v2395 = vld [vmem:[#allocation3] sm:$0xf8]
        %v2396 = vld [vmem:[#allocation3 + $0x8] sm:$0xf8]
        %v2397 = vld [vmem:[#allocation3 + $0x10] sm:$0xff]
        %v2398 = vld [vmem:[#allocation3 + $0x18] sm:$0xff]
        %v2399 = vld [vmem:[#allocation3 + $0x20] sm:$0x7]
        %v2400 = vld [vmem:[#allocation3 + $0x28] sm:$0x7]
        %v2407 = vrot.slane %v2395, 3
        %v2408 = vrot.slane %v2397, 3
        %v2409 = vsel %vm730, %v2407, %v2408
        %v2410 = vrot.slane %v2396, 3
        %v2411 = vrot.slane %v2398, 3
        %v2412 = vsel %vm730, %v2410, %v2411
        %v2413 = vrot.slane %v2399, 3
        %v2414 = vsel %vm730, %v2408, %v2413
        %v2415 = vrot.slane %v2400, 3
        %v2416 = vsel %vm730, %v2411, %v2415
        %2417 = vrot.lane.b32.xlu0 %v2409, 96
        %v2418 = vpop.permute.xlu0 %2417
        %2419 = vrot.lane.b32.xlu0 %v2412, 96
        %v2420 = vpop.permute.xlu0 %2419
        %2421 = vrot.lane.b32.xlu0 %v2414, 96
        %v2422 = vpop.permute.xlu0 %2421
        %2423 = vrot.lane.b32.xlu0 %v2416, 96
        %v2424 = vpop.permute.xlu0 %2423
        %v2425 = vsel %vm642, %v2418, %v2420
        %v2426 = vsel %vm642, %v2422, %v2424
        %2431 = vst.msk [vmem:[#allocation5 + $0x18] sm:$0xff] %vm656, %v2418
        %2432 = vst [vmem:[#allocation5 + $0x20] sm:$0xff] %v2425
        %2433 = vst.msk [vmem:[#allocation5 + $0x50] sm:$0xff] %vm656, %v2422
        %2434 = vst [vmem:[#allocation5 + $0x58] sm:$0xff] %v2426
        %v2435 = vld [vmem:[#allocation3] sm:$0xf0]
        %v2436 = vld [vmem:[#allocation3 + $0x8] sm:$0xf0]
        %v2437 = vld [vmem:[#allocation3 + $0x10] sm:$0xff]
        %v2438 = vld [vmem:[#allocation3 + $0x18] sm:$0xff]
        %v2439 = vld [vmem:[#allocation3 + $0x20] sm:$0xf]
        %v2440 = vld [vmem:[#allocation3 + $0x28] sm:$0xf]
        %v2447 = vrot.slane %v2435, 4
        %v2448 = vrot.slane %v2437, 4
        %v2449 = vsel %vm786, %v2447, %v2448
        %v2450 = vrot.slane %v2436, 4
        %v2451 = vrot.slane %v2438, 4
        %v2452 = vsel %vm786, %v2450, %v2451
        %v2453 = vrot.slane %v2439, 4
        %v2454 = vsel %vm786, %v2448, %v2453
        %v2455 = vrot.slane %v2440, 4
        %v2456 = vsel %vm786, %v2451, %v2455
        %2461 = vst [vmem:[#allocation5 + $0x28] sm:$0xff] %v2449
        %2462 = vst.msk [vmem:[#allocation5 + $0x30] sm:$0xff] %vm506, %v2452
        %2463 = vst [vmem:[#allocation5 + $0x60] sm:$0xff] %v2454
        %2464 = vst.msk [vmem:[#allocation5 + $0x68] sm:$0xff] %vm506, %v2456
        %v2465 = vld [vmem:[#allocation5] sm:$0xff]
        %v2466 = vld [vmem:[#allocation5 + $0x8] sm:$0xff]
        %v2467 = vld [vmem:[#allocation5 + $0x10] sm:$0xff]
        %v2468 = vld [vmem:[#allocation5 + $0x18] sm:$0xff]
        %v2469 = vld [vmem:[#allocation5 + $0x20] sm:$0xff]
        %v2470 = vld [vmem:[#allocation5 + $0x28] sm:$0xff]
        %v2471 = vld [vmem:[#allocation5 + $0x30] sm:$0xff]
        %v2472 = vld [vmem:[#allocation5 + $0x38] sm:$0xff]
        %v2473 = vld [vmem:[#allocation5 + $0x40] sm:$0xff]
        %v2474 = vld [vmem:[#allocation5 + $0x48] sm:$0xff]
        %v2475 = vld [vmem:[#allocation5 + $0x50] sm:$0xff]
        %v2476 = vld [vmem:[#allocation5 + $0x58] sm:$0xff]
        %v2477 = vld [vmem:[#allocation5 + $0x60] sm:$0xff]
        %v2478 = vld [vmem:[#allocation5 + $0x68] sm:$0xff]
        %v2479 = vld [vmem:[#allocation15] sm:$0xff]
        %v2480 = vld [vmem:[#allocation15 + $0x8] sm:$0xff]
        %v2481 = vld [vmem:[#allocation15 + $0x10] sm:$0xff]
        %v2482 = vld [vmem:[#allocation15 + $0x18] sm:$0xff]
        %v2483 = vld [vmem:[#allocation15 + $0x20] sm:$0xff]
        %v2484 = vld [vmem:[#allocation15 + $0x28] sm:$0xff]
        %v2485 = vld [vmem:[#allocation15 + $0x30] sm:$0xff]
        %v2486 = vld [vmem:[#allocation15 + $0x38] sm:$0xff]
        %v2487 = vld [vmem:[#allocation15 + $0x40] sm:$0xff]
        %v2488 = vld [vmem:[#allocation15 + $0x48] sm:$0xff]
        %v2489 = vld [vmem:[#allocation15 + $0x50] sm:$0xff]
        %v2490 = vld [vmem:[#allocation15 + $0x58] sm:$0xff]
        %v2491 = vld [vmem:[#allocation15 + $0x60] sm:$0xff]
        %v2492 = vld [vmem:[#allocation15 + $0x68] sm:$0xff]
        %v2493 = vld [vmem:[#allocation15 + $0x70] sm:$0xff]
        %v2494 = vld [vmem:[#allocation15 + $0x78] sm:$0xff]
        %v2495 = vld [vmem:[#allocation15 + $0x80] sm:$0xff]
        %v2496 = vld [vmem:[#allocation15 + $0x88] sm:$0xff]
        %v2497 = vld [vmem:[#allocation15 + $0x90] sm:$0xff]
        %v2498 = vld [vmem:[#allocation15 + $0x98] sm:$0xff]
        %v2499 = vld [vmem:[#allocation15 + $0xa0] sm:$0xff]
        %v2500 = vld [vmem:[#allocation15 + $0xa8] sm:$0xff]
        %v2501 = vld [vmem:[#allocation15 + $0xb0] sm:$0xff]
        %v2502 = vld [vmem:[#allocation15 + $0xb8] sm:$0xff]
        %v2503 = vld [vmem:[#allocation15 + $0xc0] sm:$0xff]
        %v2504 = vld [vmem:[#allocation15 + $0xc8] sm:$0xff]
        %v2505 = vld [vmem:[#allocation15 + $0xd0] sm:$0xff]
        %v2506 = vld [vmem:[#allocation15 + $0xd8] sm:$0xff]
        %v2507 = vld [vmem:[#allocation15 + $0xe0] sm:$0xff]
        %v2508 = vld [vmem:[#allocation15 + $0xe8] sm:$0xff]
        %v2509 = vld [vmem:[#allocation15 + $0xf0] sm:$0xff]
        %v2510 = vld [vmem:[#allocation15 + $0xf8] sm:$0xff]
        %v2511 = vld [vmem:[#allocation15 + $0x100] sm:$0xff]
        %v2512 = vld [vmem:[#allocation15 + $0x108] sm:$0xff]
        %v2513 = vld [vmem:[#allocation15 + $0x110] sm:$0xff]
        %v2514 = vld [vmem:[#allocation15 + $0x118] sm:$0xff]
        %v2515 = vld [vmem:[#allocation15 + $0x120] sm:$0xff]
        %v2516 = vld [vmem:[#allocation15 + $0x128] sm:$0xff]
        %v2517 = vld [vmem:[#allocation15 + $0x130] sm:$0xff]
        %v2518 = vld [vmem:[#allocation15 + $0x138] sm:$0xff]
        %v2519 = vld [vmem:[#allocation15 + $0x140] sm:$0xff]
        %v2520 = vld [vmem:[#allocation15 + $0x148] sm:$0xff]
        %v2521 = vld [vmem:[#allocation15 + $0x150] sm:$0xff]
        %v2522 = vld [vmem:[#allocation15 + $0x158] sm:$0xff]
        %v2523 = vld [vmem:[#allocation15 + $0x160] sm:$0xff]
        %v2524 = vld [vmem:[#allocation15 + $0x168] sm:$0xff]
        %v2525 = vld [vmem:[#allocation15 + $0x170] sm:$0xff]
        %v2526 = vld [vmem:[#allocation15 + $0x178] sm:$0xff]
        %v2527 = vld [vmem:[#allocation15 + $0x180] sm:$0xff]
        %v2528 = vld [vmem:[#allocation15 + $0x188] sm:$0xff]
        %v2529 = vld [vmem:[#allocation15 + $0x190] sm:$0xff]
        %v2530 = vld [vmem:[#allocation15 + $0x198] sm:$0xff]
        %v2531 = vld [vmem:[#allocation15 + $0x1a0] sm:$0xff]
        %v2532 = vld [vmem:[#allocation15 + $0x1a8] sm:$0xff]
        %v2533 = vld [vmem:[#allocation15 + $0x1b0] sm:$0xff]
        %v2534 = vld [vmem:[#allocation15 + $0x1b8] sm:$0xff]
        %v2535 = vld [vmem:[#allocation15 + $0x1c0] sm:$0xff]
        %v2536 = vld [vmem:[#allocation15 + $0x1c8] sm:$0xff]
        %v2537 = vld [vmem:[#allocation15 + $0x1d0] sm:$0xff]
        %v2538 = vld [vmem:[#allocation15 + $0x1d8] sm:$0xff]
        %v2539 = vld [vmem:[#allocation15 + $0x1e0] sm:$0xff]
        %v2540 = vld [vmem:[#allocation15 + $0x1e8] sm:$0xff]
        %v2541 = vld [vmem:[#allocation15 + $0x1f0] sm:$0xff]
        %v2542 = vld [vmem:[#allocation15 + $0x1f8] sm:$0xff]
        %v2543 = vld [vmem:[#allocation15 + $0x200] sm:$0xff]
        %v2544 = vld [vmem:[#allocation15 + $0x208] sm:$0xff]
        %v2545 = vld [vmem:[#allocation15 + $0x210] sm:$0xff]
        %v2546 = vld [vmem:[#allocation15 + $0x218] sm:$0xff]
        %v2547 = vld [vmem:[#allocation15 + $0x220] sm:$0xff]
        %v2548 = vld [vmem:[#allocation15 + $0x228] sm:$0xff]
        %v2549 = vld [vmem:[#allocation15 + $0x230] sm:$0xff]
        %v2550 = vld [vmem:[#allocation15 + $0x238] sm:$0xff]
        %v2551 = vld [vmem:[#allocation15 + $0x240] sm:$0xff]
        %v2552 = vld [vmem:[#allocation15 + $0x248] sm:$0xff]
        %v2553 = vld [vmem:[#allocation15 + $0x250] sm:$0xff]
        %v2554 = vld [vmem:[#allocation15 + $0x258] sm:$0xff]
        %v2555 = vld [vmem:[#allocation15 + $0x260] sm:$0xff]
        %v2556 = vld [vmem:[#allocation15 + $0x268] sm:$0xff]
        %v2557 = vld [vmem:[#allocation15 + $0x270] sm:$0xff]
        %v2558 = vld [vmem:[#allocation15 + $0x278] sm:$0xff]
        %v2559 = vld [vmem:[#allocation15 + $0x280] sm:$0xff]
        %v2560 = vld [vmem:[#allocation15 + $0x288] sm:$0xff]
        %v2561 = vld [vmem:[#allocation15 + $0x290] sm:$0xff]
        %v2562 = vld [vmem:[#allocation15 + $0x298] sm:$0xff]
        %v2563 = vld [vmem:[#allocation15 + $0x2a0] sm:$0xff]
        %v2564 = vld [vmem:[#allocation15 + $0x2a8] sm:$0xff]
        %v2565 = vld [vmem:[#allocation15 + $0x2b0] sm:$0xff]
        %v2566 = vld [vmem:[#allocation15 + $0x2b8] sm:$0xff]
        %v2567 = vld [vmem:[#allocation15 + $0x2c0] sm:$0xff]
        %v2568 = vld [vmem:[#allocation15 + $0x2c8] sm:$0xff]
        %v2569 = vld [vmem:[#allocation15 + $0x2d0] sm:$0xff]
        %v2570 = vld [vmem:[#allocation15 + $0x2d8] sm:$0xff]
        %v2571 = vld [vmem:[#allocation15 + $0x2e0] sm:$0xff]
        %v2572 = vld [vmem:[#allocation15 + $0x2e8] sm:$0xff]
        %v2573 = vld [vmem:[#allocation15 + $0x2f0] sm:$0xff]
        %v2574 = vld [vmem:[#allocation15 + $0x2f8] sm:$0xff]
        %v2575 = vld [vmem:[#allocation15 + $0x300] sm:$0xff]
        %v2576 = vld [vmem:[#allocation15 + $0x308] sm:$0xff]
        %v2577 = vld [vmem:[#allocation15 + $0x310] sm:$0xff]
        %v2578 = vld [vmem:[#allocation15 + $0x318] sm:$0xff]
        %v2579 = vld [vmem:[#allocation17] sm:$0x1]
        %v2581 = vlaneseq
        %v2582 = vshrl.u32 %v2581, 7
        %v2583 = vsub.s32 0, %v2582
        %v2584 = vrot.slane %v2579, %v2583
        %v2587 = vsel %vm506, %v2471, 0
        %v2590 = vsel %vm506, %v2478, 0
        %2592 = vmatprep.subr.mxu0 0.0
        %2593 = vmatpush1.msra.mxu0 %v2479
        %2594 = vmatprep.subr.mxu0 0.0
        %2595 = vmatpush1.msra.mxu0 %v2480
        %2596 = vmatprep.subr.mxu0 0.0
        %2597 = vmatpush1.msra.mxu0 %v2481
        %2598 = vmatprep.subr.mxu0 0.0
        %2599 = vmatpush1.msra.mxu0 %v2482
        %2600 = vmatprep.subr.mxu0 0.0
        %2601 = vmatpush1.msra.mxu0 %v2483
        %2602 = vmatprep.subr.mxu0 0.0
        %2603 = vmatpush1.msra.mxu0 %v2484
        %2604 = vmatprep.subr.mxu0 0.0
        %2605 = vmatpush1.msra.mxu0 %v2485
        %2606 = vmatprep.subr.mxu0 0.0
        %2607 = vmatpush1.msra.mxu0 %v2486
        %2608 = vmatprep.subr.mxu0 0.0
        %2609 = vmatpush1.msra.mxu0 %v2487
        %2610 = vmatprep.subr.mxu0 0.0
        %2611 = vmatpush1.msra.mxu0 %v2488
        %2612 = vmatprep.subr.mxu0 0.0
        %2613 = vmatpush1.msra.mxu0 %v2489
        %2614 = vmatprep.subr.mxu0 0.0
        %2615 = vmatpush1.msra.mxu0 %v2490
        %2616 = vmatprep.subr.mxu0 0.0
        %2617 = vmatpush1.msra.mxu0 %v2491
        %2618 = vmatprep.subr.mxu0 0.0
        %2619 = vmatpush1.msra.mxu0 %v2492
        %2620 = vmatprep.subr.mxu0 0.0
        %2621 = vmatpush1.msra.mxu0 %v2493
        %2622 = vmatprep.subr.mxu0 0.0
        %2623 = vmatpush1.msra.mxu0 %v2494
        %2624 = vmatprep.subr.mxu0 0.0
        %2625 = vmatpush1.msra.mxu0 %v2495
        %2626 = vmatprep.subr.mxu0 0.0
        %2627 = vmatpush1.msra.mxu0 %v2496
        %2628 = vmatprep.subr.mxu0 0.0
        %2629 = vmatpush1.msra.mxu0 %v2497
        %2630 = vmatprep.subr.mxu0 0.0
        %2631 = vmatpush1.msra.mxu0 %v2498
        %2632 = vmatprep.subr.mxu0 0.0
        %2633 = vmatpush1.msra.mxu0 %v2499
        %2634 = vmatprep.subr.mxu0 0.0
        %2635 = vmatpush1.msra.mxu0 %v2500
        %2636 = vmatprep.subr.mxu0 0.0
        %2637 = vmatpush1.msra.mxu0 %v2501
        %2638 = vmatprep.subr.mxu0 0.0
        %2639 = vmatpush1.msra.mxu0 %v2502
        %2640 = vmatprep.subr.mxu0 0.0
        %2641 = vmatpush1.msra.mxu0 %v2503
        %2642 = vmatprep.subr.mxu0 0.0
        %2643 = vmatpush1.msra.mxu0 %v2504
        %2644 = vmatprep.subr.mxu0 0.0
        %2645 = vmatpush1.msra.mxu0 %v2505
        %2646 = vmatprep.subr.mxu0 0.0
        %2647 = vmatpush1.msra.mxu0 %v2506
        %2648 = vmatprep.subr.mxu0 0.0
        %2649 = vmatpush1.msra.mxu0 %v2507
        %2650 = vmatprep.subr.mxu0 0.0
        %2651 = vmatpush1.msra.mxu0 %v2508
        %2652 = vmatprep.subr.mxu0 0.0
        %2653 = vmatpush1.msra.mxu0 %v2509
        %2654 = vmatprep.subr.mxu0 0.0
        %2655 = vmatpush1.msra.mxu0 %v2510
        %2656 = vmatprep.mubr.f32.mxu0 %v2466
        %2657 = vmatmul.mubr.f32.gmra.mrb[0].mxu0 %v2465
        %v2658 = vpop.f32.mrb[0].mxu0
        %v2659 = vadd.f32 %v2584, %v2658
        %v2660 = vpop.f32.mrb[0].mxu0
        %2661 = vmatprep.mubr.f32.mxu0 %v2473
        %2662 = vmatmul.mubr.f32.gmra.mrb[0].mxu0 %v2472
        %v2663 = vpop.f32.mrb[0].mxu0
        %v2664 = vadd.f32 %v2584, %v2663
        %v2665 = vpop.f32.mrb[0].mxu0
        %2666 = vdwg.mxu0
        %2667 = vmatprep.subr.mxu0 0.0
        %2668 = vmatpush1.msra.mxu0 %v2511
        %2669 = vmatprep.subr.mxu0 0.0
        %2670 = vmatpush1.msra.mxu0 %v2512
        %2671 = vmatprep.subr.mxu0 0.0
        %2672 = vmatpush1.msra.mxu0 %v2513
        %2673 = vmatprep.subr.mxu0 0.0
        %2674 = vmatpush1.msra.mxu0 %v2514
        %2675 = vmatprep.subr.mxu0 0.0
        %2676 = vmatpush1.msra.mxu0 %v2515
        %2677 = vmatprep.subr.mxu0 0.0
        %2678 = vmatpush1.msra.mxu0 %v2516
        %2679 = vmatprep.subr.mxu0 0.0
        %2680 = vmatpush1.msra.mxu0 %v2517
        %2681 = vmatprep.subr.mxu0 0.0
        %2682 = vmatpush1.msra.mxu0 %v2518
        %2683 = vmatprep.subr.mxu0 0.0
        %2684 = vmatpush1.msra.mxu0 %v2519
        %2685 = vmatprep.subr.mxu0 0.0
        %2686 = vmatpush1.msra.mxu0 %v2520
        %2687 = vmatprep.subr.mxu0 0.0
        %2688 = vmatpush1.msra.mxu0 %v2521
        %2689 = vmatprep.subr.mxu0 0.0
        %2690 = vmatpush1.msra.mxu0 %v2522
        %2691 = vmatprep.subr.mxu0 0.0
        %2692 = vmatpush1.msra.mxu0 %v2523
        %2693 = vmatprep.subr.mxu0 0.0
        %2694 = vmatpush1.msra.mxu0 %v2524
        %2695 = vmatprep.subr.mxu0 0.0
        %2696 = vmatpush1.msra.mxu0 %v2525
        %2697 = vmatprep.subr.mxu0 0.0
        %2698 = vmatpush1.msra.mxu0 %v2526
        %2699 = vmatprep.subr.mxu0 0.0
        %2700 = vmatpush1.msra.mxu0 %v2527
        %2701 = vmatprep.subr.mxu0 0.0
        %2702 = vmatpush1.msra.mxu0 %v2528
        %2703 = vmatprep.subr.mxu0 0.0
        %2704 = vmatpush1.msra.mxu0 %v2529
        %2705 = vmatprep.subr.mxu0 0.0
        %2706 = vmatpush1.msra.mxu0 %v2530
        %2707 = vmatprep.subr.mxu0 0.0
        %2708 = vmatpush1.msra.mxu0 %v2531
        %2709 = vmatprep.subr.mxu0 0.0
        %2710 = vmatpush1.msra.mxu0 %v2532
        %2711 = vmatprep.subr.mxu0 0.0
        %2712 = vmatpush1.msra.mxu0 %v2533
        %2713 = vmatprep.subr.mxu0 0.0
        %2714 = vmatpush1.msra.mxu0 %v2534
        %2715 = vmatprep.subr.mxu0 0.0
        %2716 = vmatpush1.msra.mxu0 %v2535
        %2717 = vmatprep.subr.mxu0 0.0
        %2718 = vmatpush1.msra.mxu0 %v2536
        %2719 = vmatprep.subr.mxu0 0.0
        %2720 = vmatpush1.msra.mxu0 %v2537
        %2721 = vmatprep.subr.mxu0 0.0
        %2722 = vmatpush1.msra.mxu0 %v2538
        %2723 = vmatprep.subr.mxu0 0.0
        %2724 = vmatpush1.msra.mxu0 %v2539
        %2725 = vmatprep.subr.mxu0 0.0
        %2726 = vmatpush1.msra.mxu0 %v2540
        %2727 = vmatprep.subr.mxu0 0.0
        %2728 = vmatpush1.msra.mxu0 %v2541
        %2729 = vmatprep.subr.mxu0 0.0
        %2730 = vmatpush1.msra.mxu0 %v2542
        %2731 = vmatprep.mubr.f32.mxu0 %v2468
        %2732 = vmatmul.mubr.f32.gmra.mrb[0].mxu0 %v2467
        %v2733 = vpop.f32.mrb[0].mxu0
        %v2734 = vadd.f32 %v2659, %v2733
        %v2735 = vpop.f32.mrb[0].mxu0
        %2736 = vmatprep.mubr.f32.mxu0 %v2475
        %2737 = vmatmul.mubr.f32.gmra.mrb[0].mxu0 %v2474
        %v2738 = vpop.f32.mrb[0].mxu0
        %v2739 = vadd.f32 %v2664, %v2738
        %v2740 = vpop.f32.mrb[0].mxu0
        %2741 = vdwg.mxu0
        %2742 = vmatprep.subr.mxu0 0.0
        %2743 = vmatpush1.msra.mxu0 %v2543
        %2744 = vmatprep.subr.mxu0 0.0
        %2745 = vmatpush1.msra.mxu0 %v2544
        %2746 = vmatprep.subr.mxu0 0.0
        %2747 = vmatpush1.msra.mxu0 %v2545
        %2748 = vmatprep.subr.mxu0 0.0
        %2749 = vmatpush1.msra.mxu0 %v2546
        %2750 = vmatprep.subr.mxu0 0.0
        %2751 = vmatpush1.msra.mxu0 %v2547
        %2752 = vmatprep.subr.mxu0 0.0
        %2753 = vmatpush1.msra.mxu0 %v2548
        %2754 = vmatprep.subr.mxu0 0.0
        %2755 = vmatpush1.msra.mxu0 %v2549
        %2756 = vmatprep.subr.mxu0 0.0
        %2757 = vmatpush1.msra.mxu0 %v2550
        %2758 = vmatprep.subr.mxu0 0.0
        %2759 = vmatpush1.msra.mxu0 %v2551
        %2760 = vmatprep.subr.mxu0 0.0
        %2761 = vmatpush1.msra.mxu0 %v2552
        %2762 = vmatprep.subr.mxu0 0.0
        %2763 = vmatpush1.msra.mxu0 %v2553
        %2764 = vmatprep.subr.mxu0 0.0
        %2765 = vmatpush1.msra.mxu0 %v2554
        %2766 = vmatprep.subr.mxu0 0.0
        %2767 = vmatpush1.msra.mxu0 %v2555
        %2768 = vmatprep.subr.mxu0 0.0
        %2769 = vmatpush1.msra.mxu0 %v2556
        %2770 = vmatprep.subr.mxu0 0.0
        %2771 = vmatpush1.msra.mxu0 %v2557
        %2772 = vmatprep.subr.mxu0 0.0
        %2773 = vmatpush1.msra.mxu0 %v2558
        %2774 = vmatprep.subr.mxu0 0.0
        %2775 = vmatpush1.msra.mxu0 %v2559
        %2776 = vmatprep.subr.mxu0 0.0
        %2777 = vmatpush1.msra.mxu0 %v2560
        %2778 = vmatprep.subr.mxu0 0.0
        %2779 = vmatpush1.msra.mxu0 %v2561
        %2780 = vmatprep.subr.mxu0 0.0
        %2781 = vmatpush1.msra.mxu0 %v2562
        %2782 = vmatprep.subr.mxu0 0.0
        %2783 = vmatpush1.msra.mxu0 %v2563
        %2784 = vmatprep.subr.mxu0 0.0
        %2785 = vmatpush1.msra.mxu0 %v2564
        %2786 = vmatprep.subr.mxu0 0.0
        %2787 = vmatpush1.msra.mxu0 %v2565
        %2788 = vmatprep.subr.mxu0 0.0
        %2789 = vmatpush1.msra.mxu0 %v2566
        %2790 = vmatprep.subr.mxu0 0.0
        %2791 = vmatpush1.msra.mxu0 %v2567
        %2792 = vmatprep.subr.mxu0 0.0
        %2793 = vmatpush1.msra.mxu0 %v2568
        %2794 = vmatprep.subr.mxu0 0.0
        %2795 = vmatpush1.msra.mxu0 %v2569
        %2796 = vmatprep.subr.mxu0 0.0
        %2797 = vmatpush1.msra.mxu0 %v2570
        %2798 = vmatprep.subr.mxu0 0.0
        %2799 = vmatpush1.msra.mxu0 %v2571
        %2800 = vmatprep.subr.mxu0 0.0
        %2801 = vmatpush1.msra.mxu0 %v2572
        %2802 = vmatprep.subr.mxu0 0.0
        %2803 = vmatpush1.msra.mxu0 %v2573
        %2804 = vmatprep.subr.mxu0 0.0
        %2805 = vmatpush1.msra.mxu0 %v2574
        %2806 = vmatprep.mubr.f32.mxu0 %v2470
        %2807 = vmatmul.mubr.f32.gmra.mrb[0].mxu0 %v2469
        %v2808 = vpop.f32.mrb[0].mxu0
        %v2809 = vadd.f32 %v2734, %v2808
        %v2810 = vpop.f32.mrb[0].mxu0
        %2811 = vmatprep.mubr.f32.mxu0 %v2477
        %2812 = vmatmul.mubr.f32.gmra.mrb[0].mxu0 %v2476
        %v2813 = vpop.f32.mrb[0].mxu0
        %v2814 = vadd.f32 %v2739, %v2813
        %v2815 = vpop.f32.mrb[0].mxu0
        %2816 = vdwg.mxu0
        %2817 = vmatprep.subr.mxu0 0.0
        %2818 = vmatpush1.msra.mxu0 %v2575
        %2819 = vmatprep.subr.mxu0 0.0
        %2820 = vmatpush1.msra.mxu0 %v2576
        %2821 = vmatprep.subr.mxu0 0.0
        %2822 = vmatpush1.msra.mxu0 %v2577
        %2823 = vmatprep.subr.mxu0 0.0
        %2824 = vmatpush1.msra.mxu0 %v2578
        %2825 = vmatprep.subr.mxu0 0.0
        %2826 = vmatpush1.msra.mxu0 0.0
        %2827 = vmatprep.subr.mxu0 0.0
        %2828 = vmatpush1.msra.mxu0 0.0
        %2829 = vmatprep.subr.mxu0 0.0
        %2830 = vmatpush1.msra.mxu0 0.0
        %2831 = vmatprep.subr.mxu0 0.0
        %2832 = vmatpush1.msra.mxu0 0.0
        %2833 = vmatprep.subr.mxu0 0.0
        %2834 = vmatpush1.msra.mxu0 0.0
        %2835 = vmatprep.subr.mxu0 0.0
        %2836 = vmatpush1.msra.mxu0 0.0
        %2837 = vmatprep.subr.mxu0 0.0
        %2838 = vmatpush1.msra.mxu0 0.0
        %2839 = vmatprep.subr.mxu0 0.0
        %2840 = vmatpush1.msra.mxu0 0.0
        %2841 = vmatprep.subr.mxu0 0.0
        %2842 = vmatpush1.msra.mxu0 0.0
        %2843 = vmatprep.subr.mxu0 0.0
        %2844 = vmatpush1.msra.mxu0 0.0
        %2845 = vmatprep.subr.mxu0 0.0
        %2846 = vmatpush1.msra.mxu0 0.0
        %2847 = vmatprep.subr.mxu0 0.0
        %2848 = vmatpush1.msra.mxu0 0.0
        %2849 = vmatprep.subr.mxu0 0.0
        %2850 = vmatpush1.msra.mxu0 0.0
        %2851 = vmatprep.subr.mxu0 0.0
        %2852 = vmatpush1.msra.mxu0 0.0
        %2853 = vmatprep.subr.mxu0 0.0
        %2854 = vmatpush1.msra.mxu0 0.0
        %2855 = vmatprep.subr.mxu0 0.0
        %2856 = vmatpush1.msra.mxu0 0.0
        %2857 = vmatprep.subr.mxu0 0.0
        %2858 = vmatpush1.msra.mxu0 0.0
        %2859 = vmatprep.subr.mxu0 0.0
        %2860 = vmatpush1.msra.mxu0 0.0
        %2861 = vmatprep.subr.mxu0 0.0
        %2862 = vmatpush1.msra.mxu0 0.0
        %2863 = vmatprep.subr.mxu0 0.0
        %2864 = vmatpush1.msra.mxu0 0.0
        %2865 = vmatprep.subr.mxu0 0.0
        %2866 = vmatpush1.msra.mxu0 0.0
        %2867 = vmatprep.subr.mxu0 0.0
        %2868 = vmatpush1.msra.mxu0 0.0
        %2869 = vmatprep.subr.mxu0 0.0
        %2870 = vmatpush1.msra.mxu0 0.0
        %2871 = vmatprep.subr.mxu0 0.0
        %2872 = vmatpush1.msra.mxu0 0.0
        %2873 = vmatprep.subr.mxu0 0.0
        %2874 = vmatpush1.msra.mxu0 0.0
        %2875 = vmatprep.subr.mxu0 0.0
        %2876 = vmatpush1.msra.mxu0 0.0
        %2877 = vmatprep.subr.mxu0 0.0
        %2878 = vmatpush1.msra.mxu0 0.0
        %2879 = vmatprep.subr.mxu0 0.0
        %2880 = vmatpush1.msra.mxu0 0.0
        %2881 = vmatprep.mubr.f32.mxu0 0.0
        %2882 = vmatmul.mubr.f32.gmra.mrb[0].mxu0 %v2587
        %v2883 = vpop.f32.mrb[0].mxu0
        %v2884 = vadd.f32 %v2809, %v2883
        %v2885 = vpop.f32.mrb[0].mxu0
        %2886 = vmatprep.mubr.f32.mxu0 0.0
        %2887 = vmatmul.mubr.f32.gmra.mrb[0].mxu0 %v2590
        %v2888 = vpop.f32.mrb[0].mxu0
        %v2889 = vadd.f32 %v2814, %v2888
        %v2890 = vpop.f32.mrb[0].mxu0
        %2891 = vdwg.mxu0
        %2892 = vst [vmem:[%s499] sm:$0xff] %v2884
        %2893 = vst [vmem:[%s499 + $0x8] sm:$0xff] %v2889
        %s2894 = sand.u32 %s205, 1
        %s2895 = scalar_lea.sflag [#allocation8], %s2894
        %s2896 = sand.u32 %s205, 1
        %s2897 = smul.addr %s2896, 16
        %s2898 = scalar_lea.vmem [#allocation18], %s2897
        %s2899 = sand.u32 %s35, 1
        %s2900 = scalar_lea.sflag [#allocation20], %s2899
        %s2901 = sand.u32 %s231, 1
        %s2902 = smul.addr %s2901, 16
        %s2903 = scalar_lea.vmem [#allocation19], %s2902
        %s2904 = sand.u32 %s35, 1
        %s2905 = scalar_lea.sflag [#allocation20], %s2904
        %s2906 = sand.u32 %s257, 1
        %s2907 = smul.addr %s2906, 16
        %s2908 = scalar_lea.vmem [#allocation21], %s2907
        // Predicated region
        $region77: #{tpu_custom_call.1} parent=47 // pred_check
          %p2909 = pneg %p215
        $region78: #{tpu_custom_call.1} parent=47 // pred_check_branch
          %2911 = sbr.rel (%p2909) target = $region80
        $region79: #{tpu_custom_call.1} parent=47 // pred_region
          %s2913 = ssub.s32 256, 256
          %2914 = vsyncadd %s2895, %s2913
          %s2915 = smul.addr %s35, 2
          %s2916 = smul.addr %s2915, 128
          %s2917 = scalar_lea.hbm %s7, %s2916
          %s2918 = sshll.u32 %s2898, 4
          %s2919 = int_to_ptr.vmem [resolvable:$true] %s2918
          %2924 = dma.vmem_to_hbm [thread:$0]  %s2919, 256, %s2917, %s2895, 128, 128, 8
        $region80: #{tpu_custom_call.1} parent=47 // pred_fallthru
          _
        // Predicated region
        $region81: #{tpu_custom_call.1} parent=47 // pred_check
          %p2925 = pneg %p241
        $region82: #{tpu_custom_call.1} parent=47 // pred_check_branch
          %2927 = sbr.rel (%p2925) target = $region84
        $region83: #{tpu_custom_call.1} parent=47 // pred_region
          %s2929 = ssub.s32 256, 256
          %2930 = vsyncadd %s2900, %s2929
          %s2931 = smul.addr %s35, 2
          %s2932 = smul.addr %s2931, 128
          %s2933 = scalar_lea.hbm %s8, %s2932
          %s2934 = sshll.u32 %s2903, 4
          %s2935 = int_to_ptr.vmem [resolvable:$true] %s2934
          %2940 = dma.vmem_to_hbm [thread:$0]  %s2935, 256, %s2933, %s2900, 128, 128, 8
        $region84: #{tpu_custom_call.1} parent=47 // pred_fallthru
          _
        // Predicated region
        $region85: #{tpu_custom_call.1} parent=47 // pred_check
          %p2941 = pneg %p267
        $region86: #{tpu_custom_call.1} parent=47 // pred_check_branch
          %2943 = sbr.rel (%p2941) target = $region88
        $region87: #{tpu_custom_call.1} parent=47 // pred_region
          %s2945 = ssub.s32 256, 256
          %2946 = vsyncadd %s2905, %s2945
          %s2947 = smul.addr %s35, 2
          %s2948 = smul.addr %s2947, 128
          %s2949 = scalar_lea.hbm %s9, %s2948
          %s2950 = sshll.u32 %s2908, 4
          %s2951 = int_to_ptr.vmem [resolvable:$true] %s2950
          %2956 = dma.vmem_to_hbm [thread:$0]  %s2951, 256, %s2949, %s2905, 128, 128, 8
        $region88: #{tpu_custom_call.1} parent=47 // pred_fallthru
          _
      $region48: #{tpu_custom_call.1} parent=5 // pred_fallthru
        _
      %p2957 = scmp.le.s32.totalorder 2, %s30
      // Predicated region
      $region89: #{tpu_custom_call.1} parent=5 // pred_check
        %p2958 = pneg %p2957
      $region90: #{tpu_custom_call.1} parent=5 // pred_check_branch
        %2960 = sbr.rel (%p2958) target = $region92
      $region91: #{tpu_custom_call.1} parent=5 // pred_region
        %s2961 = ssub.s32 %s30, 2
        // Predicated region
        $region93: #{tpu_custom_call.1} parent=91 // pred_check
          %p2962 = pneg %p221
        $region94: #{tpu_custom_call.1} parent=91 // pred_check_branch
          %2964 = sbr.rel (%p2962) target = $region96
        $region95: #{tpu_custom_call.1} parent=91 // pred_region
          %s2965 = sand.u32 %s206, 1
          %s2966 = scalar_lea.sflag [#allocation8], %s2965
          %s2967 = sand.u32 %s206, 1
          %s2968 = smul.addr %s2967, 16
          %s2969 = scalar_lea.vmem [#allocation18], %s2968
          %2970 = dma.done %s2966, 256
        $region96: #{tpu_custom_call.1} parent=91 // pred_fallthru
          _
        // Predicated region
        $region97: #{tpu_custom_call.1} parent=91 // pred_check
          %p2971 = pneg %p247
        $region98: #{tpu_custom_call.1} parent=91 // pred_check_branch
          %2973 = sbr.rel (%p2971) target = $region100
        $region99: #{tpu_custom_call.1} parent=91 // pred_region
          %s2974 = sand.u32 %s36, 1
          %s2975 = scalar_lea.sflag [#allocation20], %s2974
          %s2976 = sand.u32 %s232, 1
          %s2977 = smul.addr %s2976, 16
          %s2978 = scalar_lea.vmem [#allocation19], %s2977
          %2979 = dma.done %s2975, 256
        $region100: #{tpu_custom_call.1} parent=91 // pred_fallthru
          _
        // Predicated region
        $region101: #{tpu_custom_call.1} parent=91 // pred_check
          %p2980 = pneg %p273
        $region102: #{tpu_custom_call.1} parent=91 // pred_check_branch
          %2982 = sbr.rel (%p2980) target = $region104
        $region103: #{tpu_custom_call.1} parent=91 // pred_region
          %s2983 = sand.u32 %s36, 1
          %s2984 = scalar_lea.sflag [#allocation20], %s2983
          %s2985 = sand.u32 %s258, 1
          %s2986 = smul.addr %s2985, 16
          %s2987 = scalar_lea.vmem [#allocation21], %s2986
          %2988 = dma.done %s2984, 256
        $region104: #{tpu_custom_call.1} parent=91 // pred_fallthru
          _
      $region92: #{tpu_custom_call.1} parent=5 // pred_fallthru
        _
    $region6: #{tpu_custom_call.1} parent=1 // loop_footer
      %s34 = sadd.s32 1, %s30
    $region7: #{tpu_custom_call.1} parent=1 // loop_footer_branch
      %29 = sbr.rel target = $region3
    $region8: #{tpu_custom_call.1} parent=1 // loop_exit
      _
    %2989 = vsyncpa [#allocation7], 1
    %s2990 = scalar_lea.sflag [#allocation7], 1
    %2991 = vsyncpa %s2990, 1
    %2992 = vsyncpa [#allocation10], 1
    %s2993 = scalar_lea.sflag [#allocation10], 1
    %2994 = vsyncpa %s2993, 1
    %2995 = vsyncpa [#allocation13], 1
    %2996 = vsyncpa [#allocation16], 1
    %2997 = vsyncpa [#allocation8], 1
    %s2998 = scalar_lea.sflag [#allocation8], 1
    %2999 = vsyncpa %s2998, 1
    %3000 = vsyncpa [#allocation20], 1
    %s3001 = scalar_lea.sflag [#allocation20], 1
    %3002 = vsyncpa %s3001, 1

</llo_original>
